<compile_context>
chip_gen: v7x
topology: tpu7x:2x2x1
jax: 0.10.0
libtpu: 0.0.40
codegen_flags: <defaults>
</compile_context>

<pallas_src>
import jax
import jax.numpy as jnp
from jax.experimental import pallas as pl
from jax.experimental.pallas import tpu as pltpu


def _gaussian_tf_kernel(pts_ref, mean_ref, inv_std_ref, color_ref, out_ref):
    pts = pts_ref[...]                            # [TN, 4]  (x, y, z, density)
    d = pts[:, 3:4]                               # [TN, 1]
    z = (d - mean_ref[...]) * inv_std_ref[...]    # [TN, G]  (mul by precomputed 1/std)
    gauss = jnp.exp(-0.5 * (z * z))               # [TN, G]
    # weighted_colors.sum(dim=1)  ==  gauss @ colors  ([TN, G] x [G, C])
    fc = jnp.dot(gauss, color_ref[...], preferred_element_type=jnp.float32)
    fc = jnp.clip(fc, 0.0, 1.0)                   # [TN, C]
    # Fused output: coords copied bit-exactly, colors appended.
    out_ref[:, 0:3] = pts[:, 0:3]
    out_ref[:, 3:] = fc.astype(out_ref.dtype)


def _round_up(x, m):
    return ((x + m - 1) // m) * m


def gaussian_tf_mapping(points, means, std_devs, colors, *, tile_n=2048):
    """Pallas equivalent of GaussianTFMapping.forward.

    points:   [N, 4] float32   (x, y, z, density)
    means:    [G]    float32
    std_devs: [G]    float32
    colors:   [G, C] float32
    returns:  [N, 3 + C] float32
    """
    N = points.shape[0]
    G = means.shape[0]
    C = colors.shape[1]
    out_c = 3 + C

    # Clamp tile to the (8-rounded) problem size, then pad N to a multiple.
    tn = _round_up(min(tile_n, _round_up(N, 8)), 8)
    n_pad = (-N) % tn
    pts = points.astype(jnp.float32)
    if n_pad:
        pts = jnp.pad(pts, ((0, n_pad), (0, 0)))
    n_total = N + n_pad

    means2 = means.reshape(1, G).astype(jnp.float32)
    inv_std2 = (1.0 / std_devs.astype(jnp.float32)).reshape(1, G)
    colors2 = colors.astype(jnp.float32)          # [G, C]

    out = pl.pallas_call(
        _gaussian_tf_kernel,
        out_shape=jax.ShapeDtypeStruct((n_total, out_c), jnp.float32),
        grid_spec=pltpu.PrefetchScalarGridSpec(
            num_scalar_prefetch=0,
            grid=(n_total // tn,),
            in_specs=[
                pl.BlockSpec((tn, 4), lambda i: (i, 0)),   # points tile
                pl.BlockSpec((1, G), lambda i: (0, 0)),    # means (resident)
                pl.BlockSpec((1, G), lambda i: (0, 0)),    # 1/std_devs (resident)
                pl.BlockSpec((G, C), lambda i: (0, 0)),    # colors (resident)
            ],
            out_specs=pl.BlockSpec((tn, out_c), lambda i: (i, 0)),
        ),
        compiler_params=pltpu.CompilerParams(
            dimension_semantics=("parallel",)),   # lets v7x shard grid over 2 TCs
    )(pts, means2, inv_std2, colors2)

    return out[:N] if n_pad else out


def _reference(points, means, std_devs, colors):
    """Pure-JAX reference matching the PyTorch forward exactly."""
    coords = points[:, :3]
    d = points[:, 3][:, None]                                            # [N, 1]
    g = jnp.exp(-0.5 * ((d - means[None, :]) / std_devs[None, :]) ** 2)  # [N, G]
    wc = g[:, :, None] * colors[None, :, :]                              # [N, G, C]
    fc = jnp.clip(wc.sum(axis=1), 0.0, 1.0)                              # [N, C]
    return jnp.concatenate([coords, fc], axis=1)


if __name__ == "__main__":
    key = jax.random.PRNGKey(0)
    k_pts, k_col, k_pts2 = jax.random.split(key, 3)

    G, C = 8, 4   # number of gaussians, color channels (RGBA)

    # Deterministic synthetic transfer-function parameters (module __init__ args).
    initial_means = jnp.linspace(0.0, 1.0, G, dtype=jnp.float32)              # [G]
    initial_std_devs = jnp.full((G,), 0.15, dtype=jnp.float32)                # [G]
    initial_colors = jax.random.uniform(k_col, (G, C), dtype=jnp.float32)     # [G, C]

    # Primary check: multi-step grid with the enlarged tile (8192 / 2048 = 4 steps).
    N = 8192
    points = jax.random.uniform(k_pts, (N, 4), dtype=jnp.float32)
    out = gaussian_tf_mapping(points, initial_means, initial_std_devs,
                              initial_colors, tile_n=2048)
    out = jax.block_until_ready(out)
    ref = _reference(points, initial_means, initial_std_devs, initial_colors)
    assert out.shape == (N, 3 + C), out.shape
    assert jnp.allclose(out, ref, atol=1e-5, rtol=1e-5), "mismatch vs reference (N=8192)"

    # Secondary check: ragged N exercising the clamp/pad path.
    N2 = 100
    points2 = jax.random.uniform(k_pts2, (N2, 4), dtype=jnp.float32)
    out2 = jax.block_until_ready(
        gaussian_tf_mapping(points2, initial_means, initial_std_devs, initial_colors))
    ref2 = _reference(points2, initial_means, initial_std_devs, initial_colors)
    assert out2.shape == (N2, 3 + C), out2.shape
    assert jnp.allclose(out2, ref2, atol=1e-5, rtol=1e-5), "mismatch vs reference (N=100)"

    print("KERNEL_OK")
</pallas_src>

<mosaic_0001>
module attributes {stable_mosaic.version = 11 : i64} {
  func.func @_gaussian_tf_kernel(%arg0: i32, %arg1: memref<2048x4xf32, #tpu.memory_space<vmem>>, %arg2: memref<1x8xf32, #tpu.memory_space<vmem>>, %arg3: memref<1x8xf32, #tpu.memory_space<vmem>>, %arg4: memref<8x4xf32, #tpu.memory_space<vmem>>, %arg5: memref<2048x7xf32, #tpu.memory_space<vmem>>) attributes {dimension_semantics = [#tpu.dimension_semantics<parallel>], iteration_bounds = array<i64: 4>, scalar_prefetch = 0 : i64, scratch_operands = 0 : i64, tpu.core_type = #tpu.core_type<tc>, window_params = [{transform_indices = @transform_0, window_bounds = array<i64: 2048, 4>}, {pipeline_mode = #tpu.pipeline_mode<synchronous>, transform_indices = @transform_1, window_bounds = array<i64: 1, 8>}, {pipeline_mode = #tpu.pipeline_mode<synchronous>, transform_indices = @transform_2, window_bounds = array<i64: 1, 8>}, {pipeline_mode = #tpu.pipeline_mode<synchronous>, transform_indices = @transform_3, window_bounds = array<i64: 8, 4>}, {transform_indices = @transform_4, window_bounds = array<i64: 2048, 7>}]} {
    %c0 = arith.constant 0 : index
    %c0_0 = arith.constant 0 : index
    %0 = vector.load %arg1[%c0, %c0_0] : memref<2048x4xf32, #tpu.memory_space<vmem>>, vector<2048x4xf32>
    %1 = vector.extract_strided_slice %0 {offsets = [0, 3], sizes = [2048, 1], strides = [1, 1]} : vector<2048x4xf32> to vector<2048x1xf32>
    %c0_1 = arith.constant 0 : index
    %c0_2 = arith.constant 0 : index
    %2 = vector.load %arg2[%c0_1, %c0_2] : memref<1x8xf32, #tpu.memory_space<vmem>>, vector<1x8xf32>
    %3 = vector.broadcast %1 : vector<2048x1xf32> to vector<2048x8xf32>
    %4 = vector.broadcast %2 : vector<1x8xf32> to vector<2048x8xf32>
    %5 = arith.subf %3, %4 : vector<2048x8xf32>
    %c0_3 = arith.constant 0 : index
    %c0_4 = arith.constant 0 : index
    %6 = vector.load %arg3[%c0_3, %c0_4] : memref<1x8xf32, #tpu.memory_space<vmem>>, vector<1x8xf32>
    %7 = vector.broadcast %6 : vector<1x8xf32> to vector<2048x8xf32>
    %8 = arith.mulf %5, %7 : vector<2048x8xf32>
    %9 = arith.mulf %8, %8 : vector<2048x8xf32>
    %cst = arith.constant -5.000000e-01 : f32
    %10 = vector.broadcast %cst : f32 to vector<2048x8xf32>
    %11 = arith.mulf %10, %9 : vector<2048x8xf32>
    %12 = math.exp %11 : vector<2048x8xf32>
    %c0_5 = arith.constant 0 : index
    %c0_6 = arith.constant 0 : index
    %13 = vector.load %arg4[%c0_5, %c0_6] : memref<8x4xf32, #tpu.memory_space<vmem>>, vector<8x4xf32>
    %cst_7 = arith.constant dense<0.000000e+00> : vector<2048x4xf32>
    %14 = tpu.matmul %12, %13, %cst_7 {dimension_numbers = #tpu.dot_dimension_numbers<[1], [0], [0], [1], [0, 0, 1, 1], [], []>} : vector<2048x8xf32>, vector<8x4xf32>, vector<2048x4xf32> -> vector<2048x4xf32>
    %cst_8 = arith.constant 0.000000e+00 : f32
    %cst_9 = arith.constant 1.000000e+00 : f32
    %15 = vector.broadcast %cst_8 : f32 to vector<2048x4xf32>
    %16 = arith.maximumf %15, %14 : vector<2048x4xf32>
    %17 = vector.broadcast %cst_9 : f32 to vector<2048x4xf32>
    %18 = arith.minimumf %17, %16 : vector<2048x4xf32>
    %19 = vector.extract_strided_slice %0 {offsets = [0, 0], sizes = [2048, 3], strides = [1, 1]} : vector<2048x4xf32> to vector<2048x3xf32>
    %c0_10 = arith.constant 0 : index
    %c0_11 = arith.constant 0 : index
    %20 = vector.load %arg5[%c0_10, %c0_11] : memref<2048x7xf32, #tpu.memory_space<vmem>>, vector<2048x3xf32>
    tpu.vector_store %arg5[%c0_10, %c0_11], %19 {strides = array<i32>} : memref<2048x7xf32, #tpu.memory_space<vmem>>, vector<2048x3xf32>,
    %c0_12 = arith.constant 0 : index
    %c3 = arith.constant 3 : index
    %21 = vector.load %arg5[%c0_12, %c3] : memref<2048x7xf32, #tpu.memory_space<vmem>>, vector<2048x4xf32>
    tpu.vector_store %arg5[%c0_12, %c3], %18 {strides = array<i32>} : memref<2048x7xf32, #tpu.memory_space<vmem>>, vector<2048x4xf32>,
    return
  }
  func.func @transform_0(%arg0: i32) -> (i32, i32) {
    %c0_i32 = arith.constant 0 : i32
    %c0_i32_0 = arith.constant 0 : i32
    return %arg0, %c0_i32 : i32, i32
  }
  func.func @transform_1(%arg0: i32) -> (i32, i32) {
    %c0_i32 = arith.constant 0 : i32
    %c0_i32_0 = arith.constant 0 : i32
    %c0_i32_1 = arith.constant 0 : i32
    return %c0_i32, %c0_i32_0 : i32, i32
  }
  func.func @transform_2(%arg0: i32) -> (i32, i32) {
    %c0_i32 = arith.constant 0 : i32
    %c0_i32_0 = arith.constant 0 : i32
    %c0_i32_1 = arith.constant 0 : i32
    return %c0_i32, %c0_i32_0 : i32, i32
  }
  func.func @transform_3(%arg0: i32) -> (i32, i32) {
    %c0_i32 = arith.constant 0 : i32
    %c0_i32_0 = arith.constant 0 : i32
    %c0_i32_1 = arith.constant 0 : i32
    return %c0_i32, %c0_i32_0 : i32, i32
  }
  func.func @transform_4(%arg0: i32) -> (i32, i32) {
    %c0_i32 = arith.constant 0 : i32
    %c0_i32_0 = arith.constant 0 : i32
    return %arg0, %c0_i32 : i32, i32
  }
}

</mosaic_0001>

<llo_original>
// kernel: tpu_custom_call.1
$region0: #{tpu_custom_call.1}
  #allocation0 [shape = 'u32[]', space=smem, size = 0x4, offset = 0x4, fixed_abs, tag = 'smem constant byte address 0x4 - core index']
  #allocation1 [shape = 'u32[144,128]{1,0:T(1,128)}', space=vmem, size = 0x12000, scoped, tag = 'internal scratch']
  %s0 = inlined_call_operand.vmem [shape: f32[8192,4], index: 0, kind: input, shape index: {}]
  %s1 = inlined_call_operand.vmem [shape: f32[1,8], index: 1, kind: input, shape index: {}]
  %s2 = inlined_call_operand.vmem [shape: f32[1,8], index: 2, kind: input, shape index: {}]
  %s3 = inlined_call_operand.vmem [shape: f32[8,4], index: 3, kind: input, shape index: {}]
  %s4 = inlined_call_operand.vmem [shape: f32[8192,7], index: 4, kind: output, shape index: {}]
  %s5 = sld [smem:[#allocation0]]
  $region49: #{tpu_custom_call.1} parent=0
    _
  %s7 = ssub.s32 1, %s5
  %s8 = scalar_select 0, %s7, %s5
  loop: start=0, step=1, limit=6
  $region2: #{tpu_custom_call.1} parent=0 // loop_pre_header
    _
  $region3: #{tpu_custom_call.1} parent=0 // loop_header
    %s10 = sphi 0, %s14
    %p11 = scmp.ge.s32.totalorder %s10, 6
    %s20 = sphi 0, %s22
    %s23 = sphi 0, %s20
    %s24 = sphi 0, %s23
    %s40 = sphi 0, %s24
    %s44 = sphi 0, %s44
    %s46 = sphi 0, %s44
    %s47 = sphi 0, %s46
    %s61 = sphi 0, %s47
    %s65 = sphi 0, %s65
    %s67 = sphi 0, %s65
    %s68 = sphi 0, %s67
    %s82 = sphi 0, %s68
    %s86 = sphi 0, %s86
    %s88 = sphi 0, %s86
    %s89 = sphi 0, %s88
    %s103 = sphi 0, %s89
    %s109 = sphi 0, %s111
    %s112 = sphi 0, %s109
    %s113 = sphi 0, %s112
    %s129 = sphi 0, %s113
  $region4: #{tpu_custom_call.1} parent=0 // loop_header_branch
    %13 = sbr.rel (%p11) target = $region8
  $region5: #{tpu_custom_call.1} parent=0 // loop_body
    %s15 = ssub.s32 %s10, 1
    %s16 = ssub.s32 %s10, 2
    %s17 = sadd.s32 %s10, 1
    %s18 = ssub.s32 %s10, %s17
    %p19 = scmp.eq.s32.totalorder %s18, 0
    %s21 = sadd.s32 %s20, 1
    %s22 = scalar_select %p19, %s20, %s21
    %p25 = pneg %p19
    %p26 = scmp.eq.s32.totalorder %s10, 3
    %p27 = por %p25, %p26
    %p28 = scmp.ne.s32.totalorder %s20, %s23
    %p29 = scmp.eq.s32.totalorder %s10, 0
    %p30 = por %p28, %p29
    %p31 = scmp.ne.s32.totalorder %s20, %s23
    %p32 = scmp.eq.s32.totalorder %s15, 3
    %p33 = por %p31, %p32
    %p34 = scmp.ne.s32.totalorder %s23, %s24
    %p35 = scmp.eq.s32.totalorder %s15, 0
    %p36 = por %p34, %p35
    %p37 = scmp.ne.s32.totalorder %s23, %s24
    %p38 = scmp.eq.s32.totalorder %s16, 3
    %p39 = por %p37, %p38
    %p41 = scmp.ne.s32.totalorder %s24, %s40
    %p42 = scmp.eq.s32.totalorder %s16, 0
    %p43 = por %p41, %p42
    %s45 = sadd.s32 %s44, 1
    %p48 = scmp.eq.s32.totalorder %s10, 3
    %p49 = scmp.ne.s32.totalorder %s44, %s46
    %p50 = scmp.eq.s32.totalorder %s10, 0
    %p51 = por %p49, %p50
    %p52 = scmp.ne.s32.totalorder %s44, %s46
    %p53 = scmp.eq.s32.totalorder %s15, 3
    %p54 = por %p52, %p53
    %p55 = scmp.ne.s32.totalorder %s46, %s47
    %p56 = scmp.eq.s32.totalorder %s15, 0
    %p57 = por %p55, %p56
    %p58 = scmp.ne.s32.totalorder %s46, %s47
    %p59 = scmp.eq.s32.totalorder %s16, 3
    %p60 = por %p58, %p59
    %p62 = scmp.ne.s32.totalorder %s47, %s61
    %p63 = scmp.eq.s32.totalorder %s16, 0
    %p64 = por %p62, %p63
    %s66 = sadd.s32 %s65, 1
    %p69 = scmp.eq.s32.totalorder %s10, 3
    %p70 = scmp.ne.s32.totalorder %s65, %s67
    %p71 = scmp.eq.s32.totalorder %s10, 0
    %p72 = por %p70, %p71
    %p73 = scmp.ne.s32.totalorder %s65, %s67
    %p74 = scmp.eq.s32.totalorder %s15, 3
    %p75 = por %p73, %p74
    %p76 = scmp.ne.s32.totalorder %s67, %s68
    %p77 = scmp.eq.s32.totalorder %s15, 0
    %p78 = por %p76, %p77
    %p79 = scmp.ne.s32.totalorder %s67, %s68
    %p80 = scmp.eq.s32.totalorder %s16, 3
    %p81 = por %p79, %p80
    %p83 = scmp.ne.s32.totalorder %s68, %s82
    %p84 = scmp.eq.s32.totalorder %s16, 0
    %p85 = por %p83, %p84
    %s87 = sadd.s32 %s86, 1
    %p90 = scmp.eq.s32.totalorder %s10, 3
    %p91 = scmp.ne.s32.totalorder %s86, %s88
    %p92 = scmp.eq.s32.totalorder %s10, 0
    %p93 = por %p91, %p92
    %p94 = scmp.ne.s32.totalorder %s86, %s88
    %p95 = scmp.eq.s32.totalorder %s15, 3
    %p96 = por %p94, %p95
    %p97 = scmp.ne.s32.totalorder %s88, %s89
    %p98 = scmp.eq.s32.totalorder %s15, 0
    %p99 = por %p97, %p98
    %p100 = scmp.ne.s32.totalorder %s88, %s89
    %p101 = scmp.eq.s32.totalorder %s16, 3
    %p102 = por %p100, %p101
    %p104 = scmp.ne.s32.totalorder %s89, %s103
    %p105 = scmp.eq.s32.totalorder %s16, 0
    %p106 = por %p104, %p105
    %s107 = ssub.s32 %s10, %s17
    %p108 = scmp.eq.s32.totalorder %s107, 0
    %s110 = sadd.s32 %s109, 1
    %s111 = scalar_select %p108, %s109, %s110
    %p114 = pneg %p108
    %p115 = scmp.eq.s32.totalorder %s10, 3
    %p116 = por %p114, %p115
    %p117 = scmp.ne.s32.totalorder %s109, %s112
    %p118 = scmp.eq.s32.totalorder %s10, 0
    %p119 = por %p117, %p118
    %p120 = scmp.ne.s32.totalorder %s109, %s112
    %p121 = scmp.eq.s32.totalorder %s15, 3
    %p122 = por %p120, %p121
    %p123 = scmp.ne.s32.totalorder %s112, %s113
    %p124 = scmp.eq.s32.totalorder %s15, 0
    %p125 = por %p123, %p124
    %p126 = scmp.ne.s32.totalorder %s112, %s113
    %p127 = scmp.eq.s32.totalorder %s16, 3
    %p128 = por %p126, %p127
    %p130 = scmp.ne.s32.totalorder %s113, %s129
    %p131 = scmp.eq.s32.totalorder %s16, 0
    %p132 = por %p130, %p131
    %p133 = scmp.le.s32.totalorder 1, %s10
    %p134 = scmp.lt.s32.totalorder %s10, 5
    %p135 = pnand %p133, %p134
    %p136 = pneg %p135
    // Predicated region
    $region9: #{tpu_custom_call.1} parent=5 // pred_check
      _
    $region10: #{tpu_custom_call.1} parent=5 // pred_check_branch
      %138 = sbr.rel (%p135) target = $region12
    $region11: #{tpu_custom_call.1} parent=5 // pred_region
      %s139 = ssub.s32 %s10, 1
      // Predicated region
      $region13: #{tpu_custom_call.1} parent=11 // pred_check
        %p140 = pneg %p57
      $region14: #{tpu_custom_call.1} parent=11 // pred_check_branch
        %142 = sbr.rel (%p140) target = $region16
      $region15: #{tpu_custom_call.1} parent=11 // pred_region
        _
      $region16: #{tpu_custom_call.1} parent=11 // pred_fallthru
        _
      // Predicated region
      $region17: #{tpu_custom_call.1} parent=11 // pred_check
        %p143 = pneg %p78
      $region18: #{tpu_custom_call.1} parent=11 // pred_check_branch
        %145 = sbr.rel (%p143) target = $region20
      $region19: #{tpu_custom_call.1} parent=11 // pred_region
        _
      $region20: #{tpu_custom_call.1} parent=11 // pred_fallthru
        _
      // Predicated region
      $region21: #{tpu_custom_call.1} parent=11 // pred_check
        %p146 = pneg %p99
      $region22: #{tpu_custom_call.1} parent=11 // pred_check_branch
        %148 = sbr.rel (%p146) target = $region24
      $region23: #{tpu_custom_call.1} parent=11 // pred_region
        _
      $region24: #{tpu_custom_call.1} parent=11 // pred_fallthru
        _
    $region12: #{tpu_custom_call.1} parent=5 // pred_fallthru
      _
    %p149 = scmp.lt.s32.totalorder %s10, 4
    // Predicated region
    $region25: #{tpu_custom_call.1} parent=5 // pred_check
      %p150 = pneg %p149
    $region26: #{tpu_custom_call.1} parent=5 // pred_check_branch
      %152 = sbr.rel (%p150) target = $region28
    $region27: #{tpu_custom_call.1} parent=5 // pred_region
      // Predicated region
      $region29: #{tpu_custom_call.1} parent=27 // pred_check
        %p153 = pneg %p30
      $region30: #{tpu_custom_call.1} parent=27 // pred_check_branch
        %155 = sbr.rel (%p153) target = $region32
      $region31: #{tpu_custom_call.1} parent=27 // pred_region
        %s156 = smul.u32 256, %s10
        %p157 = scmp.lt.s32.totalorder %s156, 1023
        %s158 = scalar_select %p157, %s156, 1023
        %s159 = smul.addr %s158, 8
        %s160 = scalar_lea.vmem %s0, %s159
        %s161 = smul.u32 256, %s10
      $region32: #{tpu_custom_call.1} parent=27 // pred_fallthru
        _
    $region28: #{tpu_custom_call.1} parent=5 // pred_fallthru
      _
    %p162 = scmp.le.s32.totalorder 1, %s10
    %p163 = scmp.lt.s32.totalorder %s10, 5
    %p164 = pnand %p162, %p163
    %p165 = pneg %p164
    // Predicated region
    $region33: #{tpu_custom_call.1} parent=5 // pred_check
      _
    $region34: #{tpu_custom_call.1} parent=5 // pred_check_branch
      %167 = sbr.rel (%p164) target = $region36
    $region35: #{tpu_custom_call.1} parent=5 // pred_region
      %s168 = ssub.s32 %s10, 1
      %s169 = smul.u32 256, %s15
      %p170 = scmp.lt.s32.totalorder %s169, 1023
      %s171 = scalar_select %p170, %s169, 1023
      %s172 = smul.addr %s171, 8
      %s173 = scalar_lea.vmem %s0, %s172
      %p174 = pneg %p36
      %p175 = pneg %p33
      %p176 = pneg %p57
      %p177 = pneg %p54
      %p178 = pneg %p78
      %p179 = pneg %p75
      %p180 = pneg %p99
      %p181 = pneg %p96
      %p182 = pneg %p125
      %p183 = pneg %p122
      %s184 = smul.u32 256, %s15
      %p185 = scmp.lt.s32.totalorder %s184, 1023
      %s186 = scalar_select %p185, %s184, 1023
      %s187 = smul.addr %s186, 8
      %s188 = scalar_lea.vmem %s4, %s187
      %s189 = smul.u32 256, %s15
      %p190 = scmp.lt.s32.totalorder %s189, 1023
      %s191 = scalar_select %p190, %s189, 1023
      %s192 = smul.addr %s191, 8
      %s193 = scalar_lea.vmem %s0, %s192
      %s194 = smul.u32 256, %s15
      %s195 = smul.u32 256, %s15
      %p196 = scmp.lt.s32.totalorder %s195, 1023
      %s197 = scalar_select %p196, %s195, 1023
      %s198 = smul.addr %s197, 8
      %s199 = scalar_lea.vmem %s4, %s198
      %s200 = smul.u32 256, %s15
      %v201 = vld [vmem:[%s193] sm:$0xff]
      %v202 = vld [vmem:[%s193 + $0x8] sm:$0xff]
      %v203 = vld [vmem:[%s193 + $0x10] sm:$0xff]
      %v204 = vld [vmem:[%s193 + $0x18] sm:$0xff]
      %v205 = vld [vmem:[%s193 + $0x20] sm:$0xff]
      %v206 = vld [vmem:[%s193 + $0x28] sm:$0xff]
      %v207 = vld [vmem:[%s193 + $0x30] sm:$0xff]
      %v208 = vld [vmem:[%s193 + $0x38] sm:$0xff]
      %v209 = vld [vmem:[%s193 + $0x40] sm:$0xff]
      %v210 = vld [vmem:[%s193 + $0x48] sm:$0xff]
      %v211 = vld [vmem:[%s193 + $0x50] sm:$0xff]
      %v212 = vld [vmem:[%s193 + $0x58] sm:$0xff]
      %v213 = vld [vmem:[%s193 + $0x60] sm:$0xff]
      %v214 = vld [vmem:[%s193 + $0x68] sm:$0xff]
      %v215 = vld [vmem:[%s193 + $0x70] sm:$0xff]
      %v216 = vld [vmem:[%s193 + $0x78] sm:$0xff]
      %v217 = vld [vmem:[%s193 + $0x80] sm:$0xff]
      %v218 = vld [vmem:[%s193 + $0x88] sm:$0xff]
      %v219 = vld [vmem:[%s193 + $0x90] sm:$0xff]
      %v220 = vld [vmem:[%s193 + $0x98] sm:$0xff]
      %v221 = vld [vmem:[%s193 + $0xa0] sm:$0xff]
      %v222 = vld [vmem:[%s193 + $0xa8] sm:$0xff]
      %v223 = vld [vmem:[%s193 + $0xb0] sm:$0xff]
      %v224 = vld [vmem:[%s193 + $0xb8] sm:$0xff]
      %v225 = vld [vmem:[%s193 + $0xc0] sm:$0xff]
      %v226 = vld [vmem:[%s193 + $0xc8] sm:$0xff]
      %v227 = vld [vmem:[%s193 + $0xd0] sm:$0xff]
      %v228 = vld [vmem:[%s193 + $0xd8] sm:$0xff]
      %v229 = vld [vmem:[%s193 + $0xe0] sm:$0xff]
      %v230 = vld [vmem:[%s193 + $0xe8] sm:$0xff]
      %v231 = vld [vmem:[%s193 + $0xf0] sm:$0xff]
      %v232 = vld [vmem:[%s193 + $0xf8] sm:$0xff]
      %v233 = vld [vmem:[%s193 + $0x100] sm:$0xff]
      %v234 = vld [vmem:[%s193 + $0x108] sm:$0xff]
      %v235 = vld [vmem:[%s193 + $0x110] sm:$0xff]
      %v236 = vld [vmem:[%s193 + $0x118] sm:$0xff]
      %v237 = vld [vmem:[%s193 + $0x120] sm:$0xff]
      %v238 = vld [vmem:[%s193 + $0x128] sm:$0xff]
      %v239 = vld [vmem:[%s193 + $0x130] sm:$0xff]
      %v240 = vld [vmem:[%s193 + $0x138] sm:$0xff]
      %v241 = vld [vmem:[%s193 + $0x140] sm:$0xff]
      %v242 = vld [vmem:[%s193 + $0x148] sm:$0xff]
      %v243 = vld [vmem:[%s193 + $0x150] sm:$0xff]
      %v244 = vld [vmem:[%s193 + $0x158] sm:$0xff]
      %v245 = vld [vmem:[%s193 + $0x160] sm:$0xff]
      %v246 = vld [vmem:[%s193 + $0x168] sm:$0xff]
      %v247 = vld [vmem:[%s193 + $0x170] sm:$0xff]
      %v248 = vld [vmem:[%s193 + $0x178] sm:$0xff]
      %v249 = vld [vmem:[%s193 + $0x180] sm:$0xff]
      %v250 = vld [vmem:[%s193 + $0x188] sm:$0xff]
      %v251 = vld [vmem:[%s193 + $0x190] sm:$0xff]
      %v252 = vld [vmem:[%s193 + $0x198] sm:$0xff]
      %v253 = vld [vmem:[%s193 + $0x1a0] sm:$0xff]
      %v254 = vld [vmem:[%s193 + $0x1a8] sm:$0xff]
      %v255 = vld [vmem:[%s193 + $0x1b0] sm:$0xff]
      %v256 = vld [vmem:[%s193 + $0x1b8] sm:$0xff]
      %v257 = vld [vmem:[%s193 + $0x1c0] sm:$0xff]
      %v258 = vld [vmem:[%s193 + $0x1c8] sm:$0xff]
      %v259 = vld [vmem:[%s193 + $0x1d0] sm:$0xff]
      %v260 = vld [vmem:[%s193 + $0x1d8] sm:$0xff]
      %v261 = vld [vmem:[%s193 + $0x1e0] sm:$0xff]
      %v262 = vld [vmem:[%s193 + $0x1e8] sm:$0xff]
      %v263 = vld [vmem:[%s193 + $0x1f0] sm:$0xff]
      %v264 = vld [vmem:[%s193 + $0x1f8] sm:$0xff]
      %v265 = vld [vmem:[%s193 + $0x200] sm:$0xff]
      %v266 = vld [vmem:[%s193 + $0x208] sm:$0xff]
      %v267 = vld [vmem:[%s193 + $0x210] sm:$0xff]
      %v268 = vld [vmem:[%s193 + $0x218] sm:$0xff]
      %v269 = vld [vmem:[%s193 + $0x220] sm:$0xff]
      %v270 = vld [vmem:[%s193 + $0x228] sm:$0xff]
      %v271 = vld [vmem:[%s193 + $0x230] sm:$0xff]
      %v272 = vld [vmem:[%s193 + $0x238] sm:$0xff]
      %v273 = vld [vmem:[%s193 + $0x240] sm:$0xff]
      %v274 = vld [vmem:[%s193 + $0x248] sm:$0xff]
      %v275 = vld [vmem:[%s193 + $0x250] sm:$0xff]
      %v276 = vld [vmem:[%s193 + $0x258] sm:$0xff]
      %v277 = vld [vmem:[%s193 + $0x260] sm:$0xff]
      %v278 = vld [vmem:[%s193 + $0x268] sm:$0xff]
      %v279 = vld [vmem:[%s193 + $0x270] sm:$0xff]
      %v280 = vld [vmem:[%s193 + $0x278] sm:$0xff]
      %v281 = vld [vmem:[%s193 + $0x280] sm:$0xff]
      %v282 = vld [vmem:[%s193 + $0x288] sm:$0xff]
      %v283 = vld [vmem:[%s193 + $0x290] sm:$0xff]
      %v284 = vld [vmem:[%s193 + $0x298] sm:$0xff]
      %v285 = vld [vmem:[%s193 + $0x2a0] sm:$0xff]
      %v286 = vld [vmem:[%s193 + $0x2a8] sm:$0xff]
      %v287 = vld [vmem:[%s193 + $0x2b0] sm:$0xff]
      %v288 = vld [vmem:[%s193 + $0x2b8] sm:$0xff]
      %v289 = vld [vmem:[%s193 + $0x2c0] sm:$0xff]
      %v290 = vld [vmem:[%s193 + $0x2c8] sm:$0xff]
      %v291 = vld [vmem:[%s193 + $0x2d0] sm:$0xff]
      %v292 = vld [vmem:[%s193 + $0x2d8] sm:$0xff]
      %v293 = vld [vmem:[%s193 + $0x2e0] sm:$0xff]
      %v294 = vld [vmem:[%s193 + $0x2e8] sm:$0xff]
      %v295 = vld [vmem:[%s193 + $0x2f0] sm:$0xff]
      %v296 = vld [vmem:[%s193 + $0x2f8] sm:$0xff]
      %v297 = vld [vmem:[%s193 + $0x300] sm:$0xff]
      %v298 = vld [vmem:[%s193 + $0x308] sm:$0xff]
      %v299 = vld [vmem:[%s193 + $0x310] sm:$0xff]
      %v300 = vld [vmem:[%s193 + $0x318] sm:$0xff]
      %v301 = vld [vmem:[%s193 + $0x320] sm:$0xff]
      %v302 = vld [vmem:[%s193 + $0x328] sm:$0xff]
      %v303 = vld [vmem:[%s193 + $0x330] sm:$0xff]
      %v304 = vld [vmem:[%s193 + $0x338] sm:$0xff]
      %v305 = vld [vmem:[%s193 + $0x340] sm:$0xff]
      %v306 = vld [vmem:[%s193 + $0x348] sm:$0xff]
      %v307 = vld [vmem:[%s193 + $0x350] sm:$0xff]
      %v308 = vld [vmem:[%s193 + $0x358] sm:$0xff]
      %v309 = vld [vmem:[%s193 + $0x360] sm:$0xff]
      %v310 = vld [vmem:[%s193 + $0x368] sm:$0xff]
      %v311 = vld [vmem:[%s193 + $0x370] sm:$0xff]
      %v312 = vld [vmem:[%s193 + $0x378] sm:$0xff]
      %v313 = vld [vmem:[%s193 + $0x380] sm:$0xff]
      %v314 = vld [vmem:[%s193 + $0x388] sm:$0xff]
      %v315 = vld [vmem:[%s193 + $0x390] sm:$0xff]
      %v316 = vld [vmem:[%s193 + $0x398] sm:$0xff]
      %v317 = vld [vmem:[%s193 + $0x3a0] sm:$0xff]
      %v318 = vld [vmem:[%s193 + $0x3a8] sm:$0xff]
      %v319 = vld [vmem:[%s193 + $0x3b0] sm:$0xff]
      %v320 = vld [vmem:[%s193 + $0x3b8] sm:$0xff]
      %v321 = vld [vmem:[%s193 + $0x3c0] sm:$0xff]
      %v322 = vld [vmem:[%s193 + $0x3c8] sm:$0xff]
      %v323 = vld [vmem:[%s193 + $0x3d0] sm:$0xff]
      %v324 = vld [vmem:[%s193 + $0x3d8] sm:$0xff]
      %v325 = vld [vmem:[%s193 + $0x3e0] sm:$0xff]
      %v326 = vld [vmem:[%s193 + $0x3e8] sm:$0xff]
      %v327 = vld [vmem:[%s193 + $0x3f0] sm:$0xff]
      %v328 = vld [vmem:[%s193 + $0x3f8] sm:$0xff]
      %v329 = vld [vmem:[%s193 + $0x400] sm:$0xff]
      %v330 = vld [vmem:[%s193 + $0x408] sm:$0xff]
      %v331 = vld [vmem:[%s193 + $0x410] sm:$0xff]
      %v332 = vld [vmem:[%s193 + $0x418] sm:$0xff]
      %v333 = vld [vmem:[%s193 + $0x420] sm:$0xff]
      %v334 = vld [vmem:[%s193 + $0x428] sm:$0xff]
      %v335 = vld [vmem:[%s193 + $0x430] sm:$0xff]
      %v336 = vld [vmem:[%s193 + $0x438] sm:$0xff]
      %v337 = vld [vmem:[%s193 + $0x440] sm:$0xff]
      %v338 = vld [vmem:[%s193 + $0x448] sm:$0xff]
      %v339 = vld [vmem:[%s193 + $0x450] sm:$0xff]
      %v340 = vld [vmem:[%s193 + $0x458] sm:$0xff]
      %v341 = vld [vmem:[%s193 + $0x460] sm:$0xff]
      %v342 = vld [vmem:[%s193 + $0x468] sm:$0xff]
      %v343 = vld [vmem:[%s193 + $0x470] sm:$0xff]
      %v344 = vld [vmem:[%s193 + $0x478] sm:$0xff]
      %v345 = vld [vmem:[%s193 + $0x480] sm:$0xff]
      %v346 = vld [vmem:[%s193 + $0x488] sm:$0xff]
      %v347 = vld [vmem:[%s193 + $0x490] sm:$0xff]
      %v348 = vld [vmem:[%s193 + $0x498] sm:$0xff]
      %v349 = vld [vmem:[%s193 + $0x4a0] sm:$0xff]
      %v350 = vld [vmem:[%s193 + $0x4a8] sm:$0xff]
      %v351 = vld [vmem:[%s193 + $0x4b0] sm:$0xff]
      %v352 = vld [vmem:[%s193 + $0x4b8] sm:$0xff]
      %v353 = vld [vmem:[%s193 + $0x4c0] sm:$0xff]
      %v354 = vld [vmem:[%s193 + $0x4c8] sm:$0xff]
      %v355 = vld [vmem:[%s193 + $0x4d0] sm:$0xff]
      %v356 = vld [vmem:[%s193 + $0x4d8] sm:$0xff]
      %v357 = vld [vmem:[%s193 + $0x4e0] sm:$0xff]
      %v358 = vld [vmem:[%s193 + $0x4e8] sm:$0xff]
      %v359 = vld [vmem:[%s193 + $0x4f0] sm:$0xff]
      %v360 = vld [vmem:[%s193 + $0x4f8] sm:$0xff]
      %v361 = vld [vmem:[%s193 + $0x500] sm:$0xff]
      %v362 = vld [vmem:[%s193 + $0x508] sm:$0xff]
      %v363 = vld [vmem:[%s193 + $0x510] sm:$0xff]
      %v364 = vld [vmem:[%s193 + $0x518] sm:$0xff]
      %v365 = vld [vmem:[%s193 + $0x520] sm:$0xff]
      %v366 = vld [vmem:[%s193 + $0x528] sm:$0xff]
      %v367 = vld [vmem:[%s193 + $0x530] sm:$0xff]
      %v368 = vld [vmem:[%s193 + $0x538] sm:$0xff]
      %v369 = vld [vmem:[%s193 + $0x540] sm:$0xff]
      %v370 = vld [vmem:[%s193 + $0x548] sm:$0xff]
      %v371 = vld [vmem:[%s193 + $0x550] sm:$0xff]
      %v372 = vld [vmem:[%s193 + $0x558] sm:$0xff]
      %v373 = vld [vmem:[%s193 + $0x560] sm:$0xff]
      %v374 = vld [vmem:[%s193 + $0x568] sm:$0xff]
      %v375 = vld [vmem:[%s193 + $0x570] sm:$0xff]
      %v376 = vld [vmem:[%s193 + $0x578] sm:$0xff]
      %v377 = vld [vmem:[%s193 + $0x580] sm:$0xff]
      %v378 = vld [vmem:[%s193 + $0x588] sm:$0xff]
      %v379 = vld [vmem:[%s193 + $0x590] sm:$0xff]
      %v380 = vld [vmem:[%s193 + $0x598] sm:$0xff]
      %v381 = vld [vmem:[%s193 + $0x5a0] sm:$0xff]
      %v382 = vld [vmem:[%s193 + $0x5a8] sm:$0xff]
      %v383 = vld [vmem:[%s193 + $0x5b0] sm:$0xff]
      %v384 = vld [vmem:[%s193 + $0x5b8] sm:$0xff]
      %v385 = vld [vmem:[%s193 + $0x5c0] sm:$0xff]
      %v386 = vld [vmem:[%s193 + $0x5c8] sm:$0xff]
      %v387 = vld [vmem:[%s193 + $0x5d0] sm:$0xff]
      %v388 = vld [vmem:[%s193 + $0x5d8] sm:$0xff]
      %v389 = vld [vmem:[%s193 + $0x5e0] sm:$0xff]
      %v390 = vld [vmem:[%s193 + $0x5e8] sm:$0xff]
      %v391 = vld [vmem:[%s193 + $0x5f0] sm:$0xff]
      %v392 = vld [vmem:[%s193 + $0x5f8] sm:$0xff]
      %v393 = vld [vmem:[%s193 + $0x600] sm:$0xff]
      %v394 = vld [vmem:[%s193 + $0x608] sm:$0xff]
      %v395 = vld [vmem:[%s193 + $0x610] sm:$0xff]
      %v396 = vld [vmem:[%s193 + $0x618] sm:$0xff]
      %v397 = vld [vmem:[%s193 + $0x620] sm:$0xff]
      %v398 = vld [vmem:[%s193 + $0x628] sm:$0xff]
      %v399 = vld [vmem:[%s193 + $0x630] sm:$0xff]
      %v400 = vld [vmem:[%s193 + $0x638] sm:$0xff]
      %v401 = vld [vmem:[%s193 + $0x640] sm:$0xff]
      %v402 = vld [vmem:[%s193 + $0x648] sm:$0xff]
      %v403 = vld [vmem:[%s193 + $0x650] sm:$0xff]
      %v404 = vld [vmem:[%s193 + $0x658] sm:$0xff]
      %v405 = vld [vmem:[%s193 + $0x660] sm:$0xff]
      %v406 = vld [vmem:[%s193 + $0x668] sm:$0xff]
      %v407 = vld [vmem:[%s193 + $0x670] sm:$0xff]
      %v408 = vld [vmem:[%s193 + $0x678] sm:$0xff]
      %v409 = vld [vmem:[%s193 + $0x680] sm:$0xff]
      %v410 = vld [vmem:[%s193 + $0x688] sm:$0xff]
      %v411 = vld [vmem:[%s193 + $0x690] sm:$0xff]
      %v412 = vld [vmem:[%s193 + $0x698] sm:$0xff]
      %v413 = vld [vmem:[%s193 + $0x6a0] sm:$0xff]
      %v414 = vld [vmem:[%s193 + $0x6a8] sm:$0xff]
      %v415 = vld [vmem:[%s193 + $0x6b0] sm:$0xff]
      %v416 = vld [vmem:[%s193 + $0x6b8] sm:$0xff]
      %v417 = vld [vmem:[%s193 + $0x6c0] sm:$0xff]
      %v418 = vld [vmem:[%s193 + $0x6c8] sm:$0xff]
      %v419 = vld [vmem:[%s193 + $0x6d0] sm:$0xff]
      %v420 = vld [vmem:[%s193 + $0x6d8] sm:$0xff]
      %v421 = vld [vmem:[%s193 + $0x6e0] sm:$0xff]
      %v422 = vld [vmem:[%s193 + $0x6e8] sm:$0xff]
      %v423 = vld [vmem:[%s193 + $0x6f0] sm:$0xff]
      %v424 = vld [vmem:[%s193 + $0x6f8] sm:$0xff]
      %v425 = vld [vmem:[%s193 + $0x700] sm:$0xff]
      %v426 = vld [vmem:[%s193 + $0x708] sm:$0xff]
      %v427 = vld [vmem:[%s193 + $0x710] sm:$0xff]
      %v428 = vld [vmem:[%s193 + $0x718] sm:$0xff]
      %v429 = vld [vmem:[%s193 + $0x720] sm:$0xff]
      %v430 = vld [vmem:[%s193 + $0x728] sm:$0xff]
      %v431 = vld [vmem:[%s193 + $0x730] sm:$0xff]
      %v432 = vld [vmem:[%s193 + $0x738] sm:$0xff]
      %v433 = vld [vmem:[%s193 + $0x740] sm:$0xff]
      %v434 = vld [vmem:[%s193 + $0x748] sm:$0xff]
      %v435 = vld [vmem:[%s193 + $0x750] sm:$0xff]
      %v436 = vld [vmem:[%s193 + $0x758] sm:$0xff]
      %v437 = vld [vmem:[%s193 + $0x760] sm:$0xff]
      %v438 = vld [vmem:[%s193 + $0x768] sm:$0xff]
      %v439 = vld [vmem:[%s193 + $0x770] sm:$0xff]
      %v440 = vld [vmem:[%s193 + $0x778] sm:$0xff]
      %v441 = vld [vmem:[%s193 + $0x780] sm:$0xff]
      %v442 = vld [vmem:[%s193 + $0x788] sm:$0xff]
      %v443 = vld [vmem:[%s193 + $0x790] sm:$0xff]
      %v444 = vld [vmem:[%s193 + $0x798] sm:$0xff]
      %v445 = vld [vmem:[%s193 + $0x7a0] sm:$0xff]
      %v446 = vld [vmem:[%s193 + $0x7a8] sm:$0xff]
      %v447 = vld [vmem:[%s193 + $0x7b0] sm:$0xff]
      %v448 = vld [vmem:[%s193 + $0x7b8] sm:$0xff]
      %v449 = vld [vmem:[%s193 + $0x7c0] sm:$0xff]
      %v450 = vld [vmem:[%s193 + $0x7c8] sm:$0xff]
      %v451 = vld [vmem:[%s193 + $0x7d0] sm:$0xff]
      %v452 = vld [vmem:[%s193 + $0x7d8] sm:$0xff]
      %v453 = vld [vmem:[%s193 + $0x7e0] sm:$0xff]
      %v454 = vld [vmem:[%s193 + $0x7e8] sm:$0xff]
      %v455 = vld [vmem:[%s193 + $0x7f0] sm:$0xff]
      %v456 = vld [vmem:[%s193 + $0x7f8] sm:$0xff]
      %v457 = vld [vmem:[%s1] sm:$0x1]
      %459 = vset.pattern.permute.xlu0 3
      %460 = vperm.xlu0 %459, %v201
      %v461 = vpop.permute.xlu0 %460
      %464 = vset.pattern.permute.xlu0 3
      %465 = vperm.xlu0 %464, %v202
      %v466 = vpop.permute.xlu0 %465
      %469 = vset.pattern.permute.xlu0 3
      %470 = vperm.xlu0 %469, %v203
      %v471 = vpop.permute.xlu0 %470
      %474 = vset.pattern.permute.xlu0 3
      %475 = vperm.xlu0 %474, %v204
      %v476 = vpop.permute.xlu0 %475
      %479 = vset.pattern.permute.xlu0 3
      %480 = vperm.xlu0 %479, %v205
      %v481 = vpop.permute.xlu0 %480
      %484 = vset.pattern.permute.xlu0 3
      %485 = vperm.xlu0 %484, %v206
      %v486 = vpop.permute.xlu0 %485
      %489 = vset.pattern.permute.xlu0 3
      %490 = vperm.xlu0 %489, %v207
      %v491 = vpop.permute.xlu0 %490
      %494 = vset.pattern.permute.xlu0 3
      %495 = vperm.xlu0 %494, %v208
      %v496 = vpop.permute.xlu0 %495
      %499 = vset.pattern.permute.xlu0 3
      %500 = vperm.xlu0 %499, %v209
      %v501 = vpop.permute.xlu0 %500
      %504 = vset.pattern.permute.xlu0 3
      %505 = vperm.xlu0 %504, %v210
      %v506 = vpop.permute.xlu0 %505
      %509 = vset.pattern.permute.xlu0 3
      %510 = vperm.xlu0 %509, %v211
      %v511 = vpop.permute.xlu0 %510
      %514 = vset.pattern.permute.xlu0 3
      %515 = vperm.xlu0 %514, %v212
      %v516 = vpop.permute.xlu0 %515
      %519 = vset.pattern.permute.xlu0 3
      %520 = vperm.xlu0 %519, %v213
      %v521 = vpop.permute.xlu0 %520
      %524 = vset.pattern.permute.xlu0 3
      %525 = vperm.xlu0 %524, %v214
      %v526 = vpop.permute.xlu0 %525
      %529 = vset.pattern.permute.xlu0 3
      %530 = vperm.xlu0 %529, %v215
      %v531 = vpop.permute.xlu0 %530
      %534 = vset.pattern.permute.xlu0 3
      %535 = vperm.xlu0 %534, %v216
      %v536 = vpop.permute.xlu0 %535
      %539 = vset.pattern.permute.xlu0 3
      %540 = vperm.xlu0 %539, %v217
      %v541 = vpop.permute.xlu0 %540
      %544 = vset.pattern.permute.xlu0 3
      %545 = vperm.xlu0 %544, %v218
      %v546 = vpop.permute.xlu0 %545
      %549 = vset.pattern.permute.xlu0 3
      %550 = vperm.xlu0 %549, %v219
      %v551 = vpop.permute.xlu0 %550
      %554 = vset.pattern.permute.xlu0 3
      %555 = vperm.xlu0 %554, %v220
      %v556 = vpop.permute.xlu0 %555
      %559 = vset.pattern.permute.xlu0 3
      %560 = vperm.xlu0 %559, %v221
      %v561 = vpop.permute.xlu0 %560
      %564 = vset.pattern.permute.xlu0 3
      %565 = vperm.xlu0 %564, %v222
      %v566 = vpop.permute.xlu0 %565
      %569 = vset.pattern.permute.xlu0 3
      %570 = vperm.xlu0 %569, %v223
      %v571 = vpop.permute.xlu0 %570
      %574 = vset.pattern.permute.xlu0 3
      %575 = vperm.xlu0 %574, %v224
      %v576 = vpop.permute.xlu0 %575
      %579 = vset.pattern.permute.xlu0 3
      %580 = vperm.xlu0 %579, %v225
      %v581 = vpop.permute.xlu0 %580
      %584 = vset.pattern.permute.xlu0 3
      %585 = vperm.xlu0 %584, %v226
      %v586 = vpop.permute.xlu0 %585
      %589 = vset.pattern.permute.xlu0 3
      %590 = vperm.xlu0 %589, %v227
      %v591 = vpop.permute.xlu0 %590
      %594 = vset.pattern.permute.xlu0 3
      %595 = vperm.xlu0 %594, %v228
      %v596 = vpop.permute.xlu0 %595
      %599 = vset.pattern.permute.xlu0 3
      %600 = vperm.xlu0 %599, %v229
      %v601 = vpop.permute.xlu0 %600
      %604 = vset.pattern.permute.xlu0 3
      %605 = vperm.xlu0 %604, %v230
      %v606 = vpop.permute.xlu0 %605
      %609 = vset.pattern.permute.xlu0 3
      %610 = vperm.xlu0 %609, %v231
      %v611 = vpop.permute.xlu0 %610
      %614 = vset.pattern.permute.xlu0 3
      %615 = vperm.xlu0 %614, %v232
      %v616 = vpop.permute.xlu0 %615
      %619 = vset.pattern.permute.xlu0 3
      %620 = vperm.xlu0 %619, %v233
      %v621 = vpop.permute.xlu0 %620
      %624 = vset.pattern.permute.xlu0 3
      %625 = vperm.xlu0 %624, %v234
      %v626 = vpop.permute.xlu0 %625
      %629 = vset.pattern.permute.xlu0 3
      %630 = vperm.xlu0 %629, %v235
      %v631 = vpop.permute.xlu0 %630
      %634 = vset.pattern.permute.xlu0 3
      %635 = vperm.xlu0 %634, %v236
      %v636 = vpop.permute.xlu0 %635
      %639 = vset.pattern.permute.xlu0 3
      %640 = vperm.xlu0 %639, %v237
      %v641 = vpop.permute.xlu0 %640
      %644 = vset.pattern.permute.xlu0 3
      %645 = vperm.xlu0 %644, %v238
      %v646 = vpop.permute.xlu0 %645
      %649 = vset.pattern.permute.xlu0 3
      %650 = vperm.xlu0 %649, %v239
      %v651 = vpop.permute.xlu0 %650
      %654 = vset.pattern.permute.xlu0 3
      %655 = vperm.xlu0 %654, %v240
      %v656 = vpop.permute.xlu0 %655
      %659 = vset.pattern.permute.xlu0 3
      %660 = vperm.xlu0 %659, %v241
      %v661 = vpop.permute.xlu0 %660
      %664 = vset.pattern.permute.xlu0 3
      %665 = vperm.xlu0 %664, %v242
      %v666 = vpop.permute.xlu0 %665
      %669 = vset.pattern.permute.xlu0 3
      %670 = vperm.xlu0 %669, %v243
      %v671 = vpop.permute.xlu0 %670
      %674 = vset.pattern.permute.xlu0 3
      %675 = vperm.xlu0 %674, %v244
      %v676 = vpop.permute.xlu0 %675
      %679 = vset.pattern.permute.xlu0 3
      %680 = vperm.xlu0 %679, %v245
      %v681 = vpop.permute.xlu0 %680
      %684 = vset.pattern.permute.xlu0 3
      %685 = vperm.xlu0 %684, %v246
      %v686 = vpop.permute.xlu0 %685
      %689 = vset.pattern.permute.xlu0 3
      %690 = vperm.xlu0 %689, %v247
      %v691 = vpop.permute.xlu0 %690
      %694 = vset.pattern.permute.xlu0 3
      %695 = vperm.xlu0 %694, %v248
      %v696 = vpop.permute.xlu0 %695
      %699 = vset.pattern.permute.xlu0 3
      %700 = vperm.xlu0 %699, %v249
      %v701 = vpop.permute.xlu0 %700
      %704 = vset.pattern.permute.xlu0 3
      %705 = vperm.xlu0 %704, %v250
      %v706 = vpop.permute.xlu0 %705
      %709 = vset.pattern.permute.xlu0 3
      %710 = vperm.xlu0 %709, %v251
      %v711 = vpop.permute.xlu0 %710
      %714 = vset.pattern.permute.xlu0 3
      %715 = vperm.xlu0 %714, %v252
      %v716 = vpop.permute.xlu0 %715
      %719 = vset.pattern.permute.xlu0 3
      %720 = vperm.xlu0 %719, %v253
      %v721 = vpop.permute.xlu0 %720
      %724 = vset.pattern.permute.xlu0 3
      %725 = vperm.xlu0 %724, %v254
      %v726 = vpop.permute.xlu0 %725
      %729 = vset.pattern.permute.xlu0 3
      %730 = vperm.xlu0 %729, %v255
      %v731 = vpop.permute.xlu0 %730
      %734 = vset.pattern.permute.xlu0 3
      %735 = vperm.xlu0 %734, %v256
      %v736 = vpop.permute.xlu0 %735
      %739 = vset.pattern.permute.xlu0 3
      %740 = vperm.xlu0 %739, %v257
      %v741 = vpop.permute.xlu0 %740
      %744 = vset.pattern.permute.xlu0 3
      %745 = vperm.xlu0 %744, %v258
      %v746 = vpop.permute.xlu0 %745
      %749 = vset.pattern.permute.xlu0 3
      %750 = vperm.xlu0 %749, %v259
      %v751 = vpop.permute.xlu0 %750
      %754 = vset.pattern.permute.xlu0 3
      %755 = vperm.xlu0 %754, %v260
      %v756 = vpop.permute.xlu0 %755
      %759 = vset.pattern.permute.xlu0 3
      %760 = vperm.xlu0 %759, %v261
      %v761 = vpop.permute.xlu0 %760
      %764 = vset.pattern.permute.xlu0 3
      %765 = vperm.xlu0 %764, %v262
      %v766 = vpop.permute.xlu0 %765
      %769 = vset.pattern.permute.xlu0 3
      %770 = vperm.xlu0 %769, %v263
      %v771 = vpop.permute.xlu0 %770
      %774 = vset.pattern.permute.xlu0 3
      %775 = vperm.xlu0 %774, %v264
      %v776 = vpop.permute.xlu0 %775
      %779 = vset.pattern.permute.xlu0 3
      %780 = vperm.xlu0 %779, %v265
      %v781 = vpop.permute.xlu0 %780
      %784 = vset.pattern.permute.xlu0 3
      %785 = vperm.xlu0 %784, %v266
      %v786 = vpop.permute.xlu0 %785
      %789 = vset.pattern.permute.xlu0 3
      %790 = vperm.xlu0 %789, %v267
      %v791 = vpop.permute.xlu0 %790
      %794 = vset.pattern.permute.xlu0 3
      %795 = vperm.xlu0 %794, %v268
      %v796 = vpop.permute.xlu0 %795
      %799 = vset.pattern.permute.xlu0 3
      %800 = vperm.xlu0 %799, %v269
      %v801 = vpop.permute.xlu0 %800
      %804 = vset.pattern.permute.xlu0 3
      %805 = vperm.xlu0 %804, %v270
      %v806 = vpop.permute.xlu0 %805
      %809 = vset.pattern.permute.xlu0 3
      %810 = vperm.xlu0 %809, %v271
      %v811 = vpop.permute.xlu0 %810
      %814 = vset.pattern.permute.xlu0 3
      %815 = vperm.xlu0 %814, %v272
      %v816 = vpop.permute.xlu0 %815
      %819 = vset.pattern.permute.xlu0 3
      %820 = vperm.xlu0 %819, %v273
      %v821 = vpop.permute.xlu0 %820
      %824 = vset.pattern.permute.xlu0 3
      %825 = vperm.xlu0 %824, %v274
      %v826 = vpop.permute.xlu0 %825
      %829 = vset.pattern.permute.xlu0 3
      %830 = vperm.xlu0 %829, %v275
      %v831 = vpop.permute.xlu0 %830
      %834 = vset.pattern.permute.xlu0 3
      %835 = vperm.xlu0 %834, %v276
      %v836 = vpop.permute.xlu0 %835
      %839 = vset.pattern.permute.xlu0 3
      %840 = vperm.xlu0 %839, %v277
      %v841 = vpop.permute.xlu0 %840
      %844 = vset.pattern.permute.xlu0 3
      %845 = vperm.xlu0 %844, %v278
      %v846 = vpop.permute.xlu0 %845
      %849 = vset.pattern.permute.xlu0 3
      %850 = vperm.xlu0 %849, %v279
      %v851 = vpop.permute.xlu0 %850
      %854 = vset.pattern.permute.xlu0 3
      %855 = vperm.xlu0 %854, %v280
      %v856 = vpop.permute.xlu0 %855
      %859 = vset.pattern.permute.xlu0 3
      %860 = vperm.xlu0 %859, %v281
      %v861 = vpop.permute.xlu0 %860
      %864 = vset.pattern.permute.xlu0 3
      %865 = vperm.xlu0 %864, %v282
      %v866 = vpop.permute.xlu0 %865
      %869 = vset.pattern.permute.xlu0 3
      %870 = vperm.xlu0 %869, %v283
      %v871 = vpop.permute.xlu0 %870
      %874 = vset.pattern.permute.xlu0 3
      %875 = vperm.xlu0 %874, %v284
      %v876 = vpop.permute.xlu0 %875
      %879 = vset.pattern.permute.xlu0 3
      %880 = vperm.xlu0 %879, %v285
      %v881 = vpop.permute.xlu0 %880
      %884 = vset.pattern.permute.xlu0 3
      %885 = vperm.xlu0 %884, %v286
      %v886 = vpop.permute.xlu0 %885
      %889 = vset.pattern.permute.xlu0 3
      %890 = vperm.xlu0 %889, %v287
      %v891 = vpop.permute.xlu0 %890
      %894 = vset.pattern.permute.xlu0 3
      %895 = vperm.xlu0 %894, %v288
      %v896 = vpop.permute.xlu0 %895
      %899 = vset.pattern.permute.xlu0 3
      %900 = vperm.xlu0 %899, %v289
      %v901 = vpop.permute.xlu0 %900
      %904 = vset.pattern.permute.xlu0 3
      %905 = vperm.xlu0 %904, %v290
      %v906 = vpop.permute.xlu0 %905
      %909 = vset.pattern.permute.xlu0 3
      %910 = vperm.xlu0 %909, %v291
      %v911 = vpop.permute.xlu0 %910
      %914 = vset.pattern.permute.xlu0 3
      %915 = vperm.xlu0 %914, %v292
      %v916 = vpop.permute.xlu0 %915
      %919 = vset.pattern.permute.xlu0 3
      %920 = vperm.xlu0 %919, %v293
      %v921 = vpop.permute.xlu0 %920
      %924 = vset.pattern.permute.xlu0 3
      %925 = vperm.xlu0 %924, %v294
      %v926 = vpop.permute.xlu0 %925
      %929 = vset.pattern.permute.xlu0 3
      %930 = vperm.xlu0 %929, %v295
      %v931 = vpop.permute.xlu0 %930
      %934 = vset.pattern.permute.xlu0 3
      %935 = vperm.xlu0 %934, %v296
      %v936 = vpop.permute.xlu0 %935
      %939 = vset.pattern.permute.xlu0 3
      %940 = vperm.xlu0 %939, %v297
      %v941 = vpop.permute.xlu0 %940
      %944 = vset.pattern.permute.xlu0 3
      %945 = vperm.xlu0 %944, %v298
      %v946 = vpop.permute.xlu0 %945
      %949 = vset.pattern.permute.xlu0 3
      %950 = vperm.xlu0 %949, %v299
      %v951 = vpop.permute.xlu0 %950
      %954 = vset.pattern.permute.xlu0 3
      %955 = vperm.xlu0 %954, %v300
      %v956 = vpop.permute.xlu0 %955
      %959 = vset.pattern.permute.xlu0 3
      %960 = vperm.xlu0 %959, %v301
      %v961 = vpop.permute.xlu0 %960
      %964 = vset.pattern.permute.xlu0 3
      %965 = vperm.xlu0 %964, %v302
      %v966 = vpop.permute.xlu0 %965
      %969 = vset.pattern.permute.xlu0 3
      %970 = vperm.xlu0 %969, %v303
      %v971 = vpop.permute.xlu0 %970
      %974 = vset.pattern.permute.xlu0 3
      %975 = vperm.xlu0 %974, %v304
      %v976 = vpop.permute.xlu0 %975
      %979 = vset.pattern.permute.xlu0 3
      %980 = vperm.xlu0 %979, %v305
      %v981 = vpop.permute.xlu0 %980
      %984 = vset.pattern.permute.xlu0 3
      %985 = vperm.xlu0 %984, %v306
      %v986 = vpop.permute.xlu0 %985
      %989 = vset.pattern.permute.xlu0 3
      %990 = vperm.xlu0 %989, %v307
      %v991 = vpop.permute.xlu0 %990
      %994 = vset.pattern.permute.xlu0 3
      %995 = vperm.xlu0 %994, %v308
      %v996 = vpop.permute.xlu0 %995
      %999 = vset.pattern.permute.xlu0 3
      %1000 = vperm.xlu0 %999, %v309
      %v1001 = vpop.permute.xlu0 %1000
      %1004 = vset.pattern.permute.xlu0 3
      %1005 = vperm.xlu0 %1004, %v310
      %v1006 = vpop.permute.xlu0 %1005
      %1009 = vset.pattern.permute.xlu0 3
      %1010 = vperm.xlu0 %1009, %v311
      %v1011 = vpop.permute.xlu0 %1010
      %1014 = vset.pattern.permute.xlu0 3
      %1015 = vperm.xlu0 %1014, %v312
      %v1016 = vpop.permute.xlu0 %1015
      %1019 = vset.pattern.permute.xlu0 3
      %1020 = vperm.xlu0 %1019, %v313
      %v1021 = vpop.permute.xlu0 %1020
      %1024 = vset.pattern.permute.xlu0 3
      %1025 = vperm.xlu0 %1024, %v314
      %v1026 = vpop.permute.xlu0 %1025
      %1029 = vset.pattern.permute.xlu0 3
      %1030 = vperm.xlu0 %1029, %v315
      %v1031 = vpop.permute.xlu0 %1030
      %1034 = vset.pattern.permute.xlu0 3
      %1035 = vperm.xlu0 %1034, %v316
      %v1036 = vpop.permute.xlu0 %1035
      %1039 = vset.pattern.permute.xlu0 3
      %1040 = vperm.xlu0 %1039, %v317
      %v1041 = vpop.permute.xlu0 %1040
      %1044 = vset.pattern.permute.xlu0 3
      %1045 = vperm.xlu0 %1044, %v318
      %v1046 = vpop.permute.xlu0 %1045
      %1049 = vset.pattern.permute.xlu0 3
      %1050 = vperm.xlu0 %1049, %v319
      %v1051 = vpop.permute.xlu0 %1050
      %1054 = vset.pattern.permute.xlu0 3
      %1055 = vperm.xlu0 %1054, %v320
      %v1056 = vpop.permute.xlu0 %1055
      %1059 = vset.pattern.permute.xlu0 3
      %1060 = vperm.xlu0 %1059, %v321
      %v1061 = vpop.permute.xlu0 %1060
      %1064 = vset.pattern.permute.xlu0 3
      %1065 = vperm.xlu0 %1064, %v322
      %v1066 = vpop.permute.xlu0 %1065
      %1069 = vset.pattern.permute.xlu0 3
      %1070 = vperm.xlu0 %1069, %v323
      %v1071 = vpop.permute.xlu0 %1070
      %1074 = vset.pattern.permute.xlu0 3
      %1075 = vperm.xlu0 %1074, %v324
      %v1076 = vpop.permute.xlu0 %1075
      %1079 = vset.pattern.permute.xlu0 3
      %1080 = vperm.xlu0 %1079, %v325
      %v1081 = vpop.permute.xlu0 %1080
      %1084 = vset.pattern.permute.xlu0 3
      %1085 = vperm.xlu0 %1084, %v326
      %v1086 = vpop.permute.xlu0 %1085
      %1089 = vset.pattern.permute.xlu0 3
      %1090 = vperm.xlu0 %1089, %v327
      %v1091 = vpop.permute.xlu0 %1090
      %1094 = vset.pattern.permute.xlu0 3
      %1095 = vperm.xlu0 %1094, %v328
      %v1096 = vpop.permute.xlu0 %1095
      %1099 = vset.pattern.permute.xlu0 3
      %1100 = vperm.xlu0 %1099, %v329
      %v1101 = vpop.permute.xlu0 %1100
      %1104 = vset.pattern.permute.xlu0 3
      %1105 = vperm.xlu0 %1104, %v330
      %v1106 = vpop.permute.xlu0 %1105
      %1109 = vset.pattern.permute.xlu0 3
      %1110 = vperm.xlu0 %1109, %v331
      %v1111 = vpop.permute.xlu0 %1110
      %1114 = vset.pattern.permute.xlu0 3
      %1115 = vperm.xlu0 %1114, %v332
      %v1116 = vpop.permute.xlu0 %1115
      %1119 = vset.pattern.permute.xlu0 3
      %1120 = vperm.xlu0 %1119, %v333
      %v1121 = vpop.permute.xlu0 %1120
      %1124 = vset.pattern.permute.xlu0 3
      %1125 = vperm.xlu0 %1124, %v334
      %v1126 = vpop.permute.xlu0 %1125
      %1129 = vset.pattern.permute.xlu0 3
      %1130 = vperm.xlu0 %1129, %v335
      %v1131 = vpop.permute.xlu0 %1130
      %1134 = vset.pattern.permute.xlu0 3
      %1135 = vperm.xlu0 %1134, %v336
      %v1136 = vpop.permute.xlu0 %1135
      %1139 = vset.pattern.permute.xlu0 3
      %1140 = vperm.xlu0 %1139, %v337
      %v1141 = vpop.permute.xlu0 %1140
      %1144 = vset.pattern.permute.xlu0 3
      %1145 = vperm.xlu0 %1144, %v338
      %v1146 = vpop.permute.xlu0 %1145
      %1149 = vset.pattern.permute.xlu0 3
      %1150 = vperm.xlu0 %1149, %v339
      %v1151 = vpop.permute.xlu0 %1150
      %1154 = vset.pattern.permute.xlu0 3
      %1155 = vperm.xlu0 %1154, %v340
      %v1156 = vpop.permute.xlu0 %1155
      %1159 = vset.pattern.permute.xlu0 3
      %1160 = vperm.xlu0 %1159, %v341
      %v1161 = vpop.permute.xlu0 %1160
      %1164 = vset.pattern.permute.xlu0 3
      %1165 = vperm.xlu0 %1164, %v342
      %v1166 = vpop.permute.xlu0 %1165
      %1169 = vset.pattern.permute.xlu0 3
      %1170 = vperm.xlu0 %1169, %v343
      %v1171 = vpop.permute.xlu0 %1170
      %1174 = vset.pattern.permute.xlu0 3
      %1175 = vperm.xlu0 %1174, %v344
      %v1176 = vpop.permute.xlu0 %1175
      %1179 = vset.pattern.permute.xlu0 3
      %1180 = vperm.xlu0 %1179, %v345
      %v1181 = vpop.permute.xlu0 %1180
      %1184 = vset.pattern.permute.xlu0 3
      %1185 = vperm.xlu0 %1184, %v346
      %v1186 = vpop.permute.xlu0 %1185
      %1189 = vset.pattern.permute.xlu0 3
      %1190 = vperm.xlu0 %1189, %v347
      %v1191 = vpop.permute.xlu0 %1190
      %1194 = vset.pattern.permute.xlu0 3
      %1195 = vperm.xlu0 %1194, %v348
      %v1196 = vpop.permute.xlu0 %1195
      %1199 = vset.pattern.permute.xlu0 3
      %1200 = vperm.xlu0 %1199, %v349
      %v1201 = vpop.permute.xlu0 %1200
      %1204 = vset.pattern.permute.xlu0 3
      %1205 = vperm.xlu0 %1204, %v350
      %v1206 = vpop.permute.xlu0 %1205
      %1209 = vset.pattern.permute.xlu0 3
      %1210 = vperm.xlu0 %1209, %v351
      %v1211 = vpop.permute.xlu0 %1210
      %1214 = vset.pattern.permute.xlu0 3
      %1215 = vperm.xlu0 %1214, %v352
      %v1216 = vpop.permute.xlu0 %1215
      %1219 = vset.pattern.permute.xlu0 3
      %1220 = vperm.xlu0 %1219, %v353
      %v1221 = vpop.permute.xlu0 %1220
      %1224 = vset.pattern.permute.xlu0 3
      %1225 = vperm.xlu0 %1224, %v354
      %v1226 = vpop.permute.xlu0 %1225
      %1229 = vset.pattern.permute.xlu0 3
      %1230 = vperm.xlu0 %1229, %v355
      %v1231 = vpop.permute.xlu0 %1230
      %1234 = vset.pattern.permute.xlu0 3
      %1235 = vperm.xlu0 %1234, %v356
      %v1236 = vpop.permute.xlu0 %1235
      %1239 = vset.pattern.permute.xlu0 3
      %1240 = vperm.xlu0 %1239, %v357
      %v1241 = vpop.permute.xlu0 %1240
      %1244 = vset.pattern.permute.xlu0 3
      %1245 = vperm.xlu0 %1244, %v358
      %v1246 = vpop.permute.xlu0 %1245
      %1249 = vset.pattern.permute.xlu0 3
      %1250 = vperm.xlu0 %1249, %v359
      %v1251 = vpop.permute.xlu0 %1250
      %1254 = vset.pattern.permute.xlu0 3
      %1255 = vperm.xlu0 %1254, %v360
      %v1256 = vpop.permute.xlu0 %1255
      %1259 = vset.pattern.permute.xlu0 3
      %1260 = vperm.xlu0 %1259, %v361
      %v1261 = vpop.permute.xlu0 %1260
      %1264 = vset.pattern.permute.xlu0 3
      %1265 = vperm.xlu0 %1264, %v362
      %v1266 = vpop.permute.xlu0 %1265
      %1269 = vset.pattern.permute.xlu0 3
      %1270 = vperm.xlu0 %1269, %v363
      %v1271 = vpop.permute.xlu0 %1270
      %1274 = vset.pattern.permute.xlu0 3
      %1275 = vperm.xlu0 %1274, %v364
      %v1276 = vpop.permute.xlu0 %1275
      %1279 = vset.pattern.permute.xlu0 3
      %1280 = vperm.xlu0 %1279, %v365
      %v1281 = vpop.permute.xlu0 %1280
      %1284 = vset.pattern.permute.xlu0 3
      %1285 = vperm.xlu0 %1284, %v366
      %v1286 = vpop.permute.xlu0 %1285
      %1289 = vset.pattern.permute.xlu0 3
      %1290 = vperm.xlu0 %1289, %v367
      %v1291 = vpop.permute.xlu0 %1290
      %1294 = vset.pattern.permute.xlu0 3
      %1295 = vperm.xlu0 %1294, %v368
      %v1296 = vpop.permute.xlu0 %1295
      %1299 = vset.pattern.permute.xlu0 3
      %1300 = vperm.xlu0 %1299, %v369
      %v1301 = vpop.permute.xlu0 %1300
      %1304 = vset.pattern.permute.xlu0 3
      %1305 = vperm.xlu0 %1304, %v370
      %v1306 = vpop.permute.xlu0 %1305
      %1309 = vset.pattern.permute.xlu0 3
      %1310 = vperm.xlu0 %1309, %v371
      %v1311 = vpop.permute.xlu0 %1310
      %1314 = vset.pattern.permute.xlu0 3
      %1315 = vperm.xlu0 %1314, %v372
      %v1316 = vpop.permute.xlu0 %1315
      %1319 = vset.pattern.permute.xlu0 3
      %1320 = vperm.xlu0 %1319, %v373
      %v1321 = vpop.permute.xlu0 %1320
      %1324 = vset.pattern.permute.xlu0 3
      %1325 = vperm.xlu0 %1324, %v374
      %v1326 = vpop.permute.xlu0 %1325
      %1329 = vset.pattern.permute.xlu0 3
      %1330 = vperm.xlu0 %1329, %v375
      %v1331 = vpop.permute.xlu0 %1330
      %1334 = vset.pattern.permute.xlu0 3
      %1335 = vperm.xlu0 %1334, %v376
      %v1336 = vpop.permute.xlu0 %1335
      %1339 = vset.pattern.permute.xlu0 3
      %1340 = vperm.xlu0 %1339, %v377
      %v1341 = vpop.permute.xlu0 %1340
      %1344 = vset.pattern.permute.xlu0 3
      %1345 = vperm.xlu0 %1344, %v378
      %v1346 = vpop.permute.xlu0 %1345
      %1349 = vset.pattern.permute.xlu0 3
      %1350 = vperm.xlu0 %1349, %v379
      %v1351 = vpop.permute.xlu0 %1350
      %1354 = vset.pattern.permute.xlu0 3
      %1355 = vperm.xlu0 %1354, %v380
      %v1356 = vpop.permute.xlu0 %1355
      %1359 = vset.pattern.permute.xlu0 3
      %1360 = vperm.xlu0 %1359, %v381
      %v1361 = vpop.permute.xlu0 %1360
      %1364 = vset.pattern.permute.xlu0 3
      %1365 = vperm.xlu0 %1364, %v382
      %v1366 = vpop.permute.xlu0 %1365
      %1369 = vset.pattern.permute.xlu0 3
      %1370 = vperm.xlu0 %1369, %v383
      %v1371 = vpop.permute.xlu0 %1370
      %1374 = vset.pattern.permute.xlu0 3
      %1375 = vperm.xlu0 %1374, %v384
      %v1376 = vpop.permute.xlu0 %1375
      %1379 = vset.pattern.permute.xlu0 3
      %1380 = vperm.xlu0 %1379, %v385
      %v1381 = vpop.permute.xlu0 %1380
      %1384 = vset.pattern.permute.xlu0 3
      %1385 = vperm.xlu0 %1384, %v386
      %v1386 = vpop.permute.xlu0 %1385
      %1389 = vset.pattern.permute.xlu0 3
      %1390 = vperm.xlu0 %1389, %v387
      %v1391 = vpop.permute.xlu0 %1390
      %1394 = vset.pattern.permute.xlu0 3
      %1395 = vperm.xlu0 %1394, %v388
      %v1396 = vpop.permute.xlu0 %1395
      %1399 = vset.pattern.permute.xlu0 3
      %1400 = vperm.xlu0 %1399, %v389
      %v1401 = vpop.permute.xlu0 %1400
      %1404 = vset.pattern.permute.xlu0 3
      %1405 = vperm.xlu0 %1404, %v390
      %v1406 = vpop.permute.xlu0 %1405
      %1409 = vset.pattern.permute.xlu0 3
      %1410 = vperm.xlu0 %1409, %v391
      %v1411 = vpop.permute.xlu0 %1410
      %1414 = vset.pattern.permute.xlu0 3
      %1415 = vperm.xlu0 %1414, %v392
      %v1416 = vpop.permute.xlu0 %1415
      %1419 = vset.pattern.permute.xlu0 3
      %1420 = vperm.xlu0 %1419, %v393
      %v1421 = vpop.permute.xlu0 %1420
      %1424 = vset.pattern.permute.xlu0 3
      %1425 = vperm.xlu0 %1424, %v394
      %v1426 = vpop.permute.xlu0 %1425
      %1429 = vset.pattern.permute.xlu0 3
      %1430 = vperm.xlu0 %1429, %v395
      %v1431 = vpop.permute.xlu0 %1430
      %1434 = vset.pattern.permute.xlu0 3
      %1435 = vperm.xlu0 %1434, %v396
      %v1436 = vpop.permute.xlu0 %1435
      %1439 = vset.pattern.permute.xlu0 3
      %1440 = vperm.xlu0 %1439, %v397
      %v1441 = vpop.permute.xlu0 %1440
      %1444 = vset.pattern.permute.xlu0 3
      %1445 = vperm.xlu0 %1444, %v398
      %v1446 = vpop.permute.xlu0 %1445
      %1449 = vset.pattern.permute.xlu0 3
      %1450 = vperm.xlu0 %1449, %v399
      %v1451 = vpop.permute.xlu0 %1450
      %1454 = vset.pattern.permute.xlu0 3
      %1455 = vperm.xlu0 %1454, %v400
      %v1456 = vpop.permute.xlu0 %1455
      %1459 = vset.pattern.permute.xlu0 3
      %1460 = vperm.xlu0 %1459, %v401
      %v1461 = vpop.permute.xlu0 %1460
      %1464 = vset.pattern.permute.xlu0 3
      %1465 = vperm.xlu0 %1464, %v402
      %v1466 = vpop.permute.xlu0 %1465
      %1469 = vset.pattern.permute.xlu0 3
      %1470 = vperm.xlu0 %1469, %v403
      %v1471 = vpop.permute.xlu0 %1470
      %1474 = vset.pattern.permute.xlu0 3
      %1475 = vperm.xlu0 %1474, %v404
      %v1476 = vpop.permute.xlu0 %1475
      %1479 = vset.pattern.permute.xlu0 3
      %1480 = vperm.xlu0 %1479, %v405
      %v1481 = vpop.permute.xlu0 %1480
      %1484 = vset.pattern.permute.xlu0 3
      %1485 = vperm.xlu0 %1484, %v406
      %v1486 = vpop.permute.xlu0 %1485
      %1489 = vset.pattern.permute.xlu0 3
      %1490 = vperm.xlu0 %1489, %v407
      %v1491 = vpop.permute.xlu0 %1490
      %1494 = vset.pattern.permute.xlu0 3
      %1495 = vperm.xlu0 %1494, %v408
      %v1496 = vpop.permute.xlu0 %1495
      %1499 = vset.pattern.permute.xlu0 3
      %1500 = vperm.xlu0 %1499, %v409
      %v1501 = vpop.permute.xlu0 %1500
      %1504 = vset.pattern.permute.xlu0 3
      %1505 = vperm.xlu0 %1504, %v410
      %v1506 = vpop.permute.xlu0 %1505
      %1509 = vset.pattern.permute.xlu0 3
      %1510 = vperm.xlu0 %1509, %v411
      %v1511 = vpop.permute.xlu0 %1510
      %1514 = vset.pattern.permute.xlu0 3
      %1515 = vperm.xlu0 %1514, %v412
      %v1516 = vpop.permute.xlu0 %1515
      %1519 = vset.pattern.permute.xlu0 3
      %1520 = vperm.xlu0 %1519, %v413
      %v1521 = vpop.permute.xlu0 %1520
      %1524 = vset.pattern.permute.xlu0 3
      %1525 = vperm.xlu0 %1524, %v414
      %v1526 = vpop.permute.xlu0 %1525
      %1529 = vset.pattern.permute.xlu0 3
      %1530 = vperm.xlu0 %1529, %v415
      %v1531 = vpop.permute.xlu0 %1530
      %1534 = vset.pattern.permute.xlu0 3
      %1535 = vperm.xlu0 %1534, %v416
      %v1536 = vpop.permute.xlu0 %1535
      %1539 = vset.pattern.permute.xlu0 3
      %1540 = vperm.xlu0 %1539, %v417
      %v1541 = vpop.permute.xlu0 %1540
      %1544 = vset.pattern.permute.xlu0 3
      %1545 = vperm.xlu0 %1544, %v418
      %v1546 = vpop.permute.xlu0 %1545
      %1549 = vset.pattern.permute.xlu0 3
      %1550 = vperm.xlu0 %1549, %v419
      %v1551 = vpop.permute.xlu0 %1550
      %1554 = vset.pattern.permute.xlu0 3
      %1555 = vperm.xlu0 %1554, %v420
      %v1556 = vpop.permute.xlu0 %1555
      %1559 = vset.pattern.permute.xlu0 3
      %1560 = vperm.xlu0 %1559, %v421
      %v1561 = vpop.permute.xlu0 %1560
      %1564 = vset.pattern.permute.xlu0 3
      %1565 = vperm.xlu0 %1564, %v422
      %v1566 = vpop.permute.xlu0 %1565
      %1569 = vset.pattern.permute.xlu0 3
      %1570 = vperm.xlu0 %1569, %v423
      %v1571 = vpop.permute.xlu0 %1570
      %1574 = vset.pattern.permute.xlu0 3
      %1575 = vperm.xlu0 %1574, %v424
      %v1576 = vpop.permute.xlu0 %1575
      %1579 = vset.pattern.permute.xlu0 3
      %1580 = vperm.xlu0 %1579, %v425
      %v1581 = vpop.permute.xlu0 %1580
      %1584 = vset.pattern.permute.xlu0 3
      %1585 = vperm.xlu0 %1584, %v426
      %v1586 = vpop.permute.xlu0 %1585
      %1589 = vset.pattern.permute.xlu0 3
      %1590 = vperm.xlu0 %1589, %v427
      %v1591 = vpop.permute.xlu0 %1590
      %1594 = vset.pattern.permute.xlu0 3
      %1595 = vperm.xlu0 %1594, %v428
      %v1596 = vpop.permute.xlu0 %1595
      %1599 = vset.pattern.permute.xlu0 3
      %1600 = vperm.xlu0 %1599, %v429
      %v1601 = vpop.permute.xlu0 %1600
      %1604 = vset.pattern.permute.xlu0 3
      %1605 = vperm.xlu0 %1604, %v430
      %v1606 = vpop.permute.xlu0 %1605
      %1609 = vset.pattern.permute.xlu0 3
      %1610 = vperm.xlu0 %1609, %v431
      %v1611 = vpop.permute.xlu0 %1610
      %1614 = vset.pattern.permute.xlu0 3
      %1615 = vperm.xlu0 %1614, %v432
      %v1616 = vpop.permute.xlu0 %1615
      %1619 = vset.pattern.permute.xlu0 3
      %1620 = vperm.xlu0 %1619, %v433
      %v1621 = vpop.permute.xlu0 %1620
      %1624 = vset.pattern.permute.xlu0 3
      %1625 = vperm.xlu0 %1624, %v434
      %v1626 = vpop.permute.xlu0 %1625
      %1629 = vset.pattern.permute.xlu0 3
      %1630 = vperm.xlu0 %1629, %v435
      %v1631 = vpop.permute.xlu0 %1630
      %1634 = vset.pattern.permute.xlu0 3
      %1635 = vperm.xlu0 %1634, %v436
      %v1636 = vpop.permute.xlu0 %1635
      %1639 = vset.pattern.permute.xlu0 3
      %1640 = vperm.xlu0 %1639, %v437
      %v1641 = vpop.permute.xlu0 %1640
      %1644 = vset.pattern.permute.xlu0 3
      %1645 = vperm.xlu0 %1644, %v438
      %v1646 = vpop.permute.xlu0 %1645
      %1649 = vset.pattern.permute.xlu0 3
      %1650 = vperm.xlu0 %1649, %v439
      %v1651 = vpop.permute.xlu0 %1650
      %1654 = vset.pattern.permute.xlu0 3
      %1655 = vperm.xlu0 %1654, %v440
      %v1656 = vpop.permute.xlu0 %1655
      %1659 = vset.pattern.permute.xlu0 3
      %1660 = vperm.xlu0 %1659, %v441
      %v1661 = vpop.permute.xlu0 %1660
      %1664 = vset.pattern.permute.xlu0 3
      %1665 = vperm.xlu0 %1664, %v442
      %v1666 = vpop.permute.xlu0 %1665
      %1669 = vset.pattern.permute.xlu0 3
      %1670 = vperm.xlu0 %1669, %v443
      %v1671 = vpop.permute.xlu0 %1670
      %1674 = vset.pattern.permute.xlu0 3
      %1675 = vperm.xlu0 %1674, %v444
      %v1676 = vpop.permute.xlu0 %1675
      %1679 = vset.pattern.permute.xlu0 3
      %1680 = vperm.xlu0 %1679, %v445
      %v1681 = vpop.permute.xlu0 %1680
      %1684 = vset.pattern.permute.xlu0 3
      %1685 = vperm.xlu0 %1684, %v446
      %v1686 = vpop.permute.xlu0 %1685
      %1689 = vset.pattern.permute.xlu0 3
      %1690 = vperm.xlu0 %1689, %v447
      %v1691 = vpop.permute.xlu0 %1690
      %1694 = vset.pattern.permute.xlu0 3
      %1695 = vperm.xlu0 %1694, %v448
      %v1696 = vpop.permute.xlu0 %1695
      %1699 = vset.pattern.permute.xlu0 3
      %1700 = vperm.xlu0 %1699, %v449
      %v1701 = vpop.permute.xlu0 %1700
      %1704 = vset.pattern.permute.xlu0 3
      %1705 = vperm.xlu0 %1704, %v450
      %v1706 = vpop.permute.xlu0 %1705
      %1709 = vset.pattern.permute.xlu0 3
      %1710 = vperm.xlu0 %1709, %v451
      %v1711 = vpop.permute.xlu0 %1710
      %1714 = vset.pattern.permute.xlu0 3
      %1715 = vperm.xlu0 %1714, %v452
      %v1716 = vpop.permute.xlu0 %1715
      %1719 = vset.pattern.permute.xlu0 3
      %1720 = vperm.xlu0 %1719, %v453
      %v1721 = vpop.permute.xlu0 %1720
      %1724 = vset.pattern.permute.xlu0 3
      %1725 = vperm.xlu0 %1724, %v454
      %v1726 = vpop.permute.xlu0 %1725
      %1729 = vset.pattern.permute.xlu0 3
      %1730 = vperm.xlu0 %1729, %v455
      %v1731 = vpop.permute.xlu0 %1730
      %1734 = vset.pattern.permute.xlu0 3
      %1735 = vperm.xlu0 %1734, %v456
      %v1736 = vpop.permute.xlu0 %1735
      %v1739 = vlaneseq
      %v1740 = vshrl.u32 %v1739, 7
      %v1741 = vsub.s32 0, %v1740
      %v1742 = vrot.slane %v457, %v1741
      %v1744 = vsub.f32 %v461, %v1742
      %v1745 = vsub.f32 %v466, %v1742
      %v1746 = vsub.f32 %v471, %v1742
      %v1747 = vsub.f32 %v476, %v1742
      %v1748 = vsub.f32 %v481, %v1742
      %v1749 = vsub.f32 %v486, %v1742
      %v1750 = vsub.f32 %v491, %v1742
      %v1751 = vsub.f32 %v496, %v1742
      %v1752 = vsub.f32 %v501, %v1742
      %v1753 = vsub.f32 %v506, %v1742
      %v1754 = vsub.f32 %v511, %v1742
      %v1755 = vsub.f32 %v516, %v1742
      %v1756 = vsub.f32 %v521, %v1742
      %v1757 = vsub.f32 %v526, %v1742
      %v1758 = vsub.f32 %v531, %v1742
      %v1759 = vsub.f32 %v536, %v1742
      %v1760 = vsub.f32 %v541, %v1742
      %v1761 = vsub.f32 %v546, %v1742
      %v1762 = vsub.f32 %v551, %v1742
      %v1763 = vsub.f32 %v556, %v1742
      %v1764 = vsub.f32 %v561, %v1742
      %v1765 = vsub.f32 %v566, %v1742
      %v1766 = vsub.f32 %v571, %v1742
      %v1767 = vsub.f32 %v576, %v1742
      %v1768 = vsub.f32 %v581, %v1742
      %v1769 = vsub.f32 %v586, %v1742
      %v1770 = vsub.f32 %v591, %v1742
      %v1771 = vsub.f32 %v596, %v1742
      %v1772 = vsub.f32 %v601, %v1742
      %v1773 = vsub.f32 %v606, %v1742
      %v1774 = vsub.f32 %v611, %v1742
      %v1775 = vsub.f32 %v616, %v1742
      %v1776 = vsub.f32 %v621, %v1742
      %v1777 = vsub.f32 %v626, %v1742
      %v1778 = vsub.f32 %v631, %v1742
      %v1779 = vsub.f32 %v636, %v1742
      %v1780 = vsub.f32 %v641, %v1742
      %v1781 = vsub.f32 %v646, %v1742
      %v1782 = vsub.f32 %v651, %v1742
      %v1783 = vsub.f32 %v656, %v1742
      %v1784 = vsub.f32 %v661, %v1742
      %v1785 = vsub.f32 %v666, %v1742
      %v1786 = vsub.f32 %v671, %v1742
      %v1787 = vsub.f32 %v676, %v1742
      %v1788 = vsub.f32 %v681, %v1742
      %v1789 = vsub.f32 %v686, %v1742
      %v1790 = vsub.f32 %v691, %v1742
      %v1791 = vsub.f32 %v696, %v1742
      %v1792 = vsub.f32 %v701, %v1742
      %v1793 = vsub.f32 %v706, %v1742
      %v1794 = vsub.f32 %v711, %v1742
      %v1795 = vsub.f32 %v716, %v1742
      %v1796 = vsub.f32 %v721, %v1742
      %v1797 = vsub.f32 %v726, %v1742
      %v1798 = vsub.f32 %v731, %v1742
      %v1799 = vsub.f32 %v736, %v1742
      %v1800 = vsub.f32 %v741, %v1742
      %v1801 = vsub.f32 %v746, %v1742
      %v1802 = vsub.f32 %v751, %v1742
      %v1803 = vsub.f32 %v756, %v1742
      %v1804 = vsub.f32 %v761, %v1742
      %v1805 = vsub.f32 %v766, %v1742
      %v1806 = vsub.f32 %v771, %v1742
      %v1807 = vsub.f32 %v776, %v1742
      %v1808 = vsub.f32 %v781, %v1742
      %v1809 = vsub.f32 %v786, %v1742
      %v1810 = vsub.f32 %v791, %v1742
      %v1811 = vsub.f32 %v796, %v1742
      %v1812 = vsub.f32 %v801, %v1742
      %v1813 = vsub.f32 %v806, %v1742
      %v1814 = vsub.f32 %v811, %v1742
      %v1815 = vsub.f32 %v816, %v1742
      %v1816 = vsub.f32 %v821, %v1742
      %v1817 = vsub.f32 %v826, %v1742
      %v1818 = vsub.f32 %v831, %v1742
      %v1819 = vsub.f32 %v836, %v1742
      %v1820 = vsub.f32 %v841, %v1742
      %v1821 = vsub.f32 %v846, %v1742
      %v1822 = vsub.f32 %v851, %v1742
      %v1823 = vsub.f32 %v856, %v1742
      %v1824 = vsub.f32 %v861, %v1742
      %v1825 = vsub.f32 %v866, %v1742
      %v1826 = vsub.f32 %v871, %v1742
      %v1827 = vsub.f32 %v876, %v1742
      %v1828 = vsub.f32 %v881, %v1742
      %v1829 = vsub.f32 %v886, %v1742
      %v1830 = vsub.f32 %v891, %v1742
      %v1831 = vsub.f32 %v896, %v1742
      %v1832 = vsub.f32 %v901, %v1742
      %v1833 = vsub.f32 %v906, %v1742
      %v1834 = vsub.f32 %v911, %v1742
      %v1835 = vsub.f32 %v916, %v1742
      %v1836 = vsub.f32 %v921, %v1742
      %v1837 = vsub.f32 %v926, %v1742
      %v1838 = vsub.f32 %v931, %v1742
      %v1839 = vsub.f32 %v936, %v1742
      %v1840 = vsub.f32 %v941, %v1742
      %v1841 = vsub.f32 %v946, %v1742
      %v1842 = vsub.f32 %v951, %v1742
      %v1843 = vsub.f32 %v956, %v1742
      %v1844 = vsub.f32 %v961, %v1742
      %v1845 = vsub.f32 %v966, %v1742
      %v1846 = vsub.f32 %v971, %v1742
      %v1847 = vsub.f32 %v976, %v1742
      %v1848 = vsub.f32 %v981, %v1742
      %v1849 = vsub.f32 %v986, %v1742
      %v1850 = vsub.f32 %v991, %v1742
      %v1851 = vsub.f32 %v996, %v1742
      %v1852 = vsub.f32 %v1001, %v1742
      %v1853 = vsub.f32 %v1006, %v1742
      %v1854 = vsub.f32 %v1011, %v1742
      %v1855 = vsub.f32 %v1016, %v1742
      %v1856 = vsub.f32 %v1021, %v1742
      %v1857 = vsub.f32 %v1026, %v1742
      %v1858 = vsub.f32 %v1031, %v1742
      %v1859 = vsub.f32 %v1036, %v1742
      %v1860 = vsub.f32 %v1041, %v1742
      %v1861 = vsub.f32 %v1046, %v1742
      %v1862 = vsub.f32 %v1051, %v1742
      %v1863 = vsub.f32 %v1056, %v1742
      %v1864 = vsub.f32 %v1061, %v1742
      %v1865 = vsub.f32 %v1066, %v1742
      %v1866 = vsub.f32 %v1071, %v1742
      %v1867 = vsub.f32 %v1076, %v1742
      %v1868 = vsub.f32 %v1081, %v1742
      %v1869 = vsub.f32 %v1086, %v1742
      %v1870 = vsub.f32 %v1091, %v1742
      %v1871 = vsub.f32 %v1096, %v1742
      %v1872 = vsub.f32 %v1101, %v1742
      %v1873 = vsub.f32 %v1106, %v1742
      %v1874 = vsub.f32 %v1111, %v1742
      %v1875 = vsub.f32 %v1116, %v1742
      %v1876 = vsub.f32 %v1121, %v1742
      %v1877 = vsub.f32 %v1126, %v1742
      %v1878 = vsub.f32 %v1131, %v1742
      %v1879 = vsub.f32 %v1136, %v1742
      %v1880 = vsub.f32 %v1141, %v1742
      %v1881 = vsub.f32 %v1146, %v1742
      %v1882 = vsub.f32 %v1151, %v1742
      %v1883 = vsub.f32 %v1156, %v1742
      %v1884 = vsub.f32 %v1161, %v1742
      %v1885 = vsub.f32 %v1166, %v1742
      %v1886 = vsub.f32 %v1171, %v1742
      %v1887 = vsub.f32 %v1176, %v1742
      %v1888 = vsub.f32 %v1181, %v1742
      %v1889 = vsub.f32 %v1186, %v1742
      %v1890 = vsub.f32 %v1191, %v1742
      %v1891 = vsub.f32 %v1196, %v1742
      %v1892 = vsub.f32 %v1201, %v1742
      %v1893 = vsub.f32 %v1206, %v1742
      %v1894 = vsub.f32 %v1211, %v1742
      %v1895 = vsub.f32 %v1216, %v1742
      %v1896 = vsub.f32 %v1221, %v1742
      %v1897 = vsub.f32 %v1226, %v1742
      %v1898 = vsub.f32 %v1231, %v1742
      %v1899 = vsub.f32 %v1236, %v1742
      %v1900 = vsub.f32 %v1241, %v1742
      %v1901 = vsub.f32 %v1246, %v1742
      %v1902 = vsub.f32 %v1251, %v1742
      %v1903 = vsub.f32 %v1256, %v1742
      %v1904 = vsub.f32 %v1261, %v1742
      %v1905 = vsub.f32 %v1266, %v1742
      %v1906 = vsub.f32 %v1271, %v1742
      %v1907 = vsub.f32 %v1276, %v1742
      %v1908 = vsub.f32 %v1281, %v1742
      %v1909 = vsub.f32 %v1286, %v1742
      %v1910 = vsub.f32 %v1291, %v1742
      %v1911 = vsub.f32 %v1296, %v1742
      %v1912 = vsub.f32 %v1301, %v1742
      %v1913 = vsub.f32 %v1306, %v1742
      %v1914 = vsub.f32 %v1311, %v1742
      %v1915 = vsub.f32 %v1316, %v1742
      %v1916 = vsub.f32 %v1321, %v1742
      %v1917 = vsub.f32 %v1326, %v1742
      %v1918 = vsub.f32 %v1331, %v1742
      %v1919 = vsub.f32 %v1336, %v1742
      %v1920 = vsub.f32 %v1341, %v1742
      %v1921 = vsub.f32 %v1346, %v1742
      %v1922 = vsub.f32 %v1351, %v1742
      %v1923 = vsub.f32 %v1356, %v1742
      %v1924 = vsub.f32 %v1361, %v1742
      %v1925 = vsub.f32 %v1366, %v1742
      %v1926 = vsub.f32 %v1371, %v1742
      %v1927 = vsub.f32 %v1376, %v1742
      %v1928 = vsub.f32 %v1381, %v1742
      %v1929 = vsub.f32 %v1386, %v1742
      %v1930 = vsub.f32 %v1391, %v1742
      %v1931 = vsub.f32 %v1396, %v1742
      %v1932 = vsub.f32 %v1401, %v1742
      %v1933 = vsub.f32 %v1406, %v1742
      %v1934 = vsub.f32 %v1411, %v1742
      %v1935 = vsub.f32 %v1416, %v1742
      %v1936 = vsub.f32 %v1421, %v1742
      %v1937 = vsub.f32 %v1426, %v1742
      %v1938 = vsub.f32 %v1431, %v1742
      %v1939 = vsub.f32 %v1436, %v1742
      %v1940 = vsub.f32 %v1441, %v1742
      %v1941 = vsub.f32 %v1446, %v1742
      %v1942 = vsub.f32 %v1451, %v1742
      %v1943 = vsub.f32 %v1456, %v1742
      %v1944 = vsub.f32 %v1461, %v1742
      %v1945 = vsub.f32 %v1466, %v1742
      %v1946 = vsub.f32 %v1471, %v1742
      %v1947 = vsub.f32 %v1476, %v1742
      %v1948 = vsub.f32 %v1481, %v1742
      %v1949 = vsub.f32 %v1486, %v1742
      %v1950 = vsub.f32 %v1491, %v1742
      %v1951 = vsub.f32 %v1496, %v1742
      %v1952 = vsub.f32 %v1501, %v1742
      %v1953 = vsub.f32 %v1506, %v1742
      %v1954 = vsub.f32 %v1511, %v1742
      %v1955 = vsub.f32 %v1516, %v1742
      %v1956 = vsub.f32 %v1521, %v1742
      %v1957 = vsub.f32 %v1526, %v1742
      %v1958 = vsub.f32 %v1531, %v1742
      %v1959 = vsub.f32 %v1536, %v1742
      %v1960 = vsub.f32 %v1541, %v1742
      %v1961 = vsub.f32 %v1546, %v1742
      %v1962 = vsub.f32 %v1551, %v1742
      %v1963 = vsub.f32 %v1556, %v1742
      %v1964 = vsub.f32 %v1561, %v1742
      %v1965 = vsub.f32 %v1566, %v1742
      %v1966 = vsub.f32 %v1571, %v1742
      %v1967 = vsub.f32 %v1576, %v1742
      %v1968 = vsub.f32 %v1581, %v1742
      %v1969 = vsub.f32 %v1586, %v1742
      %v1970 = vsub.f32 %v1591, %v1742
      %v1971 = vsub.f32 %v1596, %v1742
      %v1972 = vsub.f32 %v1601, %v1742
      %v1973 = vsub.f32 %v1606, %v1742
      %v1974 = vsub.f32 %v1611, %v1742
      %v1975 = vsub.f32 %v1616, %v1742
      %v1976 = vsub.f32 %v1621, %v1742
      %v1977 = vsub.f32 %v1626, %v1742
      %v1978 = vsub.f32 %v1631, %v1742
      %v1979 = vsub.f32 %v1636, %v1742
      %v1980 = vsub.f32 %v1641, %v1742
      %v1981 = vsub.f32 %v1646, %v1742
      %v1982 = vsub.f32 %v1651, %v1742
      %v1983 = vsub.f32 %v1656, %v1742
      %v1984 = vsub.f32 %v1661, %v1742
      %v1985 = vsub.f32 %v1666, %v1742
      %v1986 = vsub.f32 %v1671, %v1742
      %v1987 = vsub.f32 %v1676, %v1742
      %v1988 = vsub.f32 %v1681, %v1742
      %v1989 = vsub.f32 %v1686, %v1742
      %v1990 = vsub.f32 %v1691, %v1742
      %v1991 = vsub.f32 %v1696, %v1742
      %v1992 = vsub.f32 %v1701, %v1742
      %v1993 = vsub.f32 %v1706, %v1742
      %v1994 = vsub.f32 %v1711, %v1742
      %v1995 = vsub.f32 %v1716, %v1742
      %v1996 = vsub.f32 %v1721, %v1742
      %v1997 = vsub.f32 %v1726, %v1742
      %v1998 = vsub.f32 %v1731, %v1742
      %v1999 = vsub.f32 %v1736, %v1742
      %v2000 = vld [vmem:[%s2] sm:$0x1]
      %v2002 = vlaneseq
      %v2003 = vshrl.u32 %v2002, 7
      %v2004 = vsub.s32 0, %v2003
      %v2005 = vrot.slane %v2000, %v2004
      %v2007 = vmul.f32 %v1744, %v2005
      %v2008 = vmul.f32 %v1745, %v2005
      %v2009 = vmul.f32 %v1746, %v2005
      %v2010 = vmul.f32 %v1747, %v2005
      %v2011 = vmul.f32 %v1748, %v2005
      %v2012 = vmul.f32 %v1749, %v2005
      %v2013 = vmul.f32 %v1750, %v2005
      %v2014 = vmul.f32 %v1751, %v2005
      %v2015 = vmul.f32 %v1752, %v2005
      %v2016 = vmul.f32 %v1753, %v2005
      %v2017 = vmul.f32 %v1754, %v2005
      %v2018 = vmul.f32 %v1755, %v2005
      %v2019 = vmul.f32 %v1756, %v2005
      %v2020 = vmul.f32 %v1757, %v2005
      %v2021 = vmul.f32 %v1758, %v2005
      %v2022 = vmul.f32 %v1759, %v2005
      %v2023 = vmul.f32 %v1760, %v2005
      %v2024 = vmul.f32 %v1761, %v2005
      %v2025 = vmul.f32 %v1762, %v2005
      %v2026 = vmul.f32 %v1763, %v2005
      %v2027 = vmul.f32 %v1764, %v2005
      %v2028 = vmul.f32 %v1765, %v2005
      %v2029 = vmul.f32 %v1766, %v2005
      %v2030 = vmul.f32 %v1767, %v2005
      %v2031 = vmul.f32 %v1768, %v2005
      %v2032 = vmul.f32 %v1769, %v2005
      %v2033 = vmul.f32 %v1770, %v2005
      %v2034 = vmul.f32 %v1771, %v2005
      %v2035 = vmul.f32 %v1772, %v2005
      %v2036 = vmul.f32 %v1773, %v2005
      %v2037 = vmul.f32 %v1774, %v2005
      %v2038 = vmul.f32 %v1775, %v2005
      %v2039 = vmul.f32 %v1776, %v2005
      %v2040 = vmul.f32 %v1777, %v2005
      %v2041 = vmul.f32 %v1778, %v2005
      %v2042 = vmul.f32 %v1779, %v2005
      %v2043 = vmul.f32 %v1780, %v2005
      %v2044 = vmul.f32 %v1781, %v2005
      %v2045 = vmul.f32 %v1782, %v2005
      %v2046 = vmul.f32 %v1783, %v2005
      %v2047 = vmul.f32 %v1784, %v2005
      %v2048 = vmul.f32 %v1785, %v2005
      %v2049 = vmul.f32 %v1786, %v2005
      %v2050 = vmul.f32 %v1787, %v2005
      %v2051 = vmul.f32 %v1788, %v2005
      %v2052 = vmul.f32 %v1789, %v2005
      %v2053 = vmul.f32 %v1790, %v2005
      %v2054 = vmul.f32 %v1791, %v2005
      %v2055 = vmul.f32 %v1792, %v2005
      %v2056 = vmul.f32 %v1793, %v2005
      %v2057 = vmul.f32 %v1794, %v2005
      %v2058 = vmul.f32 %v1795, %v2005
      %v2059 = vmul.f32 %v1796, %v2005
      %v2060 = vmul.f32 %v1797, %v2005
      %v2061 = vmul.f32 %v1798, %v2005
      %v2062 = vmul.f32 %v1799, %v2005
      %v2063 = vmul.f32 %v1800, %v2005
      %v2064 = vmul.f32 %v1801, %v2005
      %v2065 = vmul.f32 %v1802, %v2005
      %v2066 = vmul.f32 %v1803, %v2005
      %v2067 = vmul.f32 %v1804, %v2005
      %v2068 = vmul.f32 %v1805, %v2005
      %v2069 = vmul.f32 %v1806, %v2005
      %v2070 = vmul.f32 %v1807, %v2005
      %v2071 = vmul.f32 %v1808, %v2005
      %v2072 = vmul.f32 %v1809, %v2005
      %v2073 = vmul.f32 %v1810, %v2005
      %v2074 = vmul.f32 %v1811, %v2005
      %v2075 = vmul.f32 %v1812, %v2005
      %v2076 = vmul.f32 %v1813, %v2005
      %v2077 = vmul.f32 %v1814, %v2005
      %v2078 = vmul.f32 %v1815, %v2005
      %v2079 = vmul.f32 %v1816, %v2005
      %v2080 = vmul.f32 %v1817, %v2005
      %v2081 = vmul.f32 %v1818, %v2005
      %v2082 = vmul.f32 %v1819, %v2005
      %v2083 = vmul.f32 %v1820, %v2005
      %v2084 = vmul.f32 %v1821, %v2005
      %v2085 = vmul.f32 %v1822, %v2005
      %v2086 = vmul.f32 %v1823, %v2005
      %v2087 = vmul.f32 %v1824, %v2005
      %v2088 = vmul.f32 %v1825, %v2005
      %v2089 = vmul.f32 %v1826, %v2005
      %v2090 = vmul.f32 %v1827, %v2005
      %v2091 = vmul.f32 %v1828, %v2005
      %v2092 = vmul.f32 %v1829, %v2005
      %v2093 = vmul.f32 %v1830, %v2005
      %v2094 = vmul.f32 %v1831, %v2005
      %v2095 = vmul.f32 %v1832, %v2005
      %v2096 = vmul.f32 %v1833, %v2005
      %v2097 = vmul.f32 %v1834, %v2005
      %v2098 = vmul.f32 %v1835, %v2005
      %v2099 = vmul.f32 %v1836, %v2005
      %v2100 = vmul.f32 %v1837, %v2005
      %v2101 = vmul.f32 %v1838, %v2005
      %v2102 = vmul.f32 %v1839, %v2005
      %v2103 = vmul.f32 %v1840, %v2005
      %v2104 = vmul.f32 %v1841, %v2005
      %v2105 = vmul.f32 %v1842, %v2005
      %v2106 = vmul.f32 %v1843, %v2005
      %v2107 = vmul.f32 %v1844, %v2005
      %v2108 = vmul.f32 %v1845, %v2005
      %v2109 = vmul.f32 %v1846, %v2005
      %v2110 = vmul.f32 %v1847, %v2005
      %v2111 = vmul.f32 %v1848, %v2005
      %v2112 = vmul.f32 %v1849, %v2005
      %v2113 = vmul.f32 %v1850, %v2005
      %v2114 = vmul.f32 %v1851, %v2005
      %v2115 = vmul.f32 %v1852, %v2005
      %v2116 = vmul.f32 %v1853, %v2005
      %v2117 = vmul.f32 %v1854, %v2005
      %v2118 = vmul.f32 %v1855, %v2005
      %v2119 = vmul.f32 %v1856, %v2005
      %v2120 = vmul.f32 %v1857, %v2005
      %v2121 = vmul.f32 %v1858, %v2005
      %v2122 = vmul.f32 %v1859, %v2005
      %v2123 = vmul.f32 %v1860, %v2005
      %v2124 = vmul.f32 %v1861, %v2005
      %v2125 = vmul.f32 %v1862, %v2005
      %v2126 = vmul.f32 %v1863, %v2005
      %v2127 = vmul.f32 %v1864, %v2005
      %v2128 = vmul.f32 %v1865, %v2005
      %v2129 = vmul.f32 %v1866, %v2005
      %v2130 = vmul.f32 %v1867, %v2005
      %v2131 = vmul.f32 %v1868, %v2005
      %v2132 = vmul.f32 %v1869, %v2005
      %v2133 = vmul.f32 %v1870, %v2005
      %v2134 = vmul.f32 %v1871, %v2005
      %v2135 = vmul.f32 %v1872, %v2005
      %v2136 = vmul.f32 %v1873, %v2005
      %v2137 = vmul.f32 %v1874, %v2005
      %v2138 = vmul.f32 %v1875, %v2005
      %v2139 = vmul.f32 %v1876, %v2005
      %v2140 = vmul.f32 %v1877, %v2005
      %v2141 = vmul.f32 %v1878, %v2005
      %v2142 = vmul.f32 %v1879, %v2005
      %v2143 = vmul.f32 %v1880, %v2005
      %v2144 = vmul.f32 %v1881, %v2005
      %v2145 = vmul.f32 %v1882, %v2005
      %v2146 = vmul.f32 %v1883, %v2005
      %v2147 = vmul.f32 %v1884, %v2005
      %v2148 = vmul.f32 %v1885, %v2005
      %v2149 = vmul.f32 %v1886, %v2005
      %v2150 = vmul.f32 %v1887, %v2005
      %v2151 = vmul.f32 %v1888, %v2005
      %v2152 = vmul.f32 %v1889, %v2005
      %v2153 = vmul.f32 %v1890, %v2005
      %v2154 = vmul.f32 %v1891, %v2005
      %v2155 = vmul.f32 %v1892, %v2005
      %v2156 = vmul.f32 %v1893, %v2005
      %v2157 = vmul.f32 %v1894, %v2005
      %v2158 = vmul.f32 %v1895, %v2005
      %v2159 = vmul.f32 %v1896, %v2005
      %v2160 = vmul.f32 %v1897, %v2005
      %v2161 = vmul.f32 %v1898, %v2005
      %v2162 = vmul.f32 %v1899, %v2005
      %v2163 = vmul.f32 %v1900, %v2005
      %v2164 = vmul.f32 %v1901, %v2005
      %v2165 = vmul.f32 %v1902, %v2005
      %v2166 = vmul.f32 %v1903, %v2005
      %v2167 = vmul.f32 %v1904, %v2005
      %v2168 = vmul.f32 %v1905, %v2005
      %v2169 = vmul.f32 %v1906, %v2005
      %v2170 = vmul.f32 %v1907, %v2005
      %v2171 = vmul.f32 %v1908, %v2005
      %v2172 = vmul.f32 %v1909, %v2005
      %v2173 = vmul.f32 %v1910, %v2005
      %v2174 = vmul.f32 %v1911, %v2005
      %v2175 = vmul.f32 %v1912, %v2005
      %v2176 = vmul.f32 %v1913, %v2005
      %v2177 = vmul.f32 %v1914, %v2005
      %v2178 = vmul.f32 %v1915, %v2005
      %v2179 = vmul.f32 %v1916, %v2005
      %v2180 = vmul.f32 %v1917, %v2005
      %v2181 = vmul.f32 %v1918, %v2005
      %v2182 = vmul.f32 %v1919, %v2005
      %v2183 = vmul.f32 %v1920, %v2005
      %v2184 = vmul.f32 %v1921, %v2005
      %v2185 = vmul.f32 %v1922, %v2005
      %v2186 = vmul.f32 %v1923, %v2005
      %v2187 = vmul.f32 %v1924, %v2005
      %v2188 = vmul.f32 %v1925, %v2005
      %v2189 = vmul.f32 %v1926, %v2005
      %v2190 = vmul.f32 %v1927, %v2005
      %v2191 = vmul.f32 %v1928, %v2005
      %v2192 = vmul.f32 %v1929, %v2005
      %v2193 = vmul.f32 %v1930, %v2005
      %v2194 = vmul.f32 %v1931, %v2005
      %v2195 = vmul.f32 %v1932, %v2005
      %v2196 = vmul.f32 %v1933, %v2005
      %v2197 = vmul.f32 %v1934, %v2005
      %v2198 = vmul.f32 %v1935, %v2005
      %v2199 = vmul.f32 %v1936, %v2005
      %v2200 = vmul.f32 %v1937, %v2005
      %v2201 = vmul.f32 %v1938, %v2005
      %v2202 = vmul.f32 %v1939, %v2005
      %v2203 = vmul.f32 %v1940, %v2005
      %v2204 = vmul.f32 %v1941, %v2005
      %v2205 = vmul.f32 %v1942, %v2005
      %v2206 = vmul.f32 %v1943, %v2005
      %v2207 = vmul.f32 %v1944, %v2005
      %v2208 = vmul.f32 %v1945, %v2005
      %v2209 = vmul.f32 %v1946, %v2005
      %v2210 = vmul.f32 %v1947, %v2005
      %v2211 = vmul.f32 %v1948, %v2005
      %v2212 = vmul.f32 %v1949, %v2005
      %v2213 = vmul.f32 %v1950, %v2005
      %v2214 = vmul.f32 %v1951, %v2005
      %v2215 = vmul.f32 %v1952, %v2005
      %v2216 = vmul.f32 %v1953, %v2005
      %v2217 = vmul.f32 %v1954, %v2005
      %v2218 = vmul.f32 %v1955, %v2005
      %v2219 = vmul.f32 %v1956, %v2005
      %v2220 = vmul.f32 %v1957, %v2005
      %v2221 = vmul.f32 %v1958, %v2005
      %v2222 = vmul.f32 %v1959, %v2005
      %v2223 = vmul.f32 %v1960, %v2005
      %v2224 = vmul.f32 %v1961, %v2005
      %v2225 = vmul.f32 %v1962, %v2005
      %v2226 = vmul.f32 %v1963, %v2005
      %v2227 = vmul.f32 %v1964, %v2005
      %v2228 = vmul.f32 %v1965, %v2005
      %v2229 = vmul.f32 %v1966, %v2005
      %v2230 = vmul.f32 %v1967, %v2005
      %v2231 = vmul.f32 %v1968, %v2005
      %v2232 = vmul.f32 %v1969, %v2005
      %v2233 = vmul.f32 %v1970, %v2005
      %v2234 = vmul.f32 %v1971, %v2005
      %v2235 = vmul.f32 %v1972, %v2005
      %v2236 = vmul.f32 %v1973, %v2005
      %v2237 = vmul.f32 %v1974, %v2005
      %v2238 = vmul.f32 %v1975, %v2005
      %v2239 = vmul.f32 %v1976, %v2005
      %v2240 = vmul.f32 %v1977, %v2005
      %v2241 = vmul.f32 %v1978, %v2005
      %v2242 = vmul.f32 %v1979, %v2005
      %v2243 = vmul.f32 %v1980, %v2005
      %v2244 = vmul.f32 %v1981, %v2005
      %v2245 = vmul.f32 %v1982, %v2005
      %v2246 = vmul.f32 %v1983, %v2005
      %v2247 = vmul.f32 %v1984, %v2005
      %v2248 = vmul.f32 %v1985, %v2005
      %v2249 = vmul.f32 %v1986, %v2005
      %v2250 = vmul.f32 %v1987, %v2005
      %v2251 = vmul.f32 %v1988, %v2005
      %v2252 = vmul.f32 %v1989, %v2005
      %v2253 = vmul.f32 %v1990, %v2005
      %v2254 = vmul.f32 %v1991, %v2005
      %v2255 = vmul.f32 %v1992, %v2005
      %v2256 = vmul.f32 %v1993, %v2005
      %v2257 = vmul.f32 %v1994, %v2005
      %v2258 = vmul.f32 %v1995, %v2005
      %v2259 = vmul.f32 %v1996, %v2005
      %v2260 = vmul.f32 %v1997, %v2005
      %v2261 = vmul.f32 %v1998, %v2005
      %v2262 = vmul.f32 %v1999, %v2005
      %v2263 = vmul.f32 %v2007, %v2007
      %v2264 = vmul.f32 %v2008, %v2008
      %v2265 = vmul.f32 %v2009, %v2009
      %v2266 = vmul.f32 %v2010, %v2010
      %v2267 = vmul.f32 %v2011, %v2011
      %v2268 = vmul.f32 %v2012, %v2012
      %v2269 = vmul.f32 %v2013, %v2013
      %v2270 = vmul.f32 %v2014, %v2014
      %v2271 = vmul.f32 %v2015, %v2015
      %v2272 = vmul.f32 %v2016, %v2016
      %v2273 = vmul.f32 %v2017, %v2017
      %v2274 = vmul.f32 %v2018, %v2018
      %v2275 = vmul.f32 %v2019, %v2019
      %v2276 = vmul.f32 %v2020, %v2020
      %v2277 = vmul.f32 %v2021, %v2021
      %v2278 = vmul.f32 %v2022, %v2022
      %v2279 = vmul.f32 %v2023, %v2023
      %v2280 = vmul.f32 %v2024, %v2024
      %v2281 = vmul.f32 %v2025, %v2025
      %v2282 = vmul.f32 %v2026, %v2026
      %v2283 = vmul.f32 %v2027, %v2027
      %v2284 = vmul.f32 %v2028, %v2028
      %v2285 = vmul.f32 %v2029, %v2029
      %v2286 = vmul.f32 %v2030, %v2030
      %v2287 = vmul.f32 %v2031, %v2031
      %v2288 = vmul.f32 %v2032, %v2032
      %v2289 = vmul.f32 %v2033, %v2033
      %v2290 = vmul.f32 %v2034, %v2034
      %v2291 = vmul.f32 %v2035, %v2035
      %v2292 = vmul.f32 %v2036, %v2036
      %v2293 = vmul.f32 %v2037, %v2037
      %v2294 = vmul.f32 %v2038, %v2038
      %v2295 = vmul.f32 %v2039, %v2039
      %v2296 = vmul.f32 %v2040, %v2040
      %v2297 = vmul.f32 %v2041, %v2041
      %v2298 = vmul.f32 %v2042, %v2042
      %v2299 = vmul.f32 %v2043, %v2043
      %v2300 = vmul.f32 %v2044, %v2044
      %v2301 = vmul.f32 %v2045, %v2045
      %v2302 = vmul.f32 %v2046, %v2046
      %v2303 = vmul.f32 %v2047, %v2047
      %v2304 = vmul.f32 %v2048, %v2048
      %v2305 = vmul.f32 %v2049, %v2049
      %v2306 = vmul.f32 %v2050, %v2050
      %v2307 = vmul.f32 %v2051, %v2051
      %v2308 = vmul.f32 %v2052, %v2052
      %v2309 = vmul.f32 %v2053, %v2053
      %v2310 = vmul.f32 %v2054, %v2054
      %v2311 = vmul.f32 %v2055, %v2055
      %v2312 = vmul.f32 %v2056, %v2056
      %v2313 = vmul.f32 %v2057, %v2057
      %v2314 = vmul.f32 %v2058, %v2058
      %v2315 = vmul.f32 %v2059, %v2059
      %v2316 = vmul.f32 %v2060, %v2060
      %v2317 = vmul.f32 %v2061, %v2061
      %v2318 = vmul.f32 %v2062, %v2062
      %v2319 = vmul.f32 %v2063, %v2063
      %v2320 = vmul.f32 %v2064, %v2064
      %v2321 = vmul.f32 %v2065, %v2065
      %v2322 = vmul.f32 %v2066, %v2066
      %v2323 = vmul.f32 %v2067, %v2067
      %v2324 = vmul.f32 %v2068, %v2068
      %v2325 = vmul.f32 %v2069, %v2069
      %v2326 = vmul.f32 %v2070, %v2070
      %v2327 = vmul.f32 %v2071, %v2071
      %v2328 = vmul.f32 %v2072, %v2072
      %v2329 = vmul.f32 %v2073, %v2073
      %v2330 = vmul.f32 %v2074, %v2074
      %v2331 = vmul.f32 %v2075, %v2075
      %v2332 = vmul.f32 %v2076, %v2076
      %v2333 = vmul.f32 %v2077, %v2077
      %v2334 = vmul.f32 %v2078, %v2078
      %v2335 = vmul.f32 %v2079, %v2079
      %v2336 = vmul.f32 %v2080, %v2080
      %v2337 = vmul.f32 %v2081, %v2081
      %v2338 = vmul.f32 %v2082, %v2082
      %v2339 = vmul.f32 %v2083, %v2083
      %v2340 = vmul.f32 %v2084, %v2084
      %v2341 = vmul.f32 %v2085, %v2085
      %v2342 = vmul.f32 %v2086, %v2086
      %v2343 = vmul.f32 %v2087, %v2087
      %v2344 = vmul.f32 %v2088, %v2088
      %v2345 = vmul.f32 %v2089, %v2089
      %v2346 = vmul.f32 %v2090, %v2090
      %v2347 = vmul.f32 %v2091, %v2091
      %v2348 = vmul.f32 %v2092, %v2092
      %v2349 = vmul.f32 %v2093, %v2093
      %v2350 = vmul.f32 %v2094, %v2094
      %v2351 = vmul.f32 %v2095, %v2095
      %v2352 = vmul.f32 %v2096, %v2096
      %v2353 = vmul.f32 %v2097, %v2097
      %v2354 = vmul.f32 %v2098, %v2098
      %v2355 = vmul.f32 %v2099, %v2099
      %v2356 = vmul.f32 %v2100, %v2100
      %v2357 = vmul.f32 %v2101, %v2101
      %v2358 = vmul.f32 %v2102, %v2102
      %v2359 = vmul.f32 %v2103, %v2103
      %v2360 = vmul.f32 %v2104, %v2104
      %v2361 = vmul.f32 %v2105, %v2105
      %v2362 = vmul.f32 %v2106, %v2106
      %v2363 = vmul.f32 %v2107, %v2107
      %v2364 = vmul.f32 %v2108, %v2108
      %v2365 = vmul.f32 %v2109, %v2109
      %v2366 = vmul.f32 %v2110, %v2110
      %v2367 = vmul.f32 %v2111, %v2111
      %v2368 = vmul.f32 %v2112, %v2112
      %v2369 = vmul.f32 %v2113, %v2113
      %v2370 = vmul.f32 %v2114, %v2114
      %v2371 = vmul.f32 %v2115, %v2115
      %v2372 = vmul.f32 %v2116, %v2116
      %v2373 = vmul.f32 %v2117, %v2117
      %v2374 = vmul.f32 %v2118, %v2118
      %v2375 = vmul.f32 %v2119, %v2119
      %v2376 = vmul.f32 %v2120, %v2120
      %v2377 = vmul.f32 %v2121, %v2121
      %v2378 = vmul.f32 %v2122, %v2122
      %v2379 = vmul.f32 %v2123, %v2123
      %v2380 = vmul.f32 %v2124, %v2124
      %v2381 = vmul.f32 %v2125, %v2125
      %v2382 = vmul.f32 %v2126, %v2126
      %v2383 = vmul.f32 %v2127, %v2127
      %v2384 = vmul.f32 %v2128, %v2128
      %v2385 = vmul.f32 %v2129, %v2129
      %v2386 = vmul.f32 %v2130, %v2130
      %v2387 = vmul.f32 %v2131, %v2131
      %v2388 = vmul.f32 %v2132, %v2132
      %v2389 = vmul.f32 %v2133, %v2133
      %v2390 = vmul.f32 %v2134, %v2134
      %v2391 = vmul.f32 %v2135, %v2135
      %v2392 = vmul.f32 %v2136, %v2136
      %v2393 = vmul.f32 %v2137, %v2137
      %v2394 = vmul.f32 %v2138, %v2138
      %v2395 = vmul.f32 %v2139, %v2139
      %v2396 = vmul.f32 %v2140, %v2140
      %v2397 = vmul.f32 %v2141, %v2141
      %v2398 = vmul.f32 %v2142, %v2142
      %v2399 = vmul.f32 %v2143, %v2143
      %v2400 = vmul.f32 %v2144, %v2144
      %v2401 = vmul.f32 %v2145, %v2145
      %v2402 = vmul.f32 %v2146, %v2146
      %v2403 = vmul.f32 %v2147, %v2147
      %v2404 = vmul.f32 %v2148, %v2148
      %v2405 = vmul.f32 %v2149, %v2149
      %v2406 = vmul.f32 %v2150, %v2150
      %v2407 = vmul.f32 %v2151, %v2151
      %v2408 = vmul.f32 %v2152, %v2152
      %v2409 = vmul.f32 %v2153, %v2153
      %v2410 = vmul.f32 %v2154, %v2154
      %v2411 = vmul.f32 %v2155, %v2155
      %v2412 = vmul.f32 %v2156, %v2156
      %v2413 = vmul.f32 %v2157, %v2157
      %v2414 = vmul.f32 %v2158, %v2158
      %v2415 = vmul.f32 %v2159, %v2159
      %v2416 = vmul.f32 %v2160, %v2160
      %v2417 = vmul.f32 %v2161, %v2161
      %v2418 = vmul.f32 %v2162, %v2162
      %v2419 = vmul.f32 %v2163, %v2163
      %v2420 = vmul.f32 %v2164, %v2164
      %v2421 = vmul.f32 %v2165, %v2165
      %v2422 = vmul.f32 %v2166, %v2166
      %v2423 = vmul.f32 %v2167, %v2167
      %v2424 = vmul.f32 %v2168, %v2168
      %v2425 = vmul.f32 %v2169, %v2169
      %v2426 = vmul.f32 %v2170, %v2170
      %v2427 = vmul.f32 %v2171, %v2171
      %v2428 = vmul.f32 %v2172, %v2172
      %v2429 = vmul.f32 %v2173, %v2173
      %v2430 = vmul.f32 %v2174, %v2174
      %v2431 = vmul.f32 %v2175, %v2175
      %v2432 = vmul.f32 %v2176, %v2176
      %v2433 = vmul.f32 %v2177, %v2177
      %v2434 = vmul.f32 %v2178, %v2178
      %v2435 = vmul.f32 %v2179, %v2179
      %v2436 = vmul.f32 %v2180, %v2180
      %v2437 = vmul.f32 %v2181, %v2181
      %v2438 = vmul.f32 %v2182, %v2182
      %v2439 = vmul.f32 %v2183, %v2183
      %v2440 = vmul.f32 %v2184, %v2184
      %v2441 = vmul.f32 %v2185, %v2185
      %v2442 = vmul.f32 %v2186, %v2186
      %v2443 = vmul.f32 %v2187, %v2187
      %v2444 = vmul.f32 %v2188, %v2188
      %v2445 = vmul.f32 %v2189, %v2189
      %v2446 = vmul.f32 %v2190, %v2190
      %v2447 = vmul.f32 %v2191, %v2191
      %v2448 = vmul.f32 %v2192, %v2192
      %v2449 = vmul.f32 %v2193, %v2193
      %v2450 = vmul.f32 %v2194, %v2194
      %v2451 = vmul.f32 %v2195, %v2195
      %v2452 = vmul.f32 %v2196, %v2196
      %v2453 = vmul.f32 %v2197, %v2197
      %v2454 = vmul.f32 %v2198, %v2198
      %v2455 = vmul.f32 %v2199, %v2199
      %v2456 = vmul.f32 %v2200, %v2200
      %v2457 = vmul.f32 %v2201, %v2201
      %v2458 = vmul.f32 %v2202, %v2202
      %v2459 = vmul.f32 %v2203, %v2203
      %v2460 = vmul.f32 %v2204, %v2204
      %v2461 = vmul.f32 %v2205, %v2205
      %v2462 = vmul.f32 %v2206, %v2206
      %v2463 = vmul.f32 %v2207, %v2207
      %v2464 = vmul.f32 %v2208, %v2208
      %v2465 = vmul.f32 %v2209, %v2209
      %v2466 = vmul.f32 %v2210, %v2210
      %v2467 = vmul.f32 %v2211, %v2211
      %v2468 = vmul.f32 %v2212, %v2212
      %v2469 = vmul.f32 %v2213, %v2213
      %v2470 = vmul.f32 %v2214, %v2214
      %v2471 = vmul.f32 %v2215, %v2215
      %v2472 = vmul.f32 %v2216, %v2216
      %v2473 = vmul.f32 %v2217, %v2217
      %v2474 = vmul.f32 %v2218, %v2218
      %v2475 = vmul.f32 %v2219, %v2219
      %v2476 = vmul.f32 %v2220, %v2220
      %v2477 = vmul.f32 %v2221, %v2221
      %v2478 = vmul.f32 %v2222, %v2222
      %v2479 = vmul.f32 %v2223, %v2223
      %v2480 = vmul.f32 %v2224, %v2224
      %v2481 = vmul.f32 %v2225, %v2225
      %v2482 = vmul.f32 %v2226, %v2226
      %v2483 = vmul.f32 %v2227, %v2227
      %v2484 = vmul.f32 %v2228, %v2228
      %v2485 = vmul.f32 %v2229, %v2229
      %v2486 = vmul.f32 %v2230, %v2230
      %v2487 = vmul.f32 %v2231, %v2231
      %v2488 = vmul.f32 %v2232, %v2232
      %v2489 = vmul.f32 %v2233, %v2233
      %v2490 = vmul.f32 %v2234, %v2234
      %v2491 = vmul.f32 %v2235, %v2235
      %v2492 = vmul.f32 %v2236, %v2236
      %v2493 = vmul.f32 %v2237, %v2237
      %v2494 = vmul.f32 %v2238, %v2238
      %v2495 = vmul.f32 %v2239, %v2239
      %v2496 = vmul.f32 %v2240, %v2240
      %v2497 = vmul.f32 %v2241, %v2241
      %v2498 = vmul.f32 %v2242, %v2242
      %v2499 = vmul.f32 %v2243, %v2243
      %v2500 = vmul.f32 %v2244, %v2244
      %v2501 = vmul.f32 %v2245, %v2245
      %v2502 = vmul.f32 %v2246, %v2246
      %v2503 = vmul.f32 %v2247, %v2247
      %v2504 = vmul.f32 %v2248, %v2248
      %v2505 = vmul.f32 %v2249, %v2249
      %v2506 = vmul.f32 %v2250, %v2250
      %v2507 = vmul.f32 %v2251, %v2251
      %v2508 = vmul.f32 %v2252, %v2252
      %v2509 = vmul.f32 %v2253, %v2253
      %v2510 = vmul.f32 %v2254, %v2254
      %v2511 = vmul.f32 %v2255, %v2255
      %v2512 = vmul.f32 %v2256, %v2256
      %v2513 = vmul.f32 %v2257, %v2257
      %v2514 = vmul.f32 %v2258, %v2258
      %v2515 = vmul.f32 %v2259, %v2259
      %v2516 = vmul.f32 %v2260, %v2260
      %v2517 = vmul.f32 %v2261, %v2261
      %v2518 = vmul.f32 %v2262, %v2262
      %v2519 = vmul.f32 %v2263, -0.5
      %v2520 = vmul.f32 %v2264, -0.5
      %v2521 = vmul.f32 %v2265, -0.5
      %v2522 = vmul.f32 %v2266, -0.5
      %v2523 = vmul.f32 %v2267, -0.5
      %v2524 = vmul.f32 %v2268, -0.5
      %v2525 = vmul.f32 %v2269, -0.5
      %v2526 = vmul.f32 %v2270, -0.5
      %v2527 = vmul.f32 %v2271, -0.5
      %v2528 = vmul.f32 %v2272, -0.5
      %v2529 = vmul.f32 %v2273, -0.5
      %v2530 = vmul.f32 %v2274, -0.5
      %v2531 = vmul.f32 %v2275, -0.5
      %v2532 = vmul.f32 %v2276, -0.5
      %v2533 = vmul.f32 %v2277, -0.5
      %v2534 = vmul.f32 %v2278, -0.5
      %v2535 = vmul.f32 %v2279, -0.5
      %v2536 = vmul.f32 %v2280, -0.5
      %v2537 = vmul.f32 %v2281, -0.5
      %v2538 = vmul.f32 %v2282, -0.5
      %v2539 = vmul.f32 %v2283, -0.5
      %v2540 = vmul.f32 %v2284, -0.5
      %v2541 = vmul.f32 %v2285, -0.5
      %v2542 = vmul.f32 %v2286, -0.5
      %v2543 = vmul.f32 %v2287, -0.5
      %v2544 = vmul.f32 %v2288, -0.5
      %v2545 = vmul.f32 %v2289, -0.5
      %v2546 = vmul.f32 %v2290, -0.5
      %v2547 = vmul.f32 %v2291, -0.5
      %v2548 = vmul.f32 %v2292, -0.5
      %v2549 = vmul.f32 %v2293, -0.5
      %v2550 = vmul.f32 %v2294, -0.5
      %v2551 = vmul.f32 %v2295, -0.5
      %v2552 = vmul.f32 %v2296, -0.5
      %v2553 = vmul.f32 %v2297, -0.5
      %v2554 = vmul.f32 %v2298, -0.5
      %v2555 = vmul.f32 %v2299, -0.5
      %v2556 = vmul.f32 %v2300, -0.5
      %v2557 = vmul.f32 %v2301, -0.5
      %v2558 = vmul.f32 %v2302, -0.5
      %v2559 = vmul.f32 %v2303, -0.5
      %v2560 = vmul.f32 %v2304, -0.5
      %v2561 = vmul.f32 %v2305, -0.5
      %v2562 = vmul.f32 %v2306, -0.5
      %v2563 = vmul.f32 %v2307, -0.5
      %v2564 = vmul.f32 %v2308, -0.5
      %v2565 = vmul.f32 %v2309, -0.5
      %v2566 = vmul.f32 %v2310, -0.5
      %v2567 = vmul.f32 %v2311, -0.5
      %v2568 = vmul.f32 %v2312, -0.5
      %v2569 = vmul.f32 %v2313, -0.5
      %v2570 = vmul.f32 %v2314, -0.5
      %v2571 = vmul.f32 %v2315, -0.5
      %v2572 = vmul.f32 %v2316, -0.5
      %v2573 = vmul.f32 %v2317, -0.5
      %v2574 = vmul.f32 %v2318, -0.5
      %v2575 = vmul.f32 %v2319, -0.5
      %v2576 = vmul.f32 %v2320, -0.5
      %v2577 = vmul.f32 %v2321, -0.5
      %v2578 = vmul.f32 %v2322, -0.5
      %v2579 = vmul.f32 %v2323, -0.5
      %v2580 = vmul.f32 %v2324, -0.5
      %v2581 = vmul.f32 %v2325, -0.5
      %v2582 = vmul.f32 %v2326, -0.5
      %v2583 = vmul.f32 %v2327, -0.5
      %v2584 = vmul.f32 %v2328, -0.5
      %v2585 = vmul.f32 %v2329, -0.5
      %v2586 = vmul.f32 %v2330, -0.5
      %v2587 = vmul.f32 %v2331, -0.5
      %v2588 = vmul.f32 %v2332, -0.5
      %v2589 = vmul.f32 %v2333, -0.5
      %v2590 = vmul.f32 %v2334, -0.5
      %v2591 = vmul.f32 %v2335, -0.5
      %v2592 = vmul.f32 %v2336, -0.5
      %v2593 = vmul.f32 %v2337, -0.5
      %v2594 = vmul.f32 %v2338, -0.5
      %v2595 = vmul.f32 %v2339, -0.5
      %v2596 = vmul.f32 %v2340, -0.5
      %v2597 = vmul.f32 %v2341, -0.5
      %v2598 = vmul.f32 %v2342, -0.5
      %v2599 = vmul.f32 %v2343, -0.5
      %v2600 = vmul.f32 %v2344, -0.5
      %v2601 = vmul.f32 %v2345, -0.5
      %v2602 = vmul.f32 %v2346, -0.5
      %v2603 = vmul.f32 %v2347, -0.5
      %v2604 = vmul.f32 %v2348, -0.5
      %v2605 = vmul.f32 %v2349, -0.5
      %v2606 = vmul.f32 %v2350, -0.5
      %v2607 = vmul.f32 %v2351, -0.5
      %v2608 = vmul.f32 %v2352, -0.5
      %v2609 = vmul.f32 %v2353, -0.5
      %v2610 = vmul.f32 %v2354, -0.5
      %v2611 = vmul.f32 %v2355, -0.5
      %v2612 = vmul.f32 %v2356, -0.5
      %v2613 = vmul.f32 %v2357, -0.5
      %v2614 = vmul.f32 %v2358, -0.5
      %v2615 = vmul.f32 %v2359, -0.5
      %v2616 = vmul.f32 %v2360, -0.5
      %v2617 = vmul.f32 %v2361, -0.5
      %v2618 = vmul.f32 %v2362, -0.5
      %v2619 = vmul.f32 %v2363, -0.5
      %v2620 = vmul.f32 %v2364, -0.5
      %v2621 = vmul.f32 %v2365, -0.5
      %v2622 = vmul.f32 %v2366, -0.5
      %v2623 = vmul.f32 %v2367, -0.5
      %v2624 = vmul.f32 %v2368, -0.5
      %v2625 = vmul.f32 %v2369, -0.5
      %v2626 = vmul.f32 %v2370, -0.5
      %v2627 = vmul.f32 %v2371, -0.5
      %v2628 = vmul.f32 %v2372, -0.5
      %v2629 = vmul.f32 %v2373, -0.5
      %v2630 = vmul.f32 %v2374, -0.5
      %v2631 = vmul.f32 %v2375, -0.5
      %v2632 = vmul.f32 %v2376, -0.5
      %v2633 = vmul.f32 %v2377, -0.5
      %v2634 = vmul.f32 %v2378, -0.5
      %v2635 = vmul.f32 %v2379, -0.5
      %v2636 = vmul.f32 %v2380, -0.5
      %v2637 = vmul.f32 %v2381, -0.5
      %v2638 = vmul.f32 %v2382, -0.5
      %v2639 = vmul.f32 %v2383, -0.5
      %v2640 = vmul.f32 %v2384, -0.5
      %v2641 = vmul.f32 %v2385, -0.5
      %v2642 = vmul.f32 %v2386, -0.5
      %v2643 = vmul.f32 %v2387, -0.5
      %v2644 = vmul.f32 %v2388, -0.5
      %v2645 = vmul.f32 %v2389, -0.5
      %v2646 = vmul.f32 %v2390, -0.5
      %v2647 = vmul.f32 %v2391, -0.5
      %v2648 = vmul.f32 %v2392, -0.5
      %v2649 = vmul.f32 %v2393, -0.5
      %v2650 = vmul.f32 %v2394, -0.5
      %v2651 = vmul.f32 %v2395, -0.5
      %v2652 = vmul.f32 %v2396, -0.5
      %v2653 = vmul.f32 %v2397, -0.5
      %v2654 = vmul.f32 %v2398, -0.5
      %v2655 = vmul.f32 %v2399, -0.5
      %v2656 = vmul.f32 %v2400, -0.5
      %v2657 = vmul.f32 %v2401, -0.5
      %v2658 = vmul.f32 %v2402, -0.5
      %v2659 = vmul.f32 %v2403, -0.5
      %v2660 = vmul.f32 %v2404, -0.5
      %v2661 = vmul.f32 %v2405, -0.5
      %v2662 = vmul.f32 %v2406, -0.5
      %v2663 = vmul.f32 %v2407, -0.5
      %v2664 = vmul.f32 %v2408, -0.5
      %v2665 = vmul.f32 %v2409, -0.5
      %v2666 = vmul.f32 %v2410, -0.5
      %v2667 = vmul.f32 %v2411, -0.5
      %v2668 = vmul.f32 %v2412, -0.5
      %v2669 = vmul.f32 %v2413, -0.5
      %v2670 = vmul.f32 %v2414, -0.5
      %v2671 = vmul.f32 %v2415, -0.5
      %v2672 = vmul.f32 %v2416, -0.5
      %v2673 = vmul.f32 %v2417, -0.5
      %v2674 = vmul.f32 %v2418, -0.5
      %v2675 = vmul.f32 %v2419, -0.5
      %v2676 = vmul.f32 %v2420, -0.5
      %v2677 = vmul.f32 %v2421, -0.5
      %v2678 = vmul.f32 %v2422, -0.5
      %v2679 = vmul.f32 %v2423, -0.5
      %v2680 = vmul.f32 %v2424, -0.5
      %v2681 = vmul.f32 %v2425, -0.5
      %v2682 = vmul.f32 %v2426, -0.5
      %v2683 = vmul.f32 %v2427, -0.5
      %v2684 = vmul.f32 %v2428, -0.5
      %v2685 = vmul.f32 %v2429, -0.5
      %v2686 = vmul.f32 %v2430, -0.5
      %v2687 = vmul.f32 %v2431, -0.5
      %v2688 = vmul.f32 %v2432, -0.5
      %v2689 = vmul.f32 %v2433, -0.5
      %v2690 = vmul.f32 %v2434, -0.5
      %v2691 = vmul.f32 %v2435, -0.5
      %v2692 = vmul.f32 %v2436, -0.5
      %v2693 = vmul.f32 %v2437, -0.5
      %v2694 = vmul.f32 %v2438, -0.5
      %v2695 = vmul.f32 %v2439, -0.5
      %v2696 = vmul.f32 %v2440, -0.5
      %v2697 = vmul.f32 %v2441, -0.5
      %v2698 = vmul.f32 %v2442, -0.5
      %v2699 = vmul.f32 %v2443, -0.5
      %v2700 = vmul.f32 %v2444, -0.5
      %v2701 = vmul.f32 %v2445, -0.5
      %v2702 = vmul.f32 %v2446, -0.5
      %v2703 = vmul.f32 %v2447, -0.5
      %v2704 = vmul.f32 %v2448, -0.5
      %v2705 = vmul.f32 %v2449, -0.5
      %v2706 = vmul.f32 %v2450, -0.5
      %v2707 = vmul.f32 %v2451, -0.5
      %v2708 = vmul.f32 %v2452, -0.5
      %v2709 = vmul.f32 %v2453, -0.5
      %v2710 = vmul.f32 %v2454, -0.5
      %v2711 = vmul.f32 %v2455, -0.5
      %v2712 = vmul.f32 %v2456, -0.5
      %v2713 = vmul.f32 %v2457, -0.5
      %v2714 = vmul.f32 %v2458, -0.5
      %v2715 = vmul.f32 %v2459, -0.5
      %v2716 = vmul.f32 %v2460, -0.5
      %v2717 = vmul.f32 %v2461, -0.5
      %v2718 = vmul.f32 %v2462, -0.5
      %v2719 = vmul.f32 %v2463, -0.5
      %v2720 = vmul.f32 %v2464, -0.5
      %v2721 = vmul.f32 %v2465, -0.5
      %v2722 = vmul.f32 %v2466, -0.5
      %v2723 = vmul.f32 %v2467, -0.5
      %v2724 = vmul.f32 %v2468, -0.5
      %v2725 = vmul.f32 %v2469, -0.5
      %v2726 = vmul.f32 %v2470, -0.5
      %v2727 = vmul.f32 %v2471, -0.5
      %v2728 = vmul.f32 %v2472, -0.5
      %v2729 = vmul.f32 %v2473, -0.5
      %v2730 = vmul.f32 %v2474, -0.5
      %v2731 = vmul.f32 %v2475, -0.5
      %v2732 = vmul.f32 %v2476, -0.5
      %v2733 = vmul.f32 %v2477, -0.5
      %v2734 = vmul.f32 %v2478, -0.5
      %v2735 = vmul.f32 %v2479, -0.5
      %v2736 = vmul.f32 %v2480, -0.5
      %v2737 = vmul.f32 %v2481, -0.5
      %v2738 = vmul.f32 %v2482, -0.5
      %v2739 = vmul.f32 %v2483, -0.5
      %v2740 = vmul.f32 %v2484, -0.5
      %v2741 = vmul.f32 %v2485, -0.5
      %v2742 = vmul.f32 %v2486, -0.5
      %v2743 = vmul.f32 %v2487, -0.5
      %v2744 = vmul.f32 %v2488, -0.5
      %v2745 = vmul.f32 %v2489, -0.5
      %v2746 = vmul.f32 %v2490, -0.5
      %v2747 = vmul.f32 %v2491, -0.5
      %v2748 = vmul.f32 %v2492, -0.5
      %v2749 = vmul.f32 %v2493, -0.5
      %v2750 = vmul.f32 %v2494, -0.5
      %v2751 = vmul.f32 %v2495, -0.5
      %v2752 = vmul.f32 %v2496, -0.5
      %v2753 = vmul.f32 %v2497, -0.5
      %v2754 = vmul.f32 %v2498, -0.5
      %v2755 = vmul.f32 %v2499, -0.5
      %v2756 = vmul.f32 %v2500, -0.5
      %v2757 = vmul.f32 %v2501, -0.5
      %v2758 = vmul.f32 %v2502, -0.5
      %v2759 = vmul.f32 %v2503, -0.5
      %v2760 = vmul.f32 %v2504, -0.5
      %v2761 = vmul.f32 %v2505, -0.5
      %v2762 = vmul.f32 %v2506, -0.5
      %v2763 = vmul.f32 %v2507, -0.5
      %v2764 = vmul.f32 %v2508, -0.5
      %v2765 = vmul.f32 %v2509, -0.5
      %v2766 = vmul.f32 %v2510, -0.5
      %v2767 = vmul.f32 %v2511, -0.5
      %v2768 = vmul.f32 %v2512, -0.5
      %v2769 = vmul.f32 %v2513, -0.5
      %v2770 = vmul.f32 %v2514, -0.5
      %v2771 = vmul.f32 %v2515, -0.5
      %v2772 = vmul.f32 %v2516, -0.5
      %v2773 = vmul.f32 %v2517, -0.5
      %v2774 = vmul.f32 %v2518, -0.5
      %v2775 = vmul.f32 %v2519, 1.442695
      %v2776 = vpow.pop %v2775
      %v2777 = vmul.f32 %v2520, 1.442695
      %v2778 = vpow.pop %v2777
      %v2779 = vmul.f32 %v2521, 1.442695
      %v2780 = vpow.pop %v2779
      %v2781 = vmul.f32 %v2522, 1.442695
      %v2782 = vpow.pop %v2781
      %v2783 = vmul.f32 %v2523, 1.442695
      %v2784 = vpow.pop %v2783
      %v2785 = vmul.f32 %v2524, 1.442695
      %v2786 = vpow.pop %v2785
      %v2787 = vmul.f32 %v2525, 1.442695
      %v2788 = vpow.pop %v2787
      %v2789 = vmul.f32 %v2526, 1.442695
      %v2790 = vpow.pop %v2789
      %v2791 = vmul.f32 %v2527, 1.442695
      %v2792 = vpow.pop %v2791
      %v2793 = vmul.f32 %v2528, 1.442695
      %v2794 = vpow.pop %v2793
      %v2795 = vmul.f32 %v2529, 1.442695
      %v2796 = vpow.pop %v2795
      %v2797 = vmul.f32 %v2530, 1.442695
      %v2798 = vpow.pop %v2797
      %v2799 = vmul.f32 %v2531, 1.442695
      %v2800 = vpow.pop %v2799
      %v2801 = vmul.f32 %v2532, 1.442695
      %v2802 = vpow.pop %v2801
      %v2803 = vmul.f32 %v2533, 1.442695
      %v2804 = vpow.pop %v2803
      %v2805 = vmul.f32 %v2534, 1.442695
      %v2806 = vpow.pop %v2805
      %v2807 = vmul.f32 %v2535, 1.442695
      %v2808 = vpow.pop %v2807
      %v2809 = vmul.f32 %v2536, 1.442695
      %v2810 = vpow.pop %v2809
      %v2811 = vmul.f32 %v2537, 1.442695
      %v2812 = vpow.pop %v2811
      %v2813 = vmul.f32 %v2538, 1.442695
      %v2814 = vpow.pop %v2813
      %v2815 = vmul.f32 %v2539, 1.442695
      %v2816 = vpow.pop %v2815
      %v2817 = vmul.f32 %v2540, 1.442695
      %v2818 = vpow.pop %v2817
      %v2819 = vmul.f32 %v2541, 1.442695
      %v2820 = vpow.pop %v2819
      %v2821 = vmul.f32 %v2542, 1.442695
      %v2822 = vpow.pop %v2821
      %v2823 = vmul.f32 %v2543, 1.442695
      %v2824 = vpow.pop %v2823
      %v2825 = vmul.f32 %v2544, 1.442695
      %v2826 = vpow.pop %v2825
      %v2827 = vmul.f32 %v2545, 1.442695
      %v2828 = vpow.pop %v2827
      %v2829 = vmul.f32 %v2546, 1.442695
      %v2830 = vpow.pop %v2829
      %v2831 = vmul.f32 %v2547, 1.442695
      %v2832 = vpow.pop %v2831
      %v2833 = vmul.f32 %v2548, 1.442695
      %v2834 = vpow.pop %v2833
      %v2835 = vmul.f32 %v2549, 1.442695
      %v2836 = vpow.pop %v2835
      %v2837 = vmul.f32 %v2550, 1.442695
      %v2838 = vpow.pop %v2837
      %v2839 = vmul.f32 %v2551, 1.442695
      %v2840 = vpow.pop %v2839
      %v2841 = vmul.f32 %v2552, 1.442695
      %v2842 = vpow.pop %v2841
      %v2843 = vmul.f32 %v2553, 1.442695
      %v2844 = vpow.pop %v2843
      %v2845 = vmul.f32 %v2554, 1.442695
      %v2846 = vpow.pop %v2845
      %v2847 = vmul.f32 %v2555, 1.442695
      %v2848 = vpow.pop %v2847
      %v2849 = vmul.f32 %v2556, 1.442695
      %v2850 = vpow.pop %v2849
      %v2851 = vmul.f32 %v2557, 1.442695
      %v2852 = vpow.pop %v2851
      %v2853 = vmul.f32 %v2558, 1.442695
      %v2854 = vpow.pop %v2853
      %v2855 = vmul.f32 %v2559, 1.442695
      %v2856 = vpow.pop %v2855
      %v2857 = vmul.f32 %v2560, 1.442695
      %v2858 = vpow.pop %v2857
      %v2859 = vmul.f32 %v2561, 1.442695
      %v2860 = vpow.pop %v2859
      %v2861 = vmul.f32 %v2562, 1.442695
      %v2862 = vpow.pop %v2861
      %v2863 = vmul.f32 %v2563, 1.442695
      %v2864 = vpow.pop %v2863
      %v2865 = vmul.f32 %v2564, 1.442695
      %v2866 = vpow.pop %v2865
      %v2867 = vmul.f32 %v2565, 1.442695
      %v2868 = vpow.pop %v2867
      %v2869 = vmul.f32 %v2566, 1.442695
      %v2870 = vpow.pop %v2869
      %v2871 = vmul.f32 %v2567, 1.442695
      %v2872 = vpow.pop %v2871
      %v2873 = vmul.f32 %v2568, 1.442695
      %v2874 = vpow.pop %v2873
      %v2875 = vmul.f32 %v2569, 1.442695
      %v2876 = vpow.pop %v2875
      %v2877 = vmul.f32 %v2570, 1.442695
      %v2878 = vpow.pop %v2877
      %v2879 = vmul.f32 %v2571, 1.442695
      %v2880 = vpow.pop %v2879
      %v2881 = vmul.f32 %v2572, 1.442695
      %v2882 = vpow.pop %v2881
      %v2883 = vmul.f32 %v2573, 1.442695
      %v2884 = vpow.pop %v2883
      %v2885 = vmul.f32 %v2574, 1.442695
      %v2886 = vpow.pop %v2885
      %v2887 = vmul.f32 %v2575, 1.442695
      %v2888 = vpow.pop %v2887
      %v2889 = vmul.f32 %v2576, 1.442695
      %v2890 = vpow.pop %v2889
      %v2891 = vmul.f32 %v2577, 1.442695
      %v2892 = vpow.pop %v2891
      %v2893 = vmul.f32 %v2578, 1.442695
      %v2894 = vpow.pop %v2893
      %v2895 = vmul.f32 %v2579, 1.442695
      %v2896 = vpow.pop %v2895
      %v2897 = vmul.f32 %v2580, 1.442695
      %v2898 = vpow.pop %v2897
      %v2899 = vmul.f32 %v2581, 1.442695
      %v2900 = vpow.pop %v2899
      %v2901 = vmul.f32 %v2582, 1.442695
      %v2902 = vpow.pop %v2901
      %v2903 = vmul.f32 %v2583, 1.442695
      %v2904 = vpow.pop %v2903
      %v2905 = vmul.f32 %v2584, 1.442695
      %v2906 = vpow.pop %v2905
      %v2907 = vmul.f32 %v2585, 1.442695
      %v2908 = vpow.pop %v2907
      %v2909 = vmul.f32 %v2586, 1.442695
      %v2910 = vpow.pop %v2909
      %v2911 = vmul.f32 %v2587, 1.442695
      %v2912 = vpow.pop %v2911
      %v2913 = vmul.f32 %v2588, 1.442695
      %v2914 = vpow.pop %v2913
      %v2915 = vmul.f32 %v2589, 1.442695
      %v2916 = vpow.pop %v2915
      %v2917 = vmul.f32 %v2590, 1.442695
      %v2918 = vpow.pop %v2917
      %v2919 = vmul.f32 %v2591, 1.442695
      %v2920 = vpow.pop %v2919
      %v2921 = vmul.f32 %v2592, 1.442695
      %v2922 = vpow.pop %v2921
      %v2923 = vmul.f32 %v2593, 1.442695
      %v2924 = vpow.pop %v2923
      %v2925 = vmul.f32 %v2594, 1.442695
      %v2926 = vpow.pop %v2925
      %v2927 = vmul.f32 %v2595, 1.442695
      %v2928 = vpow.pop %v2927
      %v2929 = vmul.f32 %v2596, 1.442695
      %v2930 = vpow.pop %v2929
      %v2931 = vmul.f32 %v2597, 1.442695
      %v2932 = vpow.pop %v2931
      %v2933 = vmul.f32 %v2598, 1.442695
      %v2934 = vpow.pop %v2933
      %v2935 = vmul.f32 %v2599, 1.442695
      %v2936 = vpow.pop %v2935
      %v2937 = vmul.f32 %v2600, 1.442695
      %v2938 = vpow.pop %v2937
      %v2939 = vmul.f32 %v2601, 1.442695
      %v2940 = vpow.pop %v2939
      %v2941 = vmul.f32 %v2602, 1.442695
      %v2942 = vpow.pop %v2941
      %v2943 = vmul.f32 %v2603, 1.442695
      %v2944 = vpow.pop %v2943
      %v2945 = vmul.f32 %v2604, 1.442695
      %v2946 = vpow.pop %v2945
      %v2947 = vmul.f32 %v2605, 1.442695
      %v2948 = vpow.pop %v2947
      %v2949 = vmul.f32 %v2606, 1.442695
      %v2950 = vpow.pop %v2949
      %v2951 = vmul.f32 %v2607, 1.442695
      %v2952 = vpow.pop %v2951
      %v2953 = vmul.f32 %v2608, 1.442695
      %v2954 = vpow.pop %v2953
      %v2955 = vmul.f32 %v2609, 1.442695
      %v2956 = vpow.pop %v2955
      %v2957 = vmul.f32 %v2610, 1.442695
      %v2958 = vpow.pop %v2957
      %v2959 = vmul.f32 %v2611, 1.442695
      %v2960 = vpow.pop %v2959
      %v2961 = vmul.f32 %v2612, 1.442695
      %v2962 = vpow.pop %v2961
      %v2963 = vmul.f32 %v2613, 1.442695
      %v2964 = vpow.pop %v2963
      %v2965 = vmul.f32 %v2614, 1.442695
      %v2966 = vpow.pop %v2965
      %v2967 = vmul.f32 %v2615, 1.442695
      %v2968 = vpow.pop %v2967
      %v2969 = vmul.f32 %v2616, 1.442695
      %v2970 = vpow.pop %v2969
      %v2971 = vmul.f32 %v2617, 1.442695
      %v2972 = vpow.pop %v2971
      %v2973 = vmul.f32 %v2618, 1.442695
      %v2974 = vpow.pop %v2973
      %v2975 = vmul.f32 %v2619, 1.442695
      %v2976 = vpow.pop %v2975
      %v2977 = vmul.f32 %v2620, 1.442695
      %v2978 = vpow.pop %v2977
      %v2979 = vmul.f32 %v2621, 1.442695
      %v2980 = vpow.pop %v2979
      %v2981 = vmul.f32 %v2622, 1.442695
      %v2982 = vpow.pop %v2981
      %v2983 = vmul.f32 %v2623, 1.442695
      %v2984 = vpow.pop %v2983
      %v2985 = vmul.f32 %v2624, 1.442695
      %v2986 = vpow.pop %v2985
      %v2987 = vmul.f32 %v2625, 1.442695
      %v2988 = vpow.pop %v2987
      %v2989 = vmul.f32 %v2626, 1.442695
      %v2990 = vpow.pop %v2989
      %v2991 = vmul.f32 %v2627, 1.442695
      %v2992 = vpow.pop %v2991
      %v2993 = vmul.f32 %v2628, 1.442695
      %v2994 = vpow.pop %v2993
      %v2995 = vmul.f32 %v2629, 1.442695
      %v2996 = vpow.pop %v2995
      %v2997 = vmul.f32 %v2630, 1.442695
      %v2998 = vpow.pop %v2997
      %v2999 = vmul.f32 %v2631, 1.442695
      %v3000 = vpow.pop %v2999
      %v3001 = vmul.f32 %v2632, 1.442695
      %v3002 = vpow.pop %v3001
      %v3003 = vmul.f32 %v2633, 1.442695
      %v3004 = vpow.pop %v3003
      %v3005 = vmul.f32 %v2634, 1.442695
      %v3006 = vpow.pop %v3005
      %v3007 = vmul.f32 %v2635, 1.442695
      %v3008 = vpow.pop %v3007
      %v3009 = vmul.f32 %v2636, 1.442695
      %v3010 = vpow.pop %v3009
      %v3011 = vmul.f32 %v2637, 1.442695
      %v3012 = vpow.pop %v3011
      %v3013 = vmul.f32 %v2638, 1.442695
      %v3014 = vpow.pop %v3013
      %v3015 = vmul.f32 %v2639, 1.442695
      %v3016 = vpow.pop %v3015
      %v3017 = vmul.f32 %v2640, 1.442695
      %v3018 = vpow.pop %v3017
      %v3019 = vmul.f32 %v2641, 1.442695
      %v3020 = vpow.pop %v3019
      %v3021 = vmul.f32 %v2642, 1.442695
      %v3022 = vpow.pop %v3021
      %v3023 = vmul.f32 %v2643, 1.442695
      %v3024 = vpow.pop %v3023
      %v3025 = vmul.f32 %v2644, 1.442695
      %v3026 = vpow.pop %v3025
      %v3027 = vmul.f32 %v2645, 1.442695
      %v3028 = vpow.pop %v3027
      %v3029 = vmul.f32 %v2646, 1.442695
      %v3030 = vpow.pop %v3029
      %v3031 = vmul.f32 %v2647, 1.442695
      %v3032 = vpow.pop %v3031
      %v3033 = vmul.f32 %v2648, 1.442695
      %v3034 = vpow.pop %v3033
      %v3035 = vmul.f32 %v2649, 1.442695
      %v3036 = vpow.pop %v3035
      %v3037 = vmul.f32 %v2650, 1.442695
      %v3038 = vpow.pop %v3037
      %v3039 = vmul.f32 %v2651, 1.442695
      %v3040 = vpow.pop %v3039
      %v3041 = vmul.f32 %v2652, 1.442695
      %v3042 = vpow.pop %v3041
      %v3043 = vmul.f32 %v2653, 1.442695
      %v3044 = vpow.pop %v3043
      %v3045 = vmul.f32 %v2654, 1.442695
      %v3046 = vpow.pop %v3045
      %v3047 = vmul.f32 %v2655, 1.442695
      %v3048 = vpow.pop %v3047
      %v3049 = vmul.f32 %v2656, 1.442695
      %v3050 = vpow.pop %v3049
      %v3051 = vmul.f32 %v2657, 1.442695
      %v3052 = vpow.pop %v3051
      %v3053 = vmul.f32 %v2658, 1.442695
      %v3054 = vpow.pop %v3053
      %v3055 = vmul.f32 %v2659, 1.442695
      %v3056 = vpow.pop %v3055
      %v3057 = vmul.f32 %v2660, 1.442695
      %v3058 = vpow.pop %v3057
      %v3059 = vmul.f32 %v2661, 1.442695
      %v3060 = vpow.pop %v3059
      %v3061 = vmul.f32 %v2662, 1.442695
      %v3062 = vpow.pop %v3061
      %v3063 = vmul.f32 %v2663, 1.442695
      %v3064 = vpow.pop %v3063
      %v3065 = vmul.f32 %v2664, 1.442695
      %v3066 = vpow.pop %v3065
      %v3067 = vmul.f32 %v2665, 1.442695
      %v3068 = vpow.pop %v3067
      %v3069 = vmul.f32 %v2666, 1.442695
      %v3070 = vpow.pop %v3069
      %v3071 = vmul.f32 %v2667, 1.442695
      %v3072 = vpow.pop %v3071
      %v3073 = vmul.f32 %v2668, 1.442695
      %v3074 = vpow.pop %v3073
      %v3075 = vmul.f32 %v2669, 1.442695
      %v3076 = vpow.pop %v3075
      %v3077 = vmul.f32 %v2670, 1.442695
      %v3078 = vpow.pop %v3077
      %v3079 = vmul.f32 %v2671, 1.442695
      %v3080 = vpow.pop %v3079
      %v3081 = vmul.f32 %v2672, 1.442695
      %v3082 = vpow.pop %v3081
      %v3083 = vmul.f32 %v2673, 1.442695
      %v3084 = vpow.pop %v3083
      %v3085 = vmul.f32 %v2674, 1.442695
      %v3086 = vpow.pop %v3085
      %v3087 = vmul.f32 %v2675, 1.442695
      %v3088 = vpow.pop %v3087
      %v3089 = vmul.f32 %v2676, 1.442695
      %v3090 = vpow.pop %v3089
      %v3091 = vmul.f32 %v2677, 1.442695
      %v3092 = vpow.pop %v3091
      %v3093 = vmul.f32 %v2678, 1.442695
      %v3094 = vpow.pop %v3093
      %v3095 = vmul.f32 %v2679, 1.442695
      %v3096 = vpow.pop %v3095
      %v3097 = vmul.f32 %v2680, 1.442695
      %v3098 = vpow.pop %v3097
      %v3099 = vmul.f32 %v2681, 1.442695
      %v3100 = vpow.pop %v3099
      %v3101 = vmul.f32 %v2682, 1.442695
      %v3102 = vpow.pop %v3101
      %v3103 = vmul.f32 %v2683, 1.442695
      %v3104 = vpow.pop %v3103
      %v3105 = vmul.f32 %v2684, 1.442695
      %v3106 = vpow.pop %v3105
      %v3107 = vmul.f32 %v2685, 1.442695
      %v3108 = vpow.pop %v3107
      %v3109 = vmul.f32 %v2686, 1.442695
      %v3110 = vpow.pop %v3109
      %v3111 = vmul.f32 %v2687, 1.442695
      %v3112 = vpow.pop %v3111
      %v3113 = vmul.f32 %v2688, 1.442695
      %v3114 = vpow.pop %v3113
      %v3115 = vmul.f32 %v2689, 1.442695
      %v3116 = vpow.pop %v3115
      %v3117 = vmul.f32 %v2690, 1.442695
      %v3118 = vpow.pop %v3117
      %v3119 = vmul.f32 %v2691, 1.442695
      %v3120 = vpow.pop %v3119
      %v3121 = vmul.f32 %v2692, 1.442695
      %v3122 = vpow.pop %v3121
      %v3123 = vmul.f32 %v2693, 1.442695
      %v3124 = vpow.pop %v3123
      %v3125 = vmul.f32 %v2694, 1.442695
      %v3126 = vpow.pop %v3125
      %v3127 = vmul.f32 %v2695, 1.442695
      %v3128 = vpow.pop %v3127
      %v3129 = vmul.f32 %v2696, 1.442695
      %v3130 = vpow.pop %v3129
      %v3131 = vmul.f32 %v2697, 1.442695
      %v3132 = vpow.pop %v3131
      %v3133 = vmul.f32 %v2698, 1.442695
      %v3134 = vpow.pop %v3133
      %v3135 = vmul.f32 %v2699, 1.442695
      %v3136 = vpow.pop %v3135
      %v3137 = vmul.f32 %v2700, 1.442695
      %v3138 = vpow.pop %v3137
      %v3139 = vmul.f32 %v2701, 1.442695
      %v3140 = vpow.pop %v3139
      %v3141 = vmul.f32 %v2702, 1.442695
      %v3142 = vpow.pop %v3141
      %v3143 = vmul.f32 %v2703, 1.442695
      %v3144 = vpow.pop %v3143
      %v3145 = vmul.f32 %v2704, 1.442695
      %v3146 = vpow.pop %v3145
      %v3147 = vmul.f32 %v2705, 1.442695
      %v3148 = vpow.pop %v3147
      %v3149 = vmul.f32 %v2706, 1.442695
      %v3150 = vpow.pop %v3149
      %v3151 = vmul.f32 %v2707, 1.442695
      %v3152 = vpow.pop %v3151
      %v3153 = vmul.f32 %v2708, 1.442695
      %v3154 = vpow.pop %v3153
      %v3155 = vmul.f32 %v2709, 1.442695
      %v3156 = vpow.pop %v3155
      %v3157 = vmul.f32 %v2710, 1.442695
      %v3158 = vpow.pop %v3157
      %v3159 = vmul.f32 %v2711, 1.442695
      %v3160 = vpow.pop %v3159
      %v3161 = vmul.f32 %v2712, 1.442695
      %v3162 = vpow.pop %v3161
      %v3163 = vmul.f32 %v2713, 1.442695
      %v3164 = vpow.pop %v3163
      %v3165 = vmul.f32 %v2714, 1.442695
      %v3166 = vpow.pop %v3165
      %v3167 = vmul.f32 %v2715, 1.442695
      %v3168 = vpow.pop %v3167
      %v3169 = vmul.f32 %v2716, 1.442695
      %v3170 = vpow.pop %v3169
      %v3171 = vmul.f32 %v2717, 1.442695
      %v3172 = vpow.pop %v3171
      %v3173 = vmul.f32 %v2718, 1.442695
      %v3174 = vpow.pop %v3173
      %v3175 = vmul.f32 %v2719, 1.442695
      %v3176 = vpow.pop %v3175
      %v3177 = vmul.f32 %v2720, 1.442695
      %v3178 = vpow.pop %v3177
      %v3179 = vmul.f32 %v2721, 1.442695
      %v3180 = vpow.pop %v3179
      %v3181 = vmul.f32 %v2722, 1.442695
      %v3182 = vpow.pop %v3181
      %v3183 = vmul.f32 %v2723, 1.442695
      %v3184 = vpow.pop %v3183
      %v3185 = vmul.f32 %v2724, 1.442695
      %v3186 = vpow.pop %v3185
      %v3187 = vmul.f32 %v2725, 1.442695
      %v3188 = vpow.pop %v3187
      %v3189 = vmul.f32 %v2726, 1.442695
      %v3190 = vpow.pop %v3189
      %v3191 = vmul.f32 %v2727, 1.442695
      %v3192 = vpow.pop %v3191
      %v3193 = vmul.f32 %v2728, 1.442695
      %v3194 = vpow.pop %v3193
      %v3195 = vmul.f32 %v2729, 1.442695
      %v3196 = vpow.pop %v3195
      %v3197 = vmul.f32 %v2730, 1.442695
      %v3198 = vpow.pop %v3197
      %v3199 = vmul.f32 %v2731, 1.442695
      %v3200 = vpow.pop %v3199
      %v3201 = vmul.f32 %v2732, 1.442695
      %v3202 = vpow.pop %v3201
      %v3203 = vmul.f32 %v2733, 1.442695
      %v3204 = vpow.pop %v3203
      %v3205 = vmul.f32 %v2734, 1.442695
      %v3206 = vpow.pop %v3205
      %v3207 = vmul.f32 %v2735, 1.442695
      %v3208 = vpow.pop %v3207
      %v3209 = vmul.f32 %v2736, 1.442695
      %v3210 = vpow.pop %v3209
      %v3211 = vmul.f32 %v2737, 1.442695
      %v3212 = vpow.pop %v3211
      %v3213 = vmul.f32 %v2738, 1.442695
      %v3214 = vpow.pop %v3213
      %v3215 = vmul.f32 %v2739, 1.442695
      %v3216 = vpow.pop %v3215
      %v3217 = vmul.f32 %v2740, 1.442695
      %v3218 = vpow.pop %v3217
      %v3219 = vmul.f32 %v2741, 1.442695
      %v3220 = vpow.pop %v3219
      %v3221 = vmul.f32 %v2742, 1.442695
      %v3222 = vpow.pop %v3221
      %v3223 = vmul.f32 %v2743, 1.442695
      %v3224 = vpow.pop %v3223
      %v3225 = vmul.f32 %v2744, 1.442695
      %v3226 = vpow.pop %v3225
      %v3227 = vmul.f32 %v2745, 1.442695
      %v3228 = vpow.pop %v3227
      %v3229 = vmul.f32 %v2746, 1.442695
      %v3230 = vpow.pop %v3229
      %v3231 = vmul.f32 %v2747, 1.442695
      %v3232 = vpow.pop %v3231
      %v3233 = vmul.f32 %v2748, 1.442695
      %v3234 = vpow.pop %v3233
      %v3235 = vmul.f32 %v2749, 1.442695
      %v3236 = vpow.pop %v3235
      %v3237 = vmul.f32 %v2750, 1.442695
      %v3238 = vpow.pop %v3237
      %v3239 = vmul.f32 %v2751, 1.442695
      %v3240 = vpow.pop %v3239
      %v3241 = vmul.f32 %v2752, 1.442695
      %v3242 = vpow.pop %v3241
      %v3243 = vmul.f32 %v2753, 1.442695
      %v3244 = vpow.pop %v3243
      %v3245 = vmul.f32 %v2754, 1.442695
      %v3246 = vpow.pop %v3245
      %v3247 = vmul.f32 %v2755, 1.442695
      %v3248 = vpow.pop %v3247
      %v3249 = vmul.f32 %v2756, 1.442695
      %v3250 = vpow.pop %v3249
      %v3251 = vmul.f32 %v2757, 1.442695
      %v3252 = vpow.pop %v3251
      %v3253 = vmul.f32 %v2758, 1.442695
      %v3254 = vpow.pop %v3253
      %v3255 = vmul.f32 %v2759, 1.442695
      %v3256 = vpow.pop %v3255
      %v3257 = vmul.f32 %v2760, 1.442695
      %v3258 = vpow.pop %v3257
      %v3259 = vmul.f32 %v2761, 1.442695
      %v3260 = vpow.pop %v3259
      %v3261 = vmul.f32 %v2762, 1.442695
      %v3262 = vpow.pop %v3261
      %v3263 = vmul.f32 %v2763, 1.442695
      %v3264 = vpow.pop %v3263
      %v3265 = vmul.f32 %v2764, 1.442695
      %v3266 = vpow.pop %v3265
      %v3267 = vmul.f32 %v2765, 1.442695
      %v3268 = vpow.pop %v3267
      %v3269 = vmul.f32 %v2766, 1.442695
      %v3270 = vpow.pop %v3269
      %v3271 = vmul.f32 %v2767, 1.442695
      %v3272 = vpow.pop %v3271
      %v3273 = vmul.f32 %v2768, 1.442695
      %v3274 = vpow.pop %v3273
      %v3275 = vmul.f32 %v2769, 1.442695
      %v3276 = vpow.pop %v3275
      %v3277 = vmul.f32 %v2770, 1.442695
      %v3278 = vpow.pop %v3277
      %v3279 = vmul.f32 %v2771, 1.442695
      %v3280 = vpow.pop %v3279
      %v3281 = vmul.f32 %v2772, 1.442695
      %v3282 = vpow.pop %v3281
      %v3283 = vmul.f32 %v2773, 1.442695
      %v3284 = vpow.pop %v3283
      %v3285 = vmul.f32 %v2774, 1.442695
      %v3286 = vpow.pop %v3285
      %v3287 = vld [vmem:[%s3] sm:$0xff]
      %vm3288 = vcmask 64512
      %v3290 = vsel %vm3288, %v2776, 0
      %v3293 = vsel %vm3288, %v2778, 0
      %v3296 = vsel %vm3288, %v2780, 0
      %v3299 = vsel %vm3288, %v2782, 0
      %v3302 = vsel %vm3288, %v2784, 0
      %v3305 = vsel %vm3288, %v2786, 0
      %v3308 = vsel %vm3288, %v2788, 0
      %v3311 = vsel %vm3288, %v2790, 0
      %v3314 = vsel %vm3288, %v2792, 0
      %v3317 = vsel %vm3288, %v2794, 0
      %v3320 = vsel %vm3288, %v2796, 0
      %v3323 = vsel %vm3288, %v2798, 0
      %v3326 = vsel %vm3288, %v2800, 0
      %v3329 = vsel %vm3288, %v2802, 0
      %v3332 = vsel %vm3288, %v2804, 0
      %v3335 = vsel %vm3288, %v2806, 0
      %v3338 = vsel %vm3288, %v2808, 0
      %v3341 = vsel %vm3288, %v2810, 0
      %v3344 = vsel %vm3288, %v2812, 0
      %v3347 = vsel %vm3288, %v2814, 0
      %v3350 = vsel %vm3288, %v2816, 0
      %v3353 = vsel %vm3288, %v2818, 0
      %v3356 = vsel %vm3288, %v2820, 0
      %v3359 = vsel %vm3288, %v2822, 0
      %v3362 = vsel %vm3288, %v2824, 0
      %v3365 = vsel %vm3288, %v2826, 0
      %v3368 = vsel %vm3288, %v2828, 0
      %v3371 = vsel %vm3288, %v2830, 0
      %v3374 = vsel %vm3288, %v2832, 0
      %v3377 = vsel %vm3288, %v2834, 0
      %v3380 = vsel %vm3288, %v2836, 0
      %v3383 = vsel %vm3288, %v2838, 0
      %v3386 = vsel %vm3288, %v2840, 0
      %v3389 = vsel %vm3288, %v2842, 0
      %v3392 = vsel %vm3288, %v2844, 0
      %v3395 = vsel %vm3288, %v2846, 0
      %v3398 = vsel %vm3288, %v2848, 0
      %v3401 = vsel %vm3288, %v2850, 0
      %v3404 = vsel %vm3288, %v2852, 0
      %v3407 = vsel %vm3288, %v2854, 0
      %v3410 = vsel %vm3288, %v2856, 0
      %v3413 = vsel %vm3288, %v2858, 0
      %v3416 = vsel %vm3288, %v2860, 0
      %v3419 = vsel %vm3288, %v2862, 0
      %v3422 = vsel %vm3288, %v2864, 0
      %v3425 = vsel %vm3288, %v2866, 0
      %v3428 = vsel %vm3288, %v2868, 0
      %v3431 = vsel %vm3288, %v2870, 0
      %v3434 = vsel %vm3288, %v2872, 0
      %v3437 = vsel %vm3288, %v2874, 0
      %v3440 = vsel %vm3288, %v2876, 0
      %v3443 = vsel %vm3288, %v2878, 0
      %v3446 = vsel %vm3288, %v2880, 0
      %v3449 = vsel %vm3288, %v2882, 0
      %v3452 = vsel %vm3288, %v2884, 0
      %v3455 = vsel %vm3288, %v2886, 0
      %v3458 = vsel %vm3288, %v2888, 0
      %v3461 = vsel %vm3288, %v2890, 0
      %v3464 = vsel %vm3288, %v2892, 0
      %v3467 = vsel %vm3288, %v2894, 0
      %v3470 = vsel %vm3288, %v2896, 0
      %v3473 = vsel %vm3288, %v2898, 0
      %v3476 = vsel %vm3288, %v2900, 0
      %v3479 = vsel %vm3288, %v2902, 0
      %v3482 = vsel %vm3288, %v2904, 0
      %v3485 = vsel %vm3288, %v2906, 0
      %v3488 = vsel %vm3288, %v2908, 0
      %v3491 = vsel %vm3288, %v2910, 0
      %v3494 = vsel %vm3288, %v2912, 0
      %v3497 = vsel %vm3288, %v2914, 0
      %v3500 = vsel %vm3288, %v2916, 0
      %v3503 = vsel %vm3288, %v2918, 0
      %v3506 = vsel %vm3288, %v2920, 0
      %v3509 = vsel %vm3288, %v2922, 0
      %v3512 = vsel %vm3288, %v2924, 0
      %v3515 = vsel %vm3288, %v2926, 0
      %v3518 = vsel %vm3288, %v2928, 0
      %v3521 = vsel %vm3288, %v2930, 0
      %v3524 = vsel %vm3288, %v2932, 0
      %v3527 = vsel %vm3288, %v2934, 0
      %v3530 = vsel %vm3288, %v2936, 0
      %v3533 = vsel %vm3288, %v2938, 0
      %v3536 = vsel %vm3288, %v2940, 0
      %v3539 = vsel %vm3288, %v2942, 0
      %v3542 = vsel %vm3288, %v2944, 0
      %v3545 = vsel %vm3288, %v2946, 0
      %v3548 = vsel %vm3288, %v2948, 0
      %v3551 = vsel %vm3288, %v2950, 0
      %v3554 = vsel %vm3288, %v2952, 0
      %v3557 = vsel %vm3288, %v2954, 0
      %v3560 = vsel %vm3288, %v2956, 0
      %v3563 = vsel %vm3288, %v2958, 0
      %v3566 = vsel %vm3288, %v2960, 0
      %v3569 = vsel %vm3288, %v2962, 0
      %v3572 = vsel %vm3288, %v2964, 0
      %v3575 = vsel %vm3288, %v2966, 0
      %v3578 = vsel %vm3288, %v2968, 0
      %v3581 = vsel %vm3288, %v2970, 0
      %v3584 = vsel %vm3288, %v2972, 0
      %v3587 = vsel %vm3288, %v2974, 0
      %v3590 = vsel %vm3288, %v2976, 0
      %v3593 = vsel %vm3288, %v2978, 0
      %v3596 = vsel %vm3288, %v2980, 0
      %v3599 = vsel %vm3288, %v2982, 0
      %v3602 = vsel %vm3288, %v2984, 0
      %v3605 = vsel %vm3288, %v2986, 0
      %v3608 = vsel %vm3288, %v2988, 0
      %v3611 = vsel %vm3288, %v2990, 0
      %v3614 = vsel %vm3288, %v2992, 0
      %v3617 = vsel %vm3288, %v2994, 0
      %v3620 = vsel %vm3288, %v2996, 0
      %v3623 = vsel %vm3288, %v2998, 0
      %v3626 = vsel %vm3288, %v3000, 0
      %v3629 = vsel %vm3288, %v3002, 0
      %v3632 = vsel %vm3288, %v3004, 0
      %v3635 = vsel %vm3288, %v3006, 0
      %v3638 = vsel %vm3288, %v3008, 0
      %v3641 = vsel %vm3288, %v3010, 0
      %v3644 = vsel %vm3288, %v3012, 0
      %v3647 = vsel %vm3288, %v3014, 0
      %v3650 = vsel %vm3288, %v3016, 0
      %v3653 = vsel %vm3288, %v3018, 0
      %v3656 = vsel %vm3288, %v3020, 0
      %v3659 = vsel %vm3288, %v3022, 0
      %v3662 = vsel %vm3288, %v3024, 0
      %v3665 = vsel %vm3288, %v3026, 0
      %v3668 = vsel %vm3288, %v3028, 0
      %v3671 = vsel %vm3288, %v3030, 0
      %v3674 = vsel %vm3288, %v3032, 0
      %v3677 = vsel %vm3288, %v3034, 0
      %v3680 = vsel %vm3288, %v3036, 0
      %v3683 = vsel %vm3288, %v3038, 0
      %v3686 = vsel %vm3288, %v3040, 0
      %v3689 = vsel %vm3288, %v3042, 0
      %v3692 = vsel %vm3288, %v3044, 0
      %v3695 = vsel %vm3288, %v3046, 0
      %v3698 = vsel %vm3288, %v3048, 0
      %v3701 = vsel %vm3288, %v3050, 0
      %v3704 = vsel %vm3288, %v3052, 0
      %v3707 = vsel %vm3288, %v3054, 0
      %v3710 = vsel %vm3288, %v3056, 0
      %v3713 = vsel %vm3288, %v3058, 0
      %v3716 = vsel %vm3288, %v3060, 0
      %v3719 = vsel %vm3288, %v3062, 0
      %v3722 = vsel %vm3288, %v3064, 0
      %v3725 = vsel %vm3288, %v3066, 0
      %v3728 = vsel %vm3288, %v3068, 0
      %v3731 = vsel %vm3288, %v3070, 0
      %v3734 = vsel %vm3288, %v3072, 0
      %v3737 = vsel %vm3288, %v3074, 0
      %v3740 = vsel %vm3288, %v3076, 0
      %v3743 = vsel %vm3288, %v3078, 0
      %v3746 = vsel %vm3288, %v3080, 0
      %v3749 = vsel %vm3288, %v3082, 0
      %v3752 = vsel %vm3288, %v3084, 0
      %v3755 = vsel %vm3288, %v3086, 0
      %v3758 = vsel %vm3288, %v3088, 0
      %v3761 = vsel %vm3288, %v3090, 0
      %v3764 = vsel %vm3288, %v3092, 0
      %v3767 = vsel %vm3288, %v3094, 0
      %v3770 = vsel %vm3288, %v3096, 0
      %v3773 = vsel %vm3288, %v3098, 0
      %v3776 = vsel %vm3288, %v3100, 0
      %v3779 = vsel %vm3288, %v3102, 0
      %v3782 = vsel %vm3288, %v3104, 0
      %v3785 = vsel %vm3288, %v3106, 0
      %v3788 = vsel %vm3288, %v3108, 0
      %v3791 = vsel %vm3288, %v3110, 0
      %v3794 = vsel %vm3288, %v3112, 0
      %v3797 = vsel %vm3288, %v3114, 0
      %v3800 = vsel %vm3288, %v3116, 0
      %v3803 = vsel %vm3288, %v3118, 0
      %v3806 = vsel %vm3288, %v3120, 0
      %v3809 = vsel %vm3288, %v3122, 0
      %v3812 = vsel %vm3288, %v3124, 0
      %v3815 = vsel %vm3288, %v3126, 0
      %v3818 = vsel %vm3288, %v3128, 0
      %v3821 = vsel %vm3288, %v3130, 0
      %v3824 = vsel %vm3288, %v3132, 0
      %v3827 = vsel %vm3288, %v3134, 0
      %v3830 = vsel %vm3288, %v3136, 0
      %v3833 = vsel %vm3288, %v3138, 0
      %v3836 = vsel %vm3288, %v3140, 0
      %v3839 = vsel %vm3288, %v3142, 0
      %v3842 = vsel %vm3288, %v3144, 0
      %v3845 = vsel %vm3288, %v3146, 0
      %v3848 = vsel %vm3288, %v3148, 0
      %v3851 = vsel %vm3288, %v3150, 0
      %v3854 = vsel %vm3288, %v3152, 0
      %v3857 = vsel %vm3288, %v3154, 0
      %v3860 = vsel %vm3288, %v3156, 0
      %v3863 = vsel %vm3288, %v3158, 0
      %v3866 = vsel %vm3288, %v3160, 0
      %v3869 = vsel %vm3288, %v3162, 0
      %v3872 = vsel %vm3288, %v3164, 0
      %v3875 = vsel %vm3288, %v3166, 0
      %v3878 = vsel %vm3288, %v3168, 0
      %v3881 = vsel %vm3288, %v3170, 0
      %v3884 = vsel %vm3288, %v3172, 0
      %v3887 = vsel %vm3288, %v3174, 0
      %v3890 = vsel %vm3288, %v3176, 0
      %v3893 = vsel %vm3288, %v3178, 0
      %v3896 = vsel %vm3288, %v3180, 0
      %v3899 = vsel %vm3288, %v3182, 0
      %v3902 = vsel %vm3288, %v3184, 0
      %v3905 = vsel %vm3288, %v3186, 0
      %v3908 = vsel %vm3288, %v3188, 0
      %v3911 = vsel %vm3288, %v3190, 0
      %v3914 = vsel %vm3288, %v3192, 0
      %v3917 = vsel %vm3288, %v3194, 0
      %v3920 = vsel %vm3288, %v3196, 0
      %v3923 = vsel %vm3288, %v3198, 0
      %v3926 = vsel %vm3288, %v3200, 0
      %v3929 = vsel %vm3288, %v3202, 0
      %v3932 = vsel %vm3288, %v3204, 0
      %v3935 = vsel %vm3288, %v3206, 0
      %v3938 = vsel %vm3288, %v3208, 0
      %v3941 = vsel %vm3288, %v3210, 0
      %v3944 = vsel %vm3288, %v3212, 0
      %v3947 = vsel %vm3288, %v3214, 0
      %v3950 = vsel %vm3288, %v3216, 0
      %v3953 = vsel %vm3288, %v3218, 0
      %v3956 = vsel %vm3288, %v3220, 0
      %v3959 = vsel %vm3288, %v3222, 0
      %v3962 = vsel %vm3288, %v3224, 0
      %v3965 = vsel %vm3288, %v3226, 0
      %v3968 = vsel %vm3288, %v3228, 0
      %v3971 = vsel %vm3288, %v3230, 0
      %v3974 = vsel %vm3288, %v3232, 0
      %v3977 = vsel %vm3288, %v3234, 0
      %v3980 = vsel %vm3288, %v3236, 0
      %v3983 = vsel %vm3288, %v3238, 0
      %v3986 = vsel %vm3288, %v3240, 0
      %v3989 = vsel %vm3288, %v3242, 0
      %v3992 = vsel %vm3288, %v3244, 0
      %v3995 = vsel %vm3288, %v3246, 0
      %v3998 = vsel %vm3288, %v3248, 0
      %v4001 = vsel %vm3288, %v3250, 0
      %v4004 = vsel %vm3288, %v3252, 0
      %v4007 = vsel %vm3288, %v3254, 0
      %v4010 = vsel %vm3288, %v3256, 0
      %v4013 = vsel %vm3288, %v3258, 0
      %v4016 = vsel %vm3288, %v3260, 0
      %v4019 = vsel %vm3288, %v3262, 0
      %v4022 = vsel %vm3288, %v3264, 0
      %v4025 = vsel %vm3288, %v3266, 0
      %v4028 = vsel %vm3288, %v3268, 0
      %v4031 = vsel %vm3288, %v3270, 0
      %v4034 = vsel %vm3288, %v3272, 0
      %v4037 = vsel %vm3288, %v3274, 0
      %v4040 = vsel %vm3288, %v3276, 0
      %v4043 = vsel %vm3288, %v3278, 0
      %v4046 = vsel %vm3288, %v3280, 0
      %v4049 = vsel %vm3288, %v3282, 0
      %v4052 = vsel %vm3288, %v3284, 0
      %v4055 = vsel %vm3288, %v3286, 0
      %4057 = vmatprep.subr.mxu0 0.0
      %4058 = vmatpush1.msra.mxu0 %v3287
      %4059 = vmatprep.subr.mxu0 0.0
      %4060 = vmatpush1.msra.mxu0 0.0
      %4061 = vmatprep.subr.mxu0 0.0
      %4062 = vmatpush1.msra.mxu0 0.0
      %4063 = vmatprep.subr.mxu0 0.0
      %4064 = vmatpush1.msra.mxu0 0.0
      %4065 = vmatprep.subr.mxu0 0.0
      %4066 = vmatpush1.msra.mxu0 0.0
      %4067 = vmatprep.subr.mxu0 0.0
      %4068 = vmatpush1.msra.mxu0 0.0
      %4069 = vmatprep.subr.mxu0 0.0
      %4070 = vmatpush1.msra.mxu0 0.0
      %4071 = vmatprep.subr.mxu0 0.0
      %4072 = vmatpush1.msra.mxu0 0.0
      %4073 = vmatprep.subr.mxu0 0.0
      %4074 = vmatpush1.msra.mxu0 0.0
      %4075 = vmatprep.subr.mxu0 0.0
      %4076 = vmatpush1.msra.mxu0 0.0
      %4077 = vmatprep.subr.mxu0 0.0
      %4078 = vmatpush1.msra.mxu0 0.0
      %4079 = vmatprep.subr.mxu0 0.0
      %4080 = vmatpush1.msra.mxu0 0.0
      %4081 = vmatprep.subr.mxu0 0.0
      %4082 = vmatpush1.msra.mxu0 0.0
      %4083 = vmatprep.subr.mxu0 0.0
      %4084 = vmatpush1.msra.mxu0 0.0
      %4085 = vmatprep.subr.mxu0 0.0
      %4086 = vmatpush1.msra.mxu0 0.0
      %4087 = vmatprep.subr.mxu0 0.0
      %4088 = vmatpush1.msra.mxu0 0.0
      %4089 = vmatprep.subr.mxu0 0.0
      %4090 = vmatpush1.msra.mxu0 0.0
      %4091 = vmatprep.subr.mxu0 0.0
      %4092 = vmatpush1.msra.mxu0 0.0
      %4093 = vmatprep.subr.mxu0 0.0
      %4094 = vmatpush1.msra.mxu0 0.0
      %4095 = vmatprep.subr.mxu0 0.0
      %4096 = vmatpush1.msra.mxu0 0.0
      %4097 = vmatprep.subr.mxu0 0.0
      %4098 = vmatpush1.msra.mxu0 0.0
      %4099 = vmatprep.subr.mxu0 0.0
      %4100 = vmatpush1.msra.mxu0 0.0
      %4101 = vmatprep.subr.mxu0 0.0
      %4102 = vmatpush1.msra.mxu0 0.0
      %4103 = vmatprep.subr.mxu0 0.0
      %4104 = vmatpush1.msra.mxu0 0.0
      %4105 = vmatprep.subr.mxu0 0.0
      %4106 = vmatpush1.msra.mxu0 0.0
      %4107 = vmatprep.subr.mxu0 0.0
      %4108 = vmatpush1.msra.mxu0 0.0
      %4109 = vmatprep.subr.mxu0 0.0
      %4110 = vmatpush1.msra.mxu0 0.0
      %4111 = vmatprep.subr.mxu0 0.0
      %4112 = vmatpush1.msra.mxu0 0.0
      %4113 = vmatprep.subr.mxu0 0.0
      %4114 = vmatpush1.msra.mxu0 0.0
      %4115 = vmatprep.subr.mxu0 0.0
      %4116 = vmatpush1.msra.mxu0 0.0
      %4117 = vmatprep.subr.mxu0 0.0
      %4118 = vmatpush1.msra.mxu0 0.0
      %4119 = vmatprep.subr.mxu0 0.0
      %4120 = vmatpush1.msra.mxu0 0.0
      %4121 = vmatprep.mubr.f32.mxu0 0.0
      %4122 = vmatmul.mubr.f32.gmra.mrb[0].mxu0 %v3290
      %v4123 = vpop.f32.mrb[0].mxu0
      %v4124 = vadd.f32 0.0, %v4123
      %v4125 = vpop.f32.mrb[0].mxu0
      %4126 = vmatprep.mubr.f32.mxu0 0.0
      %4127 = vmatmul.mubr.f32.gmra.mrb[0].mxu0 %v3293
      %v4128 = vpop.f32.mrb[0].mxu0
      %v4129 = vadd.f32 0.0, %v4128
      %v4130 = vpop.f32.mrb[0].mxu0
      %4131 = vmatprep.mubr.f32.mxu0 0.0
      %4132 = vmatmul.mubr.f32.gmra.mrb[0].mxu0 %v3296
      %v4133 = vpop.f32.mrb[0].mxu0
      %v4134 = vadd.f32 0.0, %v4133
      %v4135 = vpop.f32.mrb[0].mxu0
      %4136 = vmatprep.mubr.f32.mxu0 0.0
      %4137 = vmatmul.mubr.f32.gmra.mrb[0].mxu0 %v3299
      %v4138 = vpop.f32.mrb[0].mxu0
      %v4139 = vadd.f32 0.0, %v4138
      %v4140 = vpop.f32.mrb[0].mxu0
      %4141 = vmatprep.mubr.f32.mxu0 0.0
      %4142 = vmatmul.mubr.f32.gmra.mrb[0].mxu0 %v3302
      %v4143 = vpop.f32.mrb[0].mxu0
      %v4144 = vadd.f32 0.0, %v4143
      %v4145 = vpop.f32.mrb[0].mxu0
      %4146 = vmatprep.mubr.f32.mxu0 0.0
      %4147 = vmatmul.mubr.f32.gmra.mrb[0].mxu0 %v3305
      %v4148 = vpop.f32.mrb[0].mxu0
      %v4149 = vadd.f32 0.0, %v4148
      %v4150 = vpop.f32.mrb[0].mxu0
      %4151 = vmatprep.mubr.f32.mxu0 0.0
      %4152 = vmatmul.mubr.f32.gmra.mrb[0].mxu0 %v3308
      %v4153 = vpop.f32.mrb[0].mxu0
      %v4154 = vadd.f32 0.0, %v4153
      %v4155 = vpop.f32.mrb[0].mxu0
      %4156 = vmatprep.mubr.f32.mxu0 0.0
      %4157 = vmatmul.mubr.f32.gmra.mrb[0].mxu0 %v3311
      %v4158 = vpop.f32.mrb[0].mxu0
      %v4159 = vadd.f32 0.0, %v4158
      %v4160 = vpop.f32.mrb[0].mxu0
      %4161 = vmatprep.mubr.f32.mxu0 0.0
      %4162 = vmatmul.mubr.f32.gmra.mrb[0].mxu0 %v3314
      %v4163 = vpop.f32.mrb[0].mxu0
      %v4164 = vadd.f32 0.0, %v4163
      %v4165 = vpop.f32.mrb[0].mxu0
      %4166 = vmatprep.mubr.f32.mxu0 0.0
      %4167 = vmatmul.mubr.f32.gmra.mrb[0].mxu0 %v3317
      %v4168 = vpop.f32.mrb[0].mxu0
      %v4169 = vadd.f32 0.0, %v4168
      %v4170 = vpop.f32.mrb[0].mxu0
      %4171 = vmatprep.mubr.f32.mxu0 0.0
      %4172 = vmatmul.mubr.f32.gmra.mrb[0].mxu0 %v3320
      %v4173 = vpop.f32.mrb[0].mxu0
      %v4174 = vadd.f32 0.0, %v4173
      %v4175 = vpop.f32.mrb[0].mxu0
      %4176 = vmatprep.mubr.f32.mxu0 0.0
      %4177 = vmatmul.mubr.f32.gmra.mrb[0].mxu0 %v3323
      %v4178 = vpop.f32.mrb[0].mxu0
      %v4179 = vadd.f32 0.0, %v4178
      %v4180 = vpop.f32.mrb[0].mxu0
      %4181 = vmatprep.mubr.f32.mxu0 0.0
      %4182 = vmatmul.mubr.f32.gmra.mrb[0].mxu0 %v3326
      %v4183 = vpop.f32.mrb[0].mxu0
      %v4184 = vadd.f32 0.0, %v4183
      %v4185 = vpop.f32.mrb[0].mxu0
      %4186 = vmatprep.mubr.f32.mxu0 0.0
      %4187 = vmatmul.mubr.f32.gmra.mrb[0].mxu0 %v3329
      %v4188 = vpop.f32.mrb[0].mxu0
      %v4189 = vadd.f32 0.0, %v4188
      %v4190 = vpop.f32.mrb[0].mxu0
      %4191 = vmatprep.mubr.f32.mxu0 0.0
      %4192 = vmatmul.mubr.f32.gmra.mrb[0].mxu0 %v3332
      %v4193 = vpop.f32.mrb[0].mxu0
      %v4194 = vadd.f32 0.0, %v4193
      %v4195 = vpop.f32.mrb[0].mxu0
      %4196 = vmatprep.mubr.f32.mxu0 0.0
      %4197 = vmatmul.mubr.f32.gmra.mrb[0].mxu0 %v3335
      %v4198 = vpop.f32.mrb[0].mxu0
      %v4199 = vadd.f32 0.0, %v4198
      %v4200 = vpop.f32.mrb[0].mxu0
      %4201 = vmatprep.mubr.f32.mxu0 0.0
      %4202 = vmatmul.mubr.f32.gmra.mrb[0].mxu0 %v3338
      %v4203 = vpop.f32.mrb[0].mxu0
      %v4204 = vadd.f32 0.0, %v4203
      %v4205 = vpop.f32.mrb[0].mxu0
      %4206 = vmatprep.mubr.f32.mxu0 0.0
      %4207 = vmatmul.mubr.f32.gmra.mrb[0].mxu0 %v3341
      %v4208 = vpop.f32.mrb[0].mxu0
      %v4209 = vadd.f32 0.0, %v4208
      %v4210 = vpop.f32.mrb[0].mxu0
      %4211 = vmatprep.mubr.f32.mxu0 0.0
      %4212 = vmatmul.mubr.f32.gmra.mrb[0].mxu0 %v3344
      %v4213 = vpop.f32.mrb[0].mxu0
      %v4214 = vadd.f32 0.0, %v4213
      %v4215 = vpop.f32.mrb[0].mxu0
      %4216 = vmatprep.mubr.f32.mxu0 0.0
      %4217 = vmatmul.mubr.f32.gmra.mrb[0].mxu0 %v3347
      %v4218 = vpop.f32.mrb[0].mxu0
      %v4219 = vadd.f32 0.0, %v4218
      %v4220 = vpop.f32.mrb[0].mxu0
      %4221 = vmatprep.mubr.f32.mxu0 0.0
      %4222 = vmatmul.mubr.f32.gmra.mrb[0].mxu0 %v3350
      %v4223 = vpop.f32.mrb[0].mxu0
      %v4224 = vadd.f32 0.0, %v4223
      %v4225 = vpop.f32.mrb[0].mxu0
      %4226 = vmatprep.mubr.f32.mxu0 0.0
      %4227 = vmatmul.mubr.f32.gmra.mrb[0].mxu0 %v3353
      %v4228 = vpop.f32.mrb[0].mxu0
      %v4229 = vadd.f32 0.0, %v4228
      %v4230 = vpop.f32.mrb[0].mxu0
      %4231 = vmatprep.mubr.f32.mxu0 0.0
      %4232 = vmatmul.mubr.f32.gmra.mrb[0].mxu0 %v3356
      %v4233 = vpop.f32.mrb[0].mxu0
      %v4234 = vadd.f32 0.0, %v4233
      %v4235 = vpop.f32.mrb[0].mxu0
      %4236 = vmatprep.mubr.f32.mxu0 0.0
      %4237 = vmatmul.mubr.f32.gmra.mrb[0].mxu0 %v3359
      %v4238 = vpop.f32.mrb[0].mxu0
      %v4239 = vadd.f32 0.0, %v4238
      %v4240 = vpop.f32.mrb[0].mxu0
      %4241 = vmatprep.mubr.f32.mxu0 0.0
      %4242 = vmatmul.mubr.f32.gmra.mrb[0].mxu0 %v3362
      %v4243 = vpop.f32.mrb[0].mxu0
      %v4244 = vadd.f32 0.0, %v4243
      %v4245 = vpop.f32.mrb[0].mxu0
      %4246 = vmatprep.mubr.f32.mxu0 0.0
      %4247 = vmatmul.mubr.f32.gmra.mrb[0].mxu0 %v3365
      %v4248 = vpop.f32.mrb[0].mxu0
      %v4249 = vadd.f32 0.0, %v4248
      %v4250 = vpop.f32.mrb[0].mxu0
      %4251 = vmatprep.mubr.f32.mxu0 0.0
      %4252 = vmatmul.mubr.f32.gmra.mrb[0].mxu0 %v3368
      %v4253 = vpop.f32.mrb[0].mxu0
      %v4254 = vadd.f32 0.0, %v4253
      %v4255 = vpop.f32.mrb[0].mxu0
      %4256 = vmatprep.mubr.f32.mxu0 0.0
      %4257 = vmatmul.mubr.f32.gmra.mrb[0].mxu0 %v3371
      %v4258 = vpop.f32.mrb[0].mxu0
      %v4259 = vadd.f32 0.0, %v4258
      %v4260 = vpop.f32.mrb[0].mxu0
      %4261 = vmatprep.mubr.f32.mxu0 0.0
      %4262 = vmatmul.mubr.f32.gmra.mrb[0].mxu0 %v3374
      %v4263 = vpop.f32.mrb[0].mxu0
      %v4264 = vadd.f32 0.0, %v4263
      %v4265 = vpop.f32.mrb[0].mxu0
      %4266 = vmatprep.mubr.f32.mxu0 0.0
      %4267 = vmatmul.mubr.f32.gmra.mrb[0].mxu0 %v3377
      %v4268 = vpop.f32.mrb[0].mxu0
      %v4269 = vadd.f32 0.0, %v4268
      %v4270 = vpop.f32.mrb[0].mxu0
      %4271 = vmatprep.mubr.f32.mxu0 0.0
      %4272 = vmatmul.mubr.f32.gmra.mrb[0].mxu0 %v3380
      %v4273 = vpop.f32.mrb[0].mxu0
      %v4274 = vadd.f32 0.0, %v4273
      %v4275 = vpop.f32.mrb[0].mxu0
      %4276 = vmatprep.mubr.f32.mxu0 0.0
      %4277 = vmatmul.mubr.f32.gmra.mrb[0].mxu0 %v3383
      %v4278 = vpop.f32.mrb[0].mxu0
      %v4279 = vadd.f32 0.0, %v4278
      %v4280 = vpop.f32.mrb[0].mxu0
      %4281 = vmatprep.mubr.f32.mxu0 0.0
      %4282 = vmatmul.mubr.f32.gmra.mrb[0].mxu0 %v3386
      %v4283 = vpop.f32.mrb[0].mxu0
      %v4284 = vadd.f32 0.0, %v4283
      %v4285 = vpop.f32.mrb[0].mxu0
      %4286 = vmatprep.mubr.f32.mxu0 0.0
      %4287 = vmatmul.mubr.f32.gmra.mrb[0].mxu0 %v3389
      %v4288 = vpop.f32.mrb[0].mxu0
      %v4289 = vadd.f32 0.0, %v4288
      %v4290 = vpop.f32.mrb[0].mxu0
      %4291 = vmatprep.mubr.f32.mxu0 0.0
      %4292 = vmatmul.mubr.f32.gmra.mrb[0].mxu0 %v3392
      %v4293 = vpop.f32.mrb[0].mxu0
      %v4294 = vadd.f32 0.0, %v4293
      %v4295 = vpop.f32.mrb[0].mxu0
      %4296 = vmatprep.mubr.f32.mxu0 0.0
      %4297 = vmatmul.mubr.f32.gmra.mrb[0].mxu0 %v3395
      %v4298 = vpop.f32.mrb[0].mxu0
      %v4299 = vadd.f32 0.0, %v4298
      %v4300 = vpop.f32.mrb[0].mxu0
      %4301 = vmatprep.mubr.f32.mxu0 0.0
      %4302 = vmatmul.mubr.f32.gmra.mrb[0].mxu0 %v3398
      %v4303 = vpop.f32.mrb[0].mxu0
      %v4304 = vadd.f32 0.0, %v4303
      %v4305 = vpop.f32.mrb[0].mxu0
      %4306 = vmatprep.mubr.f32.mxu0 0.0
      %4307 = vmatmul.mubr.f32.gmra.mrb[0].mxu0 %v3401
      %v4308 = vpop.f32.mrb[0].mxu0
      %v4309 = vadd.f32 0.0, %v4308
      %v4310 = vpop.f32.mrb[0].mxu0
      %4311 = vmatprep.mubr.f32.mxu0 0.0
      %4312 = vmatmul.mubr.f32.gmra.mrb[0].mxu0 %v3404
      %v4313 = vpop.f32.mrb[0].mxu0
      %v4314 = vadd.f32 0.0, %v4313
      %v4315 = vpop.f32.mrb[0].mxu0
      %4316 = vmatprep.mubr.f32.mxu0 0.0
      %4317 = vmatmul.mubr.f32.gmra.mrb[0].mxu0 %v3407
      %v4318 = vpop.f32.mrb[0].mxu0
      %v4319 = vadd.f32 0.0, %v4318
      %v4320 = vpop.f32.mrb[0].mxu0
      %4321 = vmatprep.mubr.f32.mxu0 0.0
      %4322 = vmatmul.mubr.f32.gmra.mrb[0].mxu0 %v3410
      %v4323 = vpop.f32.mrb[0].mxu0
      %v4324 = vadd.f32 0.0, %v4323
      %v4325 = vpop.f32.mrb[0].mxu0
      %4326 = vmatprep.mubr.f32.mxu0 0.0
      %4327 = vmatmul.mubr.f32.gmra.mrb[0].mxu0 %v3413
      %v4328 = vpop.f32.mrb[0].mxu0
      %v4329 = vadd.f32 0.0, %v4328
      %v4330 = vpop.f32.mrb[0].mxu0
      %4331 = vmatprep.mubr.f32.mxu0 0.0
      %4332 = vmatmul.mubr.f32.gmra.mrb[0].mxu0 %v3416
      %v4333 = vpop.f32.mrb[0].mxu0
      %v4334 = vadd.f32 0.0, %v4333
      %v4335 = vpop.f32.mrb[0].mxu0
      %4336 = vmatprep.mubr.f32.mxu0 0.0
      %4337 = vmatmul.mubr.f32.gmra.mrb[0].mxu0 %v3419
      %v4338 = vpop.f32.mrb[0].mxu0
      %v4339 = vadd.f32 0.0, %v4338
      %v4340 = vpop.f32.mrb[0].mxu0
      %4341 = vmatprep.mubr.f32.mxu0 0.0
      %4342 = vmatmul.mubr.f32.gmra.mrb[0].mxu0 %v3422
      %v4343 = vpop.f32.mrb[0].mxu0
      %v4344 = vadd.f32 0.0, %v4343
      %v4345 = vpop.f32.mrb[0].mxu0
      %4346 = vmatprep.mubr.f32.mxu0 0.0
      %4347 = vmatmul.mubr.f32.gmra.mrb[0].mxu0 %v3425
      %v4348 = vpop.f32.mrb[0].mxu0
      %v4349 = vadd.f32 0.0, %v4348
      %v4350 = vpop.f32.mrb[0].mxu0
      %4351 = vmatprep.mubr.f32.mxu0 0.0
      %4352 = vmatmul.mubr.f32.gmra.mrb[0].mxu0 %v3428
      %v4353 = vpop.f32.mrb[0].mxu0
      %v4354 = vadd.f32 0.0, %v4353
      %v4355 = vpop.f32.mrb[0].mxu0
      %4356 = vmatprep.mubr.f32.mxu0 0.0
      %4357 = vmatmul.mubr.f32.gmra.mrb[0].mxu0 %v3431
      %v4358 = vpop.f32.mrb[0].mxu0
      %v4359 = vadd.f32 0.0, %v4358
      %v4360 = vpop.f32.mrb[0].mxu0
      %4361 = vmatprep.mubr.f32.mxu0 0.0
      %4362 = vmatmul.mubr.f32.gmra.mrb[0].mxu0 %v3434
      %v4363 = vpop.f32.mrb[0].mxu0
      %v4364 = vadd.f32 0.0, %v4363
      %v4365 = vpop.f32.mrb[0].mxu0
      %4366 = vmatprep.mubr.f32.mxu0 0.0
      %4367 = vmatmul.mubr.f32.gmra.mrb[0].mxu0 %v3437
      %v4368 = vpop.f32.mrb[0].mxu0
      %v4369 = vadd.f32 0.0, %v4368
      %v4370 = vpop.f32.mrb[0].mxu0
      %4371 = vmatprep.mubr.f32.mxu0 0.0
      %4372 = vmatmul.mubr.f32.gmra.mrb[0].mxu0 %v3440
      %v4373 = vpop.f32.mrb[0].mxu0
      %v4374 = vadd.f32 0.0, %v4373
      %v4375 = vpop.f32.mrb[0].mxu0
      %4376 = vmatprep.mubr.f32.mxu0 0.0
      %4377 = vmatmul.mubr.f32.gmra.mrb[0].mxu0 %v3443
      %v4378 = vpop.f32.mrb[0].mxu0
      %v4379 = vadd.f32 0.0, %v4378
      %v4380 = vpop.f32.mrb[0].mxu0
      %4381 = vmatprep.mubr.f32.mxu0 0.0
      %4382 = vmatmul.mubr.f32.gmra.mrb[0].mxu0 %v3446
      %v4383 = vpop.f32.mrb[0].mxu0
      %v4384 = vadd.f32 0.0, %v4383
      %v4385 = vpop.f32.mrb[0].mxu0
      %4386 = vmatprep.mubr.f32.mxu0 0.0
      %4387 = vmatmul.mubr.f32.gmra.mrb[0].mxu0 %v3449
      %v4388 = vpop.f32.mrb[0].mxu0
      %v4389 = vadd.f32 0.0, %v4388
      %v4390 = vpop.f32.mrb[0].mxu0
      %4391 = vmatprep.mubr.f32.mxu0 0.0
      %4392 = vmatmul.mubr.f32.gmra.mrb[0].mxu0 %v3452
      %v4393 = vpop.f32.mrb[0].mxu0
      %v4394 = vadd.f32 0.0, %v4393
      %v4395 = vpop.f32.mrb[0].mxu0
      %4396 = vmatprep.mubr.f32.mxu0 0.0
      %4397 = vmatmul.mubr.f32.gmra.mrb[0].mxu0 %v3455
      %v4398 = vpop.f32.mrb[0].mxu0
      %v4399 = vadd.f32 0.0, %v4398
      %v4400 = vpop.f32.mrb[0].mxu0
      %4401 = vmatprep.mubr.f32.mxu0 0.0
      %4402 = vmatmul.mubr.f32.gmra.mrb[0].mxu0 %v3458
      %v4403 = vpop.f32.mrb[0].mxu0
      %v4404 = vadd.f32 0.0, %v4403
      %v4405 = vpop.f32.mrb[0].mxu0
      %4406 = vmatprep.mubr.f32.mxu0 0.0
      %4407 = vmatmul.mubr.f32.gmra.mrb[0].mxu0 %v3461
      %v4408 = vpop.f32.mrb[0].mxu0
      %v4409 = vadd.f32 0.0, %v4408
      %v4410 = vpop.f32.mrb[0].mxu0
      %4411 = vmatprep.mubr.f32.mxu0 0.0
      %4412 = vmatmul.mubr.f32.gmra.mrb[0].mxu0 %v3464
      %v4413 = vpop.f32.mrb[0].mxu0
      %v4414 = vadd.f32 0.0, %v4413
      %v4415 = vpop.f32.mrb[0].mxu0
      %4416 = vmatprep.mubr.f32.mxu0 0.0
      %4417 = vmatmul.mubr.f32.gmra.mrb[0].mxu0 %v3467
      %v4418 = vpop.f32.mrb[0].mxu0
      %v4419 = vadd.f32 0.0, %v4418
      %v4420 = vpop.f32.mrb[0].mxu0
      %4421 = vmatprep.mubr.f32.mxu0 0.0
      %4422 = vmatmul.mubr.f32.gmra.mrb[0].mxu0 %v3470
      %v4423 = vpop.f32.mrb[0].mxu0
      %v4424 = vadd.f32 0.0, %v4423
      %v4425 = vpop.f32.mrb[0].mxu0
      %4426 = vmatprep.mubr.f32.mxu0 0.0
      %4427 = vmatmul.mubr.f32.gmra.mrb[0].mxu0 %v3473
      %v4428 = vpop.f32.mrb[0].mxu0
      %v4429 = vadd.f32 0.0, %v4428
      %v4430 = vpop.f32.mrb[0].mxu0
      %4431 = vmatprep.mubr.f32.mxu0 0.0
      %4432 = vmatmul.mubr.f32.gmra.mrb[0].mxu0 %v3476
      %v4433 = vpop.f32.mrb[0].mxu0
      %v4434 = vadd.f32 0.0, %v4433
      %v4435 = vpop.f32.mrb[0].mxu0
      %4436 = vmatprep.mubr.f32.mxu0 0.0
      %4437 = vmatmul.mubr.f32.gmra.mrb[0].mxu0 %v3479
      %v4438 = vpop.f32.mrb[0].mxu0
      %v4439 = vadd.f32 0.0, %v4438
      %v4440 = vpop.f32.mrb[0].mxu0
      %4441 = vmatprep.mubr.f32.mxu0 0.0
      %4442 = vmatmul.mubr.f32.gmra.mrb[0].mxu0 %v3482
      %v4443 = vpop.f32.mrb[0].mxu0
      %v4444 = vadd.f32 0.0, %v4443
      %v4445 = vpop.f32.mrb[0].mxu0
      %4446 = vmatprep.mubr.f32.mxu0 0.0
      %4447 = vmatmul.mubr.f32.gmra.mrb[0].mxu0 %v3485
      %v4448 = vpop.f32.mrb[0].mxu0
      %v4449 = vadd.f32 0.0, %v4448
      %v4450 = vpop.f32.mrb[0].mxu0
      %4451 = vmatprep.mubr.f32.mxu0 0.0
      %4452 = vmatmul.mubr.f32.gmra.mrb[0].mxu0 %v3488
      %v4453 = vpop.f32.mrb[0].mxu0
      %v4454 = vadd.f32 0.0, %v4453
      %v4455 = vpop.f32.mrb[0].mxu0
      %4456 = vmatprep.mubr.f32.mxu0 0.0
      %4457 = vmatmul.mubr.f32.gmra.mrb[0].mxu0 %v3491
      %v4458 = vpop.f32.mrb[0].mxu0
      %v4459 = vadd.f32 0.0, %v4458
      %v4460 = vpop.f32.mrb[0].mxu0
      %4461 = vmatprep.mubr.f32.mxu0 0.0
      %4462 = vmatmul.mubr.f32.gmra.mrb[0].mxu0 %v3494
      %v4463 = vpop.f32.mrb[0].mxu0
      %v4464 = vadd.f32 0.0, %v4463
      %v4465 = vpop.f32.mrb[0].mxu0
      %4466 = vmatprep.mubr.f32.mxu0 0.0
      %4467 = vmatmul.mubr.f32.gmra.mrb[0].mxu0 %v3497
      %v4468 = vpop.f32.mrb[0].mxu0
      %v4469 = vadd.f32 0.0, %v4468
      %v4470 = vpop.f32.mrb[0].mxu0
      %4471 = vmatprep.mubr.f32.mxu0 0.0
      %4472 = vmatmul.mubr.f32.gmra.mrb[0].mxu0 %v3500
      %v4473 = vpop.f32.mrb[0].mxu0
      %v4474 = vadd.f32 0.0, %v4473
      %v4475 = vpop.f32.mrb[0].mxu0
      %4476 = vmatprep.mubr.f32.mxu0 0.0
      %4477 = vmatmul.mubr.f32.gmra.mrb[0].mxu0 %v3503
      %v4478 = vpop.f32.mrb[0].mxu0
      %v4479 = vadd.f32 0.0, %v4478
      %v4480 = vpop.f32.mrb[0].mxu0
      %4481 = vmatprep.mubr.f32.mxu0 0.0
      %4482 = vmatmul.mubr.f32.gmra.mrb[0].mxu0 %v3506
      %v4483 = vpop.f32.mrb[0].mxu0
      %v4484 = vadd.f32 0.0, %v4483
      %v4485 = vpop.f32.mrb[0].mxu0
      %4486 = vmatprep.mubr.f32.mxu0 0.0
      %4487 = vmatmul.mubr.f32.gmra.mrb[0].mxu0 %v3509
      %v4488 = vpop.f32.mrb[0].mxu0
      %v4489 = vadd.f32 0.0, %v4488
      %v4490 = vpop.f32.mrb[0].mxu0
      %4491 = vmatprep.mubr.f32.mxu0 0.0
      %4492 = vmatmul.mubr.f32.gmra.mrb[0].mxu0 %v3512
      %v4493 = vpop.f32.mrb[0].mxu0
      %v4494 = vadd.f32 0.0, %v4493
      %v4495 = vpop.f32.mrb[0].mxu0
      %4496 = vmatprep.mubr.f32.mxu0 0.0
      %4497 = vmatmul.mubr.f32.gmra.mrb[0].mxu0 %v3515
      %v4498 = vpop.f32.mrb[0].mxu0
      %v4499 = vadd.f32 0.0, %v4498
      %v4500 = vpop.f32.mrb[0].mxu0
      %4501 = vmatprep.mubr.f32.mxu0 0.0
      %4502 = vmatmul.mubr.f32.gmra.mrb[0].mxu0 %v3518
      %v4503 = vpop.f32.mrb[0].mxu0
      %v4504 = vadd.f32 0.0, %v4503
      %v4505 = vpop.f32.mrb[0].mxu0
      %4506 = vmatprep.mubr.f32.mxu0 0.0
      %4507 = vmatmul.mubr.f32.gmra.mrb[0].mxu0 %v3521
      %v4508 = vpop.f32.mrb[0].mxu0
      %v4509 = vadd.f32 0.0, %v4508
      %v4510 = vpop.f32.mrb[0].mxu0
      %4511 = vmatprep.mubr.f32.mxu0 0.0
      %4512 = vmatmul.mubr.f32.gmra.mrb[0].mxu0 %v3524
      %v4513 = vpop.f32.mrb[0].mxu0
      %v4514 = vadd.f32 0.0, %v4513
      %v4515 = vpop.f32.mrb[0].mxu0
      %4516 = vmatprep.mubr.f32.mxu0 0.0
      %4517 = vmatmul.mubr.f32.gmra.mrb[0].mxu0 %v3527
      %v4518 = vpop.f32.mrb[0].mxu0
      %v4519 = vadd.f32 0.0, %v4518
      %v4520 = vpop.f32.mrb[0].mxu0
      %4521 = vmatprep.mubr.f32.mxu0 0.0
      %4522 = vmatmul.mubr.f32.gmra.mrb[0].mxu0 %v3530
      %v4523 = vpop.f32.mrb[0].mxu0
      %v4524 = vadd.f32 0.0, %v4523
      %v4525 = vpop.f32.mrb[0].mxu0
      %4526 = vmatprep.mubr.f32.mxu0 0.0
      %4527 = vmatmul.mubr.f32.gmra.mrb[0].mxu0 %v3533
      %v4528 = vpop.f32.mrb[0].mxu0
      %v4529 = vadd.f32 0.0, %v4528
      %v4530 = vpop.f32.mrb[0].mxu0
      %4531 = vmatprep.mubr.f32.mxu0 0.0
      %4532 = vmatmul.mubr.f32.gmra.mrb[0].mxu0 %v3536
      %v4533 = vpop.f32.mrb[0].mxu0
      %v4534 = vadd.f32 0.0, %v4533
      %v4535 = vpop.f32.mrb[0].mxu0
      %4536 = vmatprep.mubr.f32.mxu0 0.0
      %4537 = vmatmul.mubr.f32.gmra.mrb[0].mxu0 %v3539
      %v4538 = vpop.f32.mrb[0].mxu0
      %v4539 = vadd.f32 0.0, %v4538
      %v4540 = vpop.f32.mrb[0].mxu0
      %4541 = vmatprep.mubr.f32.mxu0 0.0
      %4542 = vmatmul.mubr.f32.gmra.mrb[0].mxu0 %v3542
      %v4543 = vpop.f32.mrb[0].mxu0
      %v4544 = vadd.f32 0.0, %v4543
      %v4545 = vpop.f32.mrb[0].mxu0
      %4546 = vmatprep.mubr.f32.mxu0 0.0
      %4547 = vmatmul.mubr.f32.gmra.mrb[0].mxu0 %v3545
      %v4548 = vpop.f32.mrb[0].mxu0
      %v4549 = vadd.f32 0.0, %v4548
      %v4550 = vpop.f32.mrb[0].mxu0
      %4551 = vmatprep.mubr.f32.mxu0 0.0
      %4552 = vmatmul.mubr.f32.gmra.mrb[0].mxu0 %v3548
      %v4553 = vpop.f32.mrb[0].mxu0
      %v4554 = vadd.f32 0.0, %v4553
      %v4555 = vpop.f32.mrb[0].mxu0
      %4556 = vmatprep.mubr.f32.mxu0 0.0
      %4557 = vmatmul.mubr.f32.gmra.mrb[0].mxu0 %v3551
      %v4558 = vpop.f32.mrb[0].mxu0
      %v4559 = vadd.f32 0.0, %v4558
      %v4560 = vpop.f32.mrb[0].mxu0
      %4561 = vmatprep.mubr.f32.mxu0 0.0
      %4562 = vmatmul.mubr.f32.gmra.mrb[0].mxu0 %v3554
      %v4563 = vpop.f32.mrb[0].mxu0
      %v4564 = vadd.f32 0.0, %v4563
      %v4565 = vpop.f32.mrb[0].mxu0
      %4566 = vmatprep.mubr.f32.mxu0 0.0
      %4567 = vmatmul.mubr.f32.gmra.mrb[0].mxu0 %v3557
      %v4568 = vpop.f32.mrb[0].mxu0
      %v4569 = vadd.f32 0.0, %v4568
      %v4570 = vpop.f32.mrb[0].mxu0
      %4571 = vmatprep.mubr.f32.mxu0 0.0
      %4572 = vmatmul.mubr.f32.gmra.mrb[0].mxu0 %v3560
      %v4573 = vpop.f32.mrb[0].mxu0
      %v4574 = vadd.f32 0.0, %v4573
      %v4575 = vpop.f32.mrb[0].mxu0
      %4576 = vmatprep.mubr.f32.mxu0 0.0
      %4577 = vmatmul.mubr.f32.gmra.mrb[0].mxu0 %v3563
      %v4578 = vpop.f32.mrb[0].mxu0
      %v4579 = vadd.f32 0.0, %v4578
      %v4580 = vpop.f32.mrb[0].mxu0
      %4581 = vmatprep.mubr.f32.mxu0 0.0
      %4582 = vmatmul.mubr.f32.gmra.mrb[0].mxu0 %v3566
      %v4583 = vpop.f32.mrb[0].mxu0
      %v4584 = vadd.f32 0.0, %v4583
      %v4585 = vpop.f32.mrb[0].mxu0
      %4586 = vmatprep.mubr.f32.mxu0 0.0
      %4587 = vmatmul.mubr.f32.gmra.mrb[0].mxu0 %v3569
      %v4588 = vpop.f32.mrb[0].mxu0
      %v4589 = vadd.f32 0.0, %v4588
      %v4590 = vpop.f32.mrb[0].mxu0
      %4591 = vmatprep.mubr.f32.mxu0 0.0
      %4592 = vmatmul.mubr.f32.gmra.mrb[0].mxu0 %v3572
      %v4593 = vpop.f32.mrb[0].mxu0
      %v4594 = vadd.f32 0.0, %v4593
      %v4595 = vpop.f32.mrb[0].mxu0
      %4596 = vmatprep.mubr.f32.mxu0 0.0
      %4597 = vmatmul.mubr.f32.gmra.mrb[0].mxu0 %v3575
      %v4598 = vpop.f32.mrb[0].mxu0
      %v4599 = vadd.f32 0.0, %v4598
      %v4600 = vpop.f32.mrb[0].mxu0
      %4601 = vmatprep.mubr.f32.mxu0 0.0
      %4602 = vmatmul.mubr.f32.gmra.mrb[0].mxu0 %v3578
      %v4603 = vpop.f32.mrb[0].mxu0
      %v4604 = vadd.f32 0.0, %v4603
      %v4605 = vpop.f32.mrb[0].mxu0
      %4606 = vmatprep.mubr.f32.mxu0 0.0
      %4607 = vmatmul.mubr.f32.gmra.mrb[0].mxu0 %v3581
      %v4608 = vpop.f32.mrb[0].mxu0
      %v4609 = vadd.f32 0.0, %v4608
      %v4610 = vpop.f32.mrb[0].mxu0
      %4611 = vmatprep.mubr.f32.mxu0 0.0
      %4612 = vmatmul.mubr.f32.gmra.mrb[0].mxu0 %v3584
      %v4613 = vpop.f32.mrb[0].mxu0
      %v4614 = vadd.f32 0.0, %v4613
      %v4615 = vpop.f32.mrb[0].mxu0
      %4616 = vmatprep.mubr.f32.mxu0 0.0
      %4617 = vmatmul.mubr.f32.gmra.mrb[0].mxu0 %v3587
      %v4618 = vpop.f32.mrb[0].mxu0
      %v4619 = vadd.f32 0.0, %v4618
      %v4620 = vpop.f32.mrb[0].mxu0
      %4621 = vmatprep.mubr.f32.mxu0 0.0
      %4622 = vmatmul.mubr.f32.gmra.mrb[0].mxu0 %v3590
      %v4623 = vpop.f32.mrb[0].mxu0
      %v4624 = vadd.f32 0.0, %v4623
      %v4625 = vpop.f32.mrb[0].mxu0
      %4626 = vmatprep.mubr.f32.mxu0 0.0
      %4627 = vmatmul.mubr.f32.gmra.mrb[0].mxu0 %v3593
      %v4628 = vpop.f32.mrb[0].mxu0
      %v4629 = vadd.f32 0.0, %v4628
      %v4630 = vpop.f32.mrb[0].mxu0
      %4631 = vmatprep.mubr.f32.mxu0 0.0
      %4632 = vmatmul.mubr.f32.gmra.mrb[0].mxu0 %v3596
      %v4633 = vpop.f32.mrb[0].mxu0
      %v4634 = vadd.f32 0.0, %v4633
      %v4635 = vpop.f32.mrb[0].mxu0
      %4636 = vmatprep.mubr.f32.mxu0 0.0
      %4637 = vmatmul.mubr.f32.gmra.mrb[0].mxu0 %v3599
      %v4638 = vpop.f32.mrb[0].mxu0
      %v4639 = vadd.f32 0.0, %v4638
      %v4640 = vpop.f32.mrb[0].mxu0
      %4641 = vmatprep.mubr.f32.mxu0 0.0
      %4642 = vmatmul.mubr.f32.gmra.mrb[0].mxu0 %v3602
      %v4643 = vpop.f32.mrb[0].mxu0
      %v4644 = vadd.f32 0.0, %v4643
      %v4645 = vpop.f32.mrb[0].mxu0
      %4646 = vmatprep.mubr.f32.mxu0 0.0
      %4647 = vmatmul.mubr.f32.gmra.mrb[0].mxu0 %v3605
      %v4648 = vpop.f32.mrb[0].mxu0
      %v4649 = vadd.f32 0.0, %v4648
      %v4650 = vpop.f32.mrb[0].mxu0
      %4651 = vmatprep.mubr.f32.mxu0 0.0
      %4652 = vmatmul.mubr.f32.gmra.mrb[0].mxu0 %v3608
      %v4653 = vpop.f32.mrb[0].mxu0
      %v4654 = vadd.f32 0.0, %v4653
      %v4655 = vpop.f32.mrb[0].mxu0
      %4656 = vmatprep.mubr.f32.mxu0 0.0
      %4657 = vmatmul.mubr.f32.gmra.mrb[0].mxu0 %v3611
      %v4658 = vpop.f32.mrb[0].mxu0
      %v4659 = vadd.f32 0.0, %v4658
      %v4660 = vpop.f32.mrb[0].mxu0
      %4661 = vmatprep.mubr.f32.mxu0 0.0
      %4662 = vmatmul.mubr.f32.gmra.mrb[0].mxu0 %v3614
      %v4663 = vpop.f32.mrb[0].mxu0
      %v4664 = vadd.f32 0.0, %v4663
      %v4665 = vpop.f32.mrb[0].mxu0
      %4666 = vmatprep.mubr.f32.mxu0 0.0
      %4667 = vmatmul.mubr.f32.gmra.mrb[0].mxu0 %v3617
      %v4668 = vpop.f32.mrb[0].mxu0
      %v4669 = vadd.f32 0.0, %v4668
      %v4670 = vpop.f32.mrb[0].mxu0
      %4671 = vmatprep.mubr.f32.mxu0 0.0
      %4672 = vmatmul.mubr.f32.gmra.mrb[0].mxu0 %v3620
      %v4673 = vpop.f32.mrb[0].mxu0
      %v4674 = vadd.f32 0.0, %v4673
      %v4675 = vpop.f32.mrb[0].mxu0
      %4676 = vmatprep.mubr.f32.mxu0 0.0
      %4677 = vmatmul.mubr.f32.gmra.mrb[0].mxu0 %v3623
      %v4678 = vpop.f32.mrb[0].mxu0
      %v4679 = vadd.f32 0.0, %v4678
      %v4680 = vpop.f32.mrb[0].mxu0
      %4681 = vmatprep.mubr.f32.mxu0 0.0
      %4682 = vmatmul.mubr.f32.gmra.mrb[0].mxu0 %v3626
      %v4683 = vpop.f32.mrb[0].mxu0
      %v4684 = vadd.f32 0.0, %v4683
      %v4685 = vpop.f32.mrb[0].mxu0
      %4686 = vmatprep.mubr.f32.mxu0 0.0
      %4687 = vmatmul.mubr.f32.gmra.mrb[0].mxu0 %v3629
      %v4688 = vpop.f32.mrb[0].mxu0
      %v4689 = vadd.f32 0.0, %v4688
      %v4690 = vpop.f32.mrb[0].mxu0
      %4691 = vmatprep.mubr.f32.mxu0 0.0
      %4692 = vmatmul.mubr.f32.gmra.mrb[0].mxu0 %v3632
      %v4693 = vpop.f32.mrb[0].mxu0
      %v4694 = vadd.f32 0.0, %v4693
      %v4695 = vpop.f32.mrb[0].mxu0
      %4696 = vmatprep.mubr.f32.mxu0 0.0
      %4697 = vmatmul.mubr.f32.gmra.mrb[0].mxu0 %v3635
      %v4698 = vpop.f32.mrb[0].mxu0
      %v4699 = vadd.f32 0.0, %v4698
      %v4700 = vpop.f32.mrb[0].mxu0
      %4701 = vmatprep.mubr.f32.mxu0 0.0
      %4702 = vmatmul.mubr.f32.gmra.mrb[0].mxu0 %v3638
      %v4703 = vpop.f32.mrb[0].mxu0
      %v4704 = vadd.f32 0.0, %v4703
      %v4705 = vpop.f32.mrb[0].mxu0
      %4706 = vmatprep.mubr.f32.mxu0 0.0
      %4707 = vmatmul.mubr.f32.gmra.mrb[0].mxu0 %v3641
      %v4708 = vpop.f32.mrb[0].mxu0
      %v4709 = vadd.f32 0.0, %v4708
      %v4710 = vpop.f32.mrb[0].mxu0
      %4711 = vmatprep.mubr.f32.mxu0 0.0
      %4712 = vmatmul.mubr.f32.gmra.mrb[0].mxu0 %v3644
      %v4713 = vpop.f32.mrb[0].mxu0
      %v4714 = vadd.f32 0.0, %v4713
      %v4715 = vpop.f32.mrb[0].mxu0
      %4716 = vmatprep.mubr.f32.mxu0 0.0
      %4717 = vmatmul.mubr.f32.gmra.mrb[0].mxu0 %v3647
      %v4718 = vpop.f32.mrb[0].mxu0
      %v4719 = vadd.f32 0.0, %v4718
      %v4720 = vpop.f32.mrb[0].mxu0
      %4721 = vmatprep.mubr.f32.mxu0 0.0
      %4722 = vmatmul.mubr.f32.gmra.mrb[0].mxu0 %v3650
      %v4723 = vpop.f32.mrb[0].mxu0
      %v4724 = vadd.f32 0.0, %v4723
      %v4725 = vpop.f32.mrb[0].mxu0
      %4726 = vmatprep.mubr.f32.mxu0 0.0
      %4727 = vmatmul.mubr.f32.gmra.mrb[0].mxu0 %v3653
      %v4728 = vpop.f32.mrb[0].mxu0
      %v4729 = vadd.f32 0.0, %v4728
      %v4730 = vpop.f32.mrb[0].mxu0
      %4731 = vmatprep.mubr.f32.mxu0 0.0
      %4732 = vmatmul.mubr.f32.gmra.mrb[0].mxu0 %v3656
      %v4733 = vpop.f32.mrb[0].mxu0
      %v4734 = vadd.f32 0.0, %v4733
      %v4735 = vpop.f32.mrb[0].mxu0
      %4736 = vmatprep.mubr.f32.mxu0 0.0
      %4737 = vmatmul.mubr.f32.gmra.mrb[0].mxu0 %v3659
      %v4738 = vpop.f32.mrb[0].mxu0
      %v4739 = vadd.f32 0.0, %v4738
      %v4740 = vpop.f32.mrb[0].mxu0
      %4741 = vmatprep.mubr.f32.mxu0 0.0
      %4742 = vmatmul.mubr.f32.gmra.mrb[0].mxu0 %v3662
      %v4743 = vpop.f32.mrb[0].mxu0
      %v4744 = vadd.f32 0.0, %v4743
      %v4745 = vpop.f32.mrb[0].mxu0
      %4746 = vmatprep.mubr.f32.mxu0 0.0
      %4747 = vmatmul.mubr.f32.gmra.mrb[0].mxu0 %v3665
      %v4748 = vpop.f32.mrb[0].mxu0
      %v4749 = vadd.f32 0.0, %v4748
      %v4750 = vpop.f32.mrb[0].mxu0
      %4751 = vmatprep.mubr.f32.mxu0 0.0
      %4752 = vmatmul.mubr.f32.gmra.mrb[0].mxu0 %v3668
      %v4753 = vpop.f32.mrb[0].mxu0
      %v4754 = vadd.f32 0.0, %v4753
      %v4755 = vpop.f32.mrb[0].mxu0
      %4756 = vmatprep.mubr.f32.mxu0 0.0
      %4757 = vmatmul.mubr.f32.gmra.mrb[0].mxu0 %v3671
      %v4758 = vpop.f32.mrb[0].mxu0
      %v4759 = vadd.f32 0.0, %v4758
      %v4760 = vpop.f32.mrb[0].mxu0
      %4761 = vmatprep.mubr.f32.mxu0 0.0
      %4762 = vmatmul.mubr.f32.gmra.mrb[0].mxu0 %v3674
      %v4763 = vpop.f32.mrb[0].mxu0
      %v4764 = vadd.f32 0.0, %v4763
      %v4765 = vpop.f32.mrb[0].mxu0
      %4766 = vmatprep.mubr.f32.mxu0 0.0
      %4767 = vmatmul.mubr.f32.gmra.mrb[0].mxu0 %v3677
      %v4768 = vpop.f32.mrb[0].mxu0
      %v4769 = vadd.f32 0.0, %v4768
      %v4770 = vpop.f32.mrb[0].mxu0
      %4771 = vmatprep.mubr.f32.mxu0 0.0
      %4772 = vmatmul.mubr.f32.gmra.mrb[0].mxu0 %v3680
      %v4773 = vpop.f32.mrb[0].mxu0
      %v4774 = vadd.f32 0.0, %v4773
      %v4775 = vpop.f32.mrb[0].mxu0
      %4776 = vmatprep.mubr.f32.mxu0 0.0
      %4777 = vmatmul.mubr.f32.gmra.mrb[0].mxu0 %v3683
      %v4778 = vpop.f32.mrb[0].mxu0
      %v4779 = vadd.f32 0.0, %v4778
      %v4780 = vpop.f32.mrb[0].mxu0
      %4781 = vmatprep.mubr.f32.mxu0 0.0
      %4782 = vmatmul.mubr.f32.gmra.mrb[0].mxu0 %v3686
      %v4783 = vpop.f32.mrb[0].mxu0
      %v4784 = vadd.f32 0.0, %v4783
      %v4785 = vpop.f32.mrb[0].mxu0
      %4786 = vmatprep.mubr.f32.mxu0 0.0
      %4787 = vmatmul.mubr.f32.gmra.mrb[0].mxu0 %v3689
      %v4788 = vpop.f32.mrb[0].mxu0
      %v4789 = vadd.f32 0.0, %v4788
      %v4790 = vpop.f32.mrb[0].mxu0
      %4791 = vmatprep.mubr.f32.mxu0 0.0
      %4792 = vmatmul.mubr.f32.gmra.mrb[0].mxu0 %v3692
      %v4793 = vpop.f32.mrb[0].mxu0
      %v4794 = vadd.f32 0.0, %v4793
      %v4795 = vpop.f32.mrb[0].mxu0
      %4796 = vmatprep.mubr.f32.mxu0 0.0
      %4797 = vmatmul.mubr.f32.gmra.mrb[0].mxu0 %v3695
      %v4798 = vpop.f32.mrb[0].mxu0
      %v4799 = vadd.f32 0.0, %v4798
      %v4800 = vpop.f32.mrb[0].mxu0
      %4801 = vmatprep.mubr.f32.mxu0 0.0
      %4802 = vmatmul.mubr.f32.gmra.mrb[0].mxu0 %v3698
      %v4803 = vpop.f32.mrb[0].mxu0
      %v4804 = vadd.f32 0.0, %v4803
      %v4805 = vpop.f32.mrb[0].mxu0
      %4806 = vmatprep.mubr.f32.mxu0 0.0
      %4807 = vmatmul.mubr.f32.gmra.mrb[0].mxu0 %v3701
      %v4808 = vpop.f32.mrb[0].mxu0
      %v4809 = vadd.f32 0.0, %v4808
      %v4810 = vpop.f32.mrb[0].mxu0
      %4811 = vmatprep.mubr.f32.mxu0 0.0
      %4812 = vmatmul.mubr.f32.gmra.mrb[0].mxu0 %v3704
      %v4813 = vpop.f32.mrb[0].mxu0
      %v4814 = vadd.f32 0.0, %v4813
      %v4815 = vpop.f32.mrb[0].mxu0
      %4816 = vmatprep.mubr.f32.mxu0 0.0
      %4817 = vmatmul.mubr.f32.gmra.mrb[0].mxu0 %v3707
      %v4818 = vpop.f32.mrb[0].mxu0
      %v4819 = vadd.f32 0.0, %v4818
      %v4820 = vpop.f32.mrb[0].mxu0
      %4821 = vmatprep.mubr.f32.mxu0 0.0
      %4822 = vmatmul.mubr.f32.gmra.mrb[0].mxu0 %v3710
      %v4823 = vpop.f32.mrb[0].mxu0
      %v4824 = vadd.f32 0.0, %v4823
      %v4825 = vpop.f32.mrb[0].mxu0
      %4826 = vmatprep.mubr.f32.mxu0 0.0
      %4827 = vmatmul.mubr.f32.gmra.mrb[0].mxu0 %v3713
      %v4828 = vpop.f32.mrb[0].mxu0
      %v4829 = vadd.f32 0.0, %v4828
      %v4830 = vpop.f32.mrb[0].mxu0
      %4831 = vmatprep.mubr.f32.mxu0 0.0
      %4832 = vmatmul.mubr.f32.gmra.mrb[0].mxu0 %v3716
      %v4833 = vpop.f32.mrb[0].mxu0
      %v4834 = vadd.f32 0.0, %v4833
      %v4835 = vpop.f32.mrb[0].mxu0
      %4836 = vmatprep.mubr.f32.mxu0 0.0
      %4837 = vmatmul.mubr.f32.gmra.mrb[0].mxu0 %v3719
      %v4838 = vpop.f32.mrb[0].mxu0
      %v4839 = vadd.f32 0.0, %v4838
      %v4840 = vpop.f32.mrb[0].mxu0
      %4841 = vmatprep.mubr.f32.mxu0 0.0
      %4842 = vmatmul.mubr.f32.gmra.mrb[0].mxu0 %v3722
      %v4843 = vpop.f32.mrb[0].mxu0
      %v4844 = vadd.f32 0.0, %v4843
      %v4845 = vpop.f32.mrb[0].mxu0
      %4846 = vmatprep.mubr.f32.mxu0 0.0
      %4847 = vmatmul.mubr.f32.gmra.mrb[0].mxu0 %v3725
      %v4848 = vpop.f32.mrb[0].mxu0
      %v4849 = vadd.f32 0.0, %v4848
      %v4850 = vpop.f32.mrb[0].mxu0
      %4851 = vmatprep.mubr.f32.mxu0 0.0
      %4852 = vmatmul.mubr.f32.gmra.mrb[0].mxu0 %v3728
      %v4853 = vpop.f32.mrb[0].mxu0
      %v4854 = vadd.f32 0.0, %v4853
      %v4855 = vpop.f32.mrb[0].mxu0
      %4856 = vmatprep.mubr.f32.mxu0 0.0
      %4857 = vmatmul.mubr.f32.gmra.mrb[0].mxu0 %v3731
      %v4858 = vpop.f32.mrb[0].mxu0
      %v4859 = vadd.f32 0.0, %v4858
      %v4860 = vpop.f32.mrb[0].mxu0
      %4861 = vmatprep.mubr.f32.mxu0 0.0
      %4862 = vmatmul.mubr.f32.gmra.mrb[0].mxu0 %v3734
      %v4863 = vpop.f32.mrb[0].mxu0
      %v4864 = vadd.f32 0.0, %v4863
      %v4865 = vpop.f32.mrb[0].mxu0
      %4866 = vmatprep.mubr.f32.mxu0 0.0
      %4867 = vmatmul.mubr.f32.gmra.mrb[0].mxu0 %v3737
      %v4868 = vpop.f32.mrb[0].mxu0
      %v4869 = vadd.f32 0.0, %v4868
      %v4870 = vpop.f32.mrb[0].mxu0
      %4871 = vmatprep.mubr.f32.mxu0 0.0
      %4872 = vmatmul.mubr.f32.gmra.mrb[0].mxu0 %v3740
      %v4873 = vpop.f32.mrb[0].mxu0
      %v4874 = vadd.f32 0.0, %v4873
      %v4875 = vpop.f32.mrb[0].mxu0
      %4876 = vmatprep.mubr.f32.mxu0 0.0
      %4877 = vmatmul.mubr.f32.gmra.mrb[0].mxu0 %v3743
      %v4878 = vpop.f32.mrb[0].mxu0
      %v4879 = vadd.f32 0.0, %v4878
      %v4880 = vpop.f32.mrb[0].mxu0
      %4881 = vmatprep.mubr.f32.mxu0 0.0
      %4882 = vmatmul.mubr.f32.gmra.mrb[0].mxu0 %v3746
      %v4883 = vpop.f32.mrb[0].mxu0
      %v4884 = vadd.f32 0.0, %v4883
      %v4885 = vpop.f32.mrb[0].mxu0
      %4886 = vmatprep.mubr.f32.mxu0 0.0
      %4887 = vmatmul.mubr.f32.gmra.mrb[0].mxu0 %v3749
      %v4888 = vpop.f32.mrb[0].mxu0
      %v4889 = vadd.f32 0.0, %v4888
      %v4890 = vpop.f32.mrb[0].mxu0
      %4891 = vmatprep.mubr.f32.mxu0 0.0
      %4892 = vmatmul.mubr.f32.gmra.mrb[0].mxu0 %v3752
      %v4893 = vpop.f32.mrb[0].mxu0
      %v4894 = vadd.f32 0.0, %v4893
      %v4895 = vpop.f32.mrb[0].mxu0
      %4896 = vmatprep.mubr.f32.mxu0 0.0
      %4897 = vmatmul.mubr.f32.gmra.mrb[0].mxu0 %v3755
      %v4898 = vpop.f32.mrb[0].mxu0
      %v4899 = vadd.f32 0.0, %v4898
      %v4900 = vpop.f32.mrb[0].mxu0
      %4901 = vmatprep.mubr.f32.mxu0 0.0
      %4902 = vmatmul.mubr.f32.gmra.mrb[0].mxu0 %v3758
      %v4903 = vpop.f32.mrb[0].mxu0
      %v4904 = vadd.f32 0.0, %v4903
      %v4905 = vpop.f32.mrb[0].mxu0
      %4906 = vmatprep.mubr.f32.mxu0 0.0
      %4907 = vmatmul.mubr.f32.gmra.mrb[0].mxu0 %v3761
      %v4908 = vpop.f32.mrb[0].mxu0
      %v4909 = vadd.f32 0.0, %v4908
      %v4910 = vpop.f32.mrb[0].mxu0
      %4911 = vmatprep.mubr.f32.mxu0 0.0
      %4912 = vmatmul.mubr.f32.gmra.mrb[0].mxu0 %v3764
      %v4913 = vpop.f32.mrb[0].mxu0
      %v4914 = vadd.f32 0.0, %v4913
      %v4915 = vpop.f32.mrb[0].mxu0
      %4916 = vmatprep.mubr.f32.mxu0 0.0
      %4917 = vmatmul.mubr.f32.gmra.mrb[0].mxu0 %v3767
      %v4918 = vpop.f32.mrb[0].mxu0
      %v4919 = vadd.f32 0.0, %v4918
      %v4920 = vpop.f32.mrb[0].mxu0
      %4921 = vmatprep.mubr.f32.mxu0 0.0
      %4922 = vmatmul.mubr.f32.gmra.mrb[0].mxu0 %v3770
      %v4923 = vpop.f32.mrb[0].mxu0
      %v4924 = vadd.f32 0.0, %v4923
      %v4925 = vpop.f32.mrb[0].mxu0
      %4926 = vmatprep.mubr.f32.mxu0 0.0
      %4927 = vmatmul.mubr.f32.gmra.mrb[0].mxu0 %v3773
      %v4928 = vpop.f32.mrb[0].mxu0
      %v4929 = vadd.f32 0.0, %v4928
      %v4930 = vpop.f32.mrb[0].mxu0
      %4931 = vmatprep.mubr.f32.mxu0 0.0
      %4932 = vmatmul.mubr.f32.gmra.mrb[0].mxu0 %v3776
      %v4933 = vpop.f32.mrb[0].mxu0
      %v4934 = vadd.f32 0.0, %v4933
      %v4935 = vpop.f32.mrb[0].mxu0
      %4936 = vmatprep.mubr.f32.mxu0 0.0
      %4937 = vmatmul.mubr.f32.gmra.mrb[0].mxu0 %v3779
      %v4938 = vpop.f32.mrb[0].mxu0
      %v4939 = vadd.f32 0.0, %v4938
      %v4940 = vpop.f32.mrb[0].mxu0
      %4941 = vmatprep.mubr.f32.mxu0 0.0
      %4942 = vmatmul.mubr.f32.gmra.mrb[0].mxu0 %v3782
      %v4943 = vpop.f32.mrb[0].mxu0
      %v4944 = vadd.f32 0.0, %v4943
      %v4945 = vpop.f32.mrb[0].mxu0
      %4946 = vmatprep.mubr.f32.mxu0 0.0
      %4947 = vmatmul.mubr.f32.gmra.mrb[0].mxu0 %v3785
      %v4948 = vpop.f32.mrb[0].mxu0
      %v4949 = vadd.f32 0.0, %v4948
      %v4950 = vpop.f32.mrb[0].mxu0
      %4951 = vmatprep.mubr.f32.mxu0 0.0
      %4952 = vmatmul.mubr.f32.gmra.mrb[0].mxu0 %v3788
      %v4953 = vpop.f32.mrb[0].mxu0
      %v4954 = vadd.f32 0.0, %v4953
      %v4955 = vpop.f32.mrb[0].mxu0
      %4956 = vmatprep.mubr.f32.mxu0 0.0
      %4957 = vmatmul.mubr.f32.gmra.mrb[0].mxu0 %v3791
      %v4958 = vpop.f32.mrb[0].mxu0
      %v4959 = vadd.f32 0.0, %v4958
      %v4960 = vpop.f32.mrb[0].mxu0
      %4961 = vmatprep.mubr.f32.mxu0 0.0
      %4962 = vmatmul.mubr.f32.gmra.mrb[0].mxu0 %v3794
      %v4963 = vpop.f32.mrb[0].mxu0
      %v4964 = vadd.f32 0.0, %v4963
      %v4965 = vpop.f32.mrb[0].mxu0
      %4966 = vmatprep.mubr.f32.mxu0 0.0
      %4967 = vmatmul.mubr.f32.gmra.mrb[0].mxu0 %v3797
      %v4968 = vpop.f32.mrb[0].mxu0
      %v4969 = vadd.f32 0.0, %v4968
      %v4970 = vpop.f32.mrb[0].mxu0
      %4971 = vmatprep.mubr.f32.mxu0 0.0
      %4972 = vmatmul.mubr.f32.gmra.mrb[0].mxu0 %v3800
      %v4973 = vpop.f32.mrb[0].mxu0
      %v4974 = vadd.f32 0.0, %v4973
      %v4975 = vpop.f32.mrb[0].mxu0
      %4976 = vmatprep.mubr.f32.mxu0 0.0
      %4977 = vmatmul.mubr.f32.gmra.mrb[0].mxu0 %v3803
      %v4978 = vpop.f32.mrb[0].mxu0
      %v4979 = vadd.f32 0.0, %v4978
      %v4980 = vpop.f32.mrb[0].mxu0
      %4981 = vmatprep.mubr.f32.mxu0 0.0
      %4982 = vmatmul.mubr.f32.gmra.mrb[0].mxu0 %v3806
      %v4983 = vpop.f32.mrb[0].mxu0
      %v4984 = vadd.f32 0.0, %v4983
      %v4985 = vpop.f32.mrb[0].mxu0
      %4986 = vmatprep.mubr.f32.mxu0 0.0
      %4987 = vmatmul.mubr.f32.gmra.mrb[0].mxu0 %v3809
      %v4988 = vpop.f32.mrb[0].mxu0
      %v4989 = vadd.f32 0.0, %v4988
      %v4990 = vpop.f32.mrb[0].mxu0
      %4991 = vmatprep.mubr.f32.mxu0 0.0
      %4992 = vmatmul.mubr.f32.gmra.mrb[0].mxu0 %v3812
      %v4993 = vpop.f32.mrb[0].mxu0
      %v4994 = vadd.f32 0.0, %v4993
      %v4995 = vpop.f32.mrb[0].mxu0
      %4996 = vmatprep.mubr.f32.mxu0 0.0
      %4997 = vmatmul.mubr.f32.gmra.mrb[0].mxu0 %v3815
      %v4998 = vpop.f32.mrb[0].mxu0
      %v4999 = vadd.f32 0.0, %v4998
      %v5000 = vpop.f32.mrb[0].mxu0
      %5001 = vmatprep.mubr.f32.mxu0 0.0
      %5002 = vmatmul.mubr.f32.gmra.mrb[0].mxu0 %v3818
      %v5003 = vpop.f32.mrb[0].mxu0
      %v5004 = vadd.f32 0.0, %v5003
      %v5005 = vpop.f32.mrb[0].mxu0
      %5006 = vmatprep.mubr.f32.mxu0 0.0
      %5007 = vmatmul.mubr.f32.gmra.mrb[0].mxu0 %v3821
      %v5008 = vpop.f32.mrb[0].mxu0
      %v5009 = vadd.f32 0.0, %v5008
      %v5010 = vpop.f32.mrb[0].mxu0
      %5011 = vmatprep.mubr.f32.mxu0 0.0
      %5012 = vmatmul.mubr.f32.gmra.mrb[0].mxu0 %v3824
      %v5013 = vpop.f32.mrb[0].mxu0
      %v5014 = vadd.f32 0.0, %v5013
      %v5015 = vpop.f32.mrb[0].mxu0
      %5016 = vmatprep.mubr.f32.mxu0 0.0
      %5017 = vmatmul.mubr.f32.gmra.mrb[0].mxu0 %v3827
      %v5018 = vpop.f32.mrb[0].mxu0
      %v5019 = vadd.f32 0.0, %v5018
      %v5020 = vpop.f32.mrb[0].mxu0
      %5021 = vmatprep.mubr.f32.mxu0 0.0
      %5022 = vmatmul.mubr.f32.gmra.mrb[0].mxu0 %v3830
      %v5023 = vpop.f32.mrb[0].mxu0
      %v5024 = vadd.f32 0.0, %v5023
      %v5025 = vpop.f32.mrb[0].mxu0
      %5026 = vmatprep.mubr.f32.mxu0 0.0
      %5027 = vmatmul.mubr.f32.gmra.mrb[0].mxu0 %v3833
      %v5028 = vpop.f32.mrb[0].mxu0
      %v5029 = vadd.f32 0.0, %v5028
      %v5030 = vpop.f32.mrb[0].mxu0
      %5031 = vmatprep.mubr.f32.mxu0 0.0
      %5032 = vmatmul.mubr.f32.gmra.mrb[0].mxu0 %v3836
      %v5033 = vpop.f32.mrb[0].mxu0
      %v5034 = vadd.f32 0.0, %v5033
      %v5035 = vpop.f32.mrb[0].mxu0
      %5036 = vmatprep.mubr.f32.mxu0 0.0
      %5037 = vmatmul.mubr.f32.gmra.mrb[0].mxu0 %v3839
      %v5038 = vpop.f32.mrb[0].mxu0
      %v5039 = vadd.f32 0.0, %v5038
      %v5040 = vpop.f32.mrb[0].mxu0
      %5041 = vmatprep.mubr.f32.mxu0 0.0
      %5042 = vmatmul.mubr.f32.gmra.mrb[0].mxu0 %v3842
      %v5043 = vpop.f32.mrb[0].mxu0
      %v5044 = vadd.f32 0.0, %v5043
      %v5045 = vpop.f32.mrb[0].mxu0
      %5046 = vmatprep.mubr.f32.mxu0 0.0
      %5047 = vmatmul.mubr.f32.gmra.mrb[0].mxu0 %v3845
      %v5048 = vpop.f32.mrb[0].mxu0
      %v5049 = vadd.f32 0.0, %v5048
      %v5050 = vpop.f32.mrb[0].mxu0
      %5051 = vmatprep.mubr.f32.mxu0 0.0
      %5052 = vmatmul.mubr.f32.gmra.mrb[0].mxu0 %v3848
      %v5053 = vpop.f32.mrb[0].mxu0
      %v5054 = vadd.f32 0.0, %v5053
      %v5055 = vpop.f32.mrb[0].mxu0
      %5056 = vmatprep.mubr.f32.mxu0 0.0
      %5057 = vmatmul.mubr.f32.gmra.mrb[0].mxu0 %v3851
      %v5058 = vpop.f32.mrb[0].mxu0
      %v5059 = vadd.f32 0.0, %v5058
      %v5060 = vpop.f32.mrb[0].mxu0
      %5061 = vmatprep.mubr.f32.mxu0 0.0
      %5062 = vmatmul.mubr.f32.gmra.mrb[0].mxu0 %v3854
      %v5063 = vpop.f32.mrb[0].mxu0
      %v5064 = vadd.f32 0.0, %v5063
      %v5065 = vpop.f32.mrb[0].mxu0
      %5066 = vmatprep.mubr.f32.mxu0 0.0
      %5067 = vmatmul.mubr.f32.gmra.mrb[0].mxu0 %v3857
      %v5068 = vpop.f32.mrb[0].mxu0
      %v5069 = vadd.f32 0.0, %v5068
      %v5070 = vpop.f32.mrb[0].mxu0
      %5071 = vmatprep.mubr.f32.mxu0 0.0
      %5072 = vmatmul.mubr.f32.gmra.mrb[0].mxu0 %v3860
      %v5073 = vpop.f32.mrb[0].mxu0
      %v5074 = vadd.f32 0.0, %v5073
      %v5075 = vpop.f32.mrb[0].mxu0
      %5076 = vmatprep.mubr.f32.mxu0 0.0
      %5077 = vmatmul.mubr.f32.gmra.mrb[0].mxu0 %v3863
      %v5078 = vpop.f32.mrb[0].mxu0
      %v5079 = vadd.f32 0.0, %v5078
      %v5080 = vpop.f32.mrb[0].mxu0
      %5081 = vmatprep.mubr.f32.mxu0 0.0
      %5082 = vmatmul.mubr.f32.gmra.mrb[0].mxu0 %v3866
      %v5083 = vpop.f32.mrb[0].mxu0
      %v5084 = vadd.f32 0.0, %v5083
      %v5085 = vpop.f32.mrb[0].mxu0
      %5086 = vmatprep.mubr.f32.mxu0 0.0
      %5087 = vmatmul.mubr.f32.gmra.mrb[0].mxu0 %v3869
      %v5088 = vpop.f32.mrb[0].mxu0
      %v5089 = vadd.f32 0.0, %v5088
      %v5090 = vpop.f32.mrb[0].mxu0
      %5091 = vmatprep.mubr.f32.mxu0 0.0
      %5092 = vmatmul.mubr.f32.gmra.mrb[0].mxu0 %v3872
      %v5093 = vpop.f32.mrb[0].mxu0
      %v5094 = vadd.f32 0.0, %v5093
      %v5095 = vpop.f32.mrb[0].mxu0
      %5096 = vmatprep.mubr.f32.mxu0 0.0
      %5097 = vmatmul.mubr.f32.gmra.mrb[0].mxu0 %v3875
      %v5098 = vpop.f32.mrb[0].mxu0
      %v5099 = vadd.f32 0.0, %v5098
      %v5100 = vpop.f32.mrb[0].mxu0
      %5101 = vmatprep.mubr.f32.mxu0 0.0
      %5102 = vmatmul.mubr.f32.gmra.mrb[0].mxu0 %v3878
      %v5103 = vpop.f32.mrb[0].mxu0
      %v5104 = vadd.f32 0.0, %v5103
      %v5105 = vpop.f32.mrb[0].mxu0
      %5106 = vmatprep.mubr.f32.mxu0 0.0
      %5107 = vmatmul.mubr.f32.gmra.mrb[0].mxu0 %v3881
      %v5108 = vpop.f32.mrb[0].mxu0
      %v5109 = vadd.f32 0.0, %v5108
      %v5110 = vpop.f32.mrb[0].mxu0
      %5111 = vmatprep.mubr.f32.mxu0 0.0
      %5112 = vmatmul.mubr.f32.gmra.mrb[0].mxu0 %v3884
      %v5113 = vpop.f32.mrb[0].mxu0
      %v5114 = vadd.f32 0.0, %v5113
      %v5115 = vpop.f32.mrb[0].mxu0
      %5116 = vmatprep.mubr.f32.mxu0 0.0
      %5117 = vmatmul.mubr.f32.gmra.mrb[0].mxu0 %v3887
      %v5118 = vpop.f32.mrb[0].mxu0
      %v5119 = vadd.f32 0.0, %v5118
      %v5120 = vpop.f32.mrb[0].mxu0
      %5121 = vmatprep.mubr.f32.mxu0 0.0
      %5122 = vmatmul.mubr.f32.gmra.mrb[0].mxu0 %v3890
      %v5123 = vpop.f32.mrb[0].mxu0
      %v5124 = vadd.f32 0.0, %v5123
      %v5125 = vpop.f32.mrb[0].mxu0
      %5126 = vmatprep.mubr.f32.mxu0 0.0
      %5127 = vmatmul.mubr.f32.gmra.mrb[0].mxu0 %v3893
      %v5128 = vpop.f32.mrb[0].mxu0
      %v5129 = vadd.f32 0.0, %v5128
      %v5130 = vpop.f32.mrb[0].mxu0
      %5131 = vmatprep.mubr.f32.mxu0 0.0
      %5132 = vmatmul.mubr.f32.gmra.mrb[0].mxu0 %v3896
      %v5133 = vpop.f32.mrb[0].mxu0
      %v5134 = vadd.f32 0.0, %v5133
      %v5135 = vpop.f32.mrb[0].mxu0
      %5136 = vmatprep.mubr.f32.mxu0 0.0
      %5137 = vmatmul.mubr.f32.gmra.mrb[0].mxu0 %v3899
      %v5138 = vpop.f32.mrb[0].mxu0
      %v5139 = vadd.f32 0.0, %v5138
      %v5140 = vpop.f32.mrb[0].mxu0
      %5141 = vmatprep.mubr.f32.mxu0 0.0
      %5142 = vmatmul.mubr.f32.gmra.mrb[0].mxu0 %v3902
      %v5143 = vpop.f32.mrb[0].mxu0
      %v5144 = vadd.f32 0.0, %v5143
      %v5145 = vpop.f32.mrb[0].mxu0
      %5146 = vmatprep.mubr.f32.mxu0 0.0
      %5147 = vmatmul.mubr.f32.gmra.mrb[0].mxu0 %v3905
      %v5148 = vpop.f32.mrb[0].mxu0
      %v5149 = vadd.f32 0.0, %v5148
      %v5150 = vpop.f32.mrb[0].mxu0
      %5151 = vmatprep.mubr.f32.mxu0 0.0
      %5152 = vmatmul.mubr.f32.gmra.mrb[0].mxu0 %v3908
      %v5153 = vpop.f32.mrb[0].mxu0
      %v5154 = vadd.f32 0.0, %v5153
      %v5155 = vpop.f32.mrb[0].mxu0
      %5156 = vmatprep.mubr.f32.mxu0 0.0
      %5157 = vmatmul.mubr.f32.gmra.mrb[0].mxu0 %v3911
      %v5158 = vpop.f32.mrb[0].mxu0
      %v5159 = vadd.f32 0.0, %v5158
      %v5160 = vpop.f32.mrb[0].mxu0
      %5161 = vmatprep.mubr.f32.mxu0 0.0
      %5162 = vmatmul.mubr.f32.gmra.mrb[0].mxu0 %v3914
      %v5163 = vpop.f32.mrb[0].mxu0
      %v5164 = vadd.f32 0.0, %v5163
      %v5165 = vpop.f32.mrb[0].mxu0
      %5166 = vmatprep.mubr.f32.mxu0 0.0
      %5167 = vmatmul.mubr.f32.gmra.mrb[0].mxu0 %v3917
      %v5168 = vpop.f32.mrb[0].mxu0
      %v5169 = vadd.f32 0.0, %v5168
      %v5170 = vpop.f32.mrb[0].mxu0
      %5171 = vmatprep.mubr.f32.mxu0 0.0
      %5172 = vmatmul.mubr.f32.gmra.mrb[0].mxu0 %v3920
      %v5173 = vpop.f32.mrb[0].mxu0
      %v5174 = vadd.f32 0.0, %v5173
      %v5175 = vpop.f32.mrb[0].mxu0
      %5176 = vmatprep.mubr.f32.mxu0 0.0
      %5177 = vmatmul.mubr.f32.gmra.mrb[0].mxu0 %v3923
      %v5178 = vpop.f32.mrb[0].mxu0
      %v5179 = vadd.f32 0.0, %v5178
      %v5180 = vpop.f32.mrb[0].mxu0
      %5181 = vmatprep.mubr.f32.mxu0 0.0
      %5182 = vmatmul.mubr.f32.gmra.mrb[0].mxu0 %v3926
      %v5183 = vpop.f32.mrb[0].mxu0
      %v5184 = vadd.f32 0.0, %v5183
      %v5185 = vpop.f32.mrb[0].mxu0
      %5186 = vmatprep.mubr.f32.mxu0 0.0
      %5187 = vmatmul.mubr.f32.gmra.mrb[0].mxu0 %v3929
      %v5188 = vpop.f32.mrb[0].mxu0
      %v5189 = vadd.f32 0.0, %v5188
      %v5190 = vpop.f32.mrb[0].mxu0
      %5191 = vmatprep.mubr.f32.mxu0 0.0
      %5192 = vmatmul.mubr.f32.gmra.mrb[0].mxu0 %v3932
      %v5193 = vpop.f32.mrb[0].mxu0
      %v5194 = vadd.f32 0.0, %v5193
      %v5195 = vpop.f32.mrb[0].mxu0
      %5196 = vmatprep.mubr.f32.mxu0 0.0
      %5197 = vmatmul.mubr.f32.gmra.mrb[0].mxu0 %v3935
      %v5198 = vpop.f32.mrb[0].mxu0
      %v5199 = vadd.f32 0.0, %v5198
      %v5200 = vpop.f32.mrb[0].mxu0
      %5201 = vmatprep.mubr.f32.mxu0 0.0
      %5202 = vmatmul.mubr.f32.gmra.mrb[0].mxu0 %v3938
      %v5203 = vpop.f32.mrb[0].mxu0
      %v5204 = vadd.f32 0.0, %v5203
      %v5205 = vpop.f32.mrb[0].mxu0
      %5206 = vmatprep.mubr.f32.mxu0 0.0
      %5207 = vmatmul.mubr.f32.gmra.mrb[0].mxu0 %v3941
      %v5208 = vpop.f32.mrb[0].mxu0
      %v5209 = vadd.f32 0.0, %v5208
      %v5210 = vpop.f32.mrb[0].mxu0
      %5211 = vmatprep.mubr.f32.mxu0 0.0
      %5212 = vmatmul.mubr.f32.gmra.mrb[0].mxu0 %v3944
      %v5213 = vpop.f32.mrb[0].mxu0
      %v5214 = vadd.f32 0.0, %v5213
      %v5215 = vpop.f32.mrb[0].mxu0
      %5216 = vmatprep.mubr.f32.mxu0 0.0
      %5217 = vmatmul.mubr.f32.gmra.mrb[0].mxu0 %v3947
      %v5218 = vpop.f32.mrb[0].mxu0
      %v5219 = vadd.f32 0.0, %v5218
      %v5220 = vpop.f32.mrb[0].mxu0
      %5221 = vmatprep.mubr.f32.mxu0 0.0
      %5222 = vmatmul.mubr.f32.gmra.mrb[0].mxu0 %v3950
      %v5223 = vpop.f32.mrb[0].mxu0
      %v5224 = vadd.f32 0.0, %v5223
      %v5225 = vpop.f32.mrb[0].mxu0
      %5226 = vmatprep.mubr.f32.mxu0 0.0
      %5227 = vmatmul.mubr.f32.gmra.mrb[0].mxu0 %v3953
      %v5228 = vpop.f32.mrb[0].mxu0
      %v5229 = vadd.f32 0.0, %v5228
      %v5230 = vpop.f32.mrb[0].mxu0
      %5231 = vmatprep.mubr.f32.mxu0 0.0
      %5232 = vmatmul.mubr.f32.gmra.mrb[0].mxu0 %v3956
      %v5233 = vpop.f32.mrb[0].mxu0
      %v5234 = vadd.f32 0.0, %v5233
      %v5235 = vpop.f32.mrb[0].mxu0
      %5236 = vmatprep.mubr.f32.mxu0 0.0
      %5237 = vmatmul.mubr.f32.gmra.mrb[0].mxu0 %v3959
      %v5238 = vpop.f32.mrb[0].mxu0
      %v5239 = vadd.f32 0.0, %v5238
      %v5240 = vpop.f32.mrb[0].mxu0
      %5241 = vmatprep.mubr.f32.mxu0 0.0
      %5242 = vmatmul.mubr.f32.gmra.mrb[0].mxu0 %v3962
      %v5243 = vpop.f32.mrb[0].mxu0
      %v5244 = vadd.f32 0.0, %v5243
      %v5245 = vpop.f32.mrb[0].mxu0
      %5246 = vmatprep.mubr.f32.mxu0 0.0
      %5247 = vmatmul.mubr.f32.gmra.mrb[0].mxu0 %v3965
      %v5248 = vpop.f32.mrb[0].mxu0
      %v5249 = vadd.f32 0.0, %v5248
      %v5250 = vpop.f32.mrb[0].mxu0
      %5251 = vmatprep.mubr.f32.mxu0 0.0
      %5252 = vmatmul.mubr.f32.gmra.mrb[0].mxu0 %v3968
      %v5253 = vpop.f32.mrb[0].mxu0
      %v5254 = vadd.f32 0.0, %v5253
      %v5255 = vpop.f32.mrb[0].mxu0
      %5256 = vmatprep.mubr.f32.mxu0 0.0
      %5257 = vmatmul.mubr.f32.gmra.mrb[0].mxu0 %v3971
      %v5258 = vpop.f32.mrb[0].mxu0
      %v5259 = vadd.f32 0.0, %v5258
      %v5260 = vpop.f32.mrb[0].mxu0
      %5261 = vmatprep.mubr.f32.mxu0 0.0
      %5262 = vmatmul.mubr.f32.gmra.mrb[0].mxu0 %v3974
      %v5263 = vpop.f32.mrb[0].mxu0
      %v5264 = vadd.f32 0.0, %v5263
      %v5265 = vpop.f32.mrb[0].mxu0
      %5266 = vmatprep.mubr.f32.mxu0 0.0
      %5267 = vmatmul.mubr.f32.gmra.mrb[0].mxu0 %v3977
      %v5268 = vpop.f32.mrb[0].mxu0
      %v5269 = vadd.f32 0.0, %v5268
      %v5270 = vpop.f32.mrb[0].mxu0
      %5271 = vmatprep.mubr.f32.mxu0 0.0
      %5272 = vmatmul.mubr.f32.gmra.mrb[0].mxu0 %v3980
      %v5273 = vpop.f32.mrb[0].mxu0
      %v5274 = vadd.f32 0.0, %v5273
      %v5275 = vpop.f32.mrb[0].mxu0
      %5276 = vmatprep.mubr.f32.mxu0 0.0
      %5277 = vmatmul.mubr.f32.gmra.mrb[0].mxu0 %v3983
      %v5278 = vpop.f32.mrb[0].mxu0
      %v5279 = vadd.f32 0.0, %v5278
      %v5280 = vpop.f32.mrb[0].mxu0
      %5281 = vmatprep.mubr.f32.mxu0 0.0
      %5282 = vmatmul.mubr.f32.gmra.mrb[0].mxu0 %v3986
      %v5283 = vpop.f32.mrb[0].mxu0
      %v5284 = vadd.f32 0.0, %v5283
      %v5285 = vpop.f32.mrb[0].mxu0
      %5286 = vmatprep.mubr.f32.mxu0 0.0
      %5287 = vmatmul.mubr.f32.gmra.mrb[0].mxu0 %v3989
      %v5288 = vpop.f32.mrb[0].mxu0
      %v5289 = vadd.f32 0.0, %v5288
      %v5290 = vpop.f32.mrb[0].mxu0
      %5291 = vmatprep.mubr.f32.mxu0 0.0
      %5292 = vmatmul.mubr.f32.gmra.mrb[0].mxu0 %v3992
      %v5293 = vpop.f32.mrb[0].mxu0
      %v5294 = vadd.f32 0.0, %v5293
      %v5295 = vpop.f32.mrb[0].mxu0
      %5296 = vmatprep.mubr.f32.mxu0 0.0
      %5297 = vmatmul.mubr.f32.gmra.mrb[0].mxu0 %v3995
      %v5298 = vpop.f32.mrb[0].mxu0
      %v5299 = vadd.f32 0.0, %v5298
      %v5300 = vpop.f32.mrb[0].mxu0
      %5301 = vmatprep.mubr.f32.mxu0 0.0
      %5302 = vmatmul.mubr.f32.gmra.mrb[0].mxu0 %v3998
      %v5303 = vpop.f32.mrb[0].mxu0
      %v5304 = vadd.f32 0.0, %v5303
      %v5305 = vpop.f32.mrb[0].mxu0
      %5306 = vmatprep.mubr.f32.mxu0 0.0
      %5307 = vmatmul.mubr.f32.gmra.mrb[0].mxu0 %v4001
      %v5308 = vpop.f32.mrb[0].mxu0
      %v5309 = vadd.f32 0.0, %v5308
      %v5310 = vpop.f32.mrb[0].mxu0
      %5311 = vmatprep.mubr.f32.mxu0 0.0
      %5312 = vmatmul.mubr.f32.gmra.mrb[0].mxu0 %v4004
      %v5313 = vpop.f32.mrb[0].mxu0
      %v5314 = vadd.f32 0.0, %v5313
      %v5315 = vpop.f32.mrb[0].mxu0
      %5316 = vmatprep.mubr.f32.mxu0 0.0
      %5317 = vmatmul.mubr.f32.gmra.mrb[0].mxu0 %v4007
      %v5318 = vpop.f32.mrb[0].mxu0
      %v5319 = vadd.f32 0.0, %v5318
      %v5320 = vpop.f32.mrb[0].mxu0
      %5321 = vmatprep.mubr.f32.mxu0 0.0
      %5322 = vmatmul.mubr.f32.gmra.mrb[0].mxu0 %v4010
      %v5323 = vpop.f32.mrb[0].mxu0
      %v5324 = vadd.f32 0.0, %v5323
      %v5325 = vpop.f32.mrb[0].mxu0
      %5326 = vmatprep.mubr.f32.mxu0 0.0
      %5327 = vmatmul.mubr.f32.gmra.mrb[0].mxu0 %v4013
      %v5328 = vpop.f32.mrb[0].mxu0
      %v5329 = vadd.f32 0.0, %v5328
      %v5330 = vpop.f32.mrb[0].mxu0
      %5331 = vmatprep.mubr.f32.mxu0 0.0
      %5332 = vmatmul.mubr.f32.gmra.mrb[0].mxu0 %v4016
      %v5333 = vpop.f32.mrb[0].mxu0
      %v5334 = vadd.f32 0.0, %v5333
      %v5335 = vpop.f32.mrb[0].mxu0
      %5336 = vmatprep.mubr.f32.mxu0 0.0
      %5337 = vmatmul.mubr.f32.gmra.mrb[0].mxu0 %v4019
      %v5338 = vpop.f32.mrb[0].mxu0
      %v5339 = vadd.f32 0.0, %v5338
      %v5340 = vpop.f32.mrb[0].mxu0
      %5341 = vmatprep.mubr.f32.mxu0 0.0
      %5342 = vmatmul.mubr.f32.gmra.mrb[0].mxu0 %v4022
      %v5343 = vpop.f32.mrb[0].mxu0
      %v5344 = vadd.f32 0.0, %v5343
      %v5345 = vpop.f32.mrb[0].mxu0
      %5346 = vmatprep.mubr.f32.mxu0 0.0
      %5347 = vmatmul.mubr.f32.gmra.mrb[0].mxu0 %v4025
      %v5348 = vpop.f32.mrb[0].mxu0
      %v5349 = vadd.f32 0.0, %v5348
      %v5350 = vpop.f32.mrb[0].mxu0
      %5351 = vmatprep.mubr.f32.mxu0 0.0
      %5352 = vmatmul.mubr.f32.gmra.mrb[0].mxu0 %v4028
      %v5353 = vpop.f32.mrb[0].mxu0
      %v5354 = vadd.f32 0.0, %v5353
      %v5355 = vpop.f32.mrb[0].mxu0
      %5356 = vmatprep.mubr.f32.mxu0 0.0
      %5357 = vmatmul.mubr.f32.gmra.mrb[0].mxu0 %v4031
      %v5358 = vpop.f32.mrb[0].mxu0
      %v5359 = vadd.f32 0.0, %v5358
      %v5360 = vpop.f32.mrb[0].mxu0
      %5361 = vmatprep.mubr.f32.mxu0 0.0
      %5362 = vmatmul.mubr.f32.gmra.mrb[0].mxu0 %v4034
      %v5363 = vpop.f32.mrb[0].mxu0
      %v5364 = vadd.f32 0.0, %v5363
      %v5365 = vpop.f32.mrb[0].mxu0
      %5366 = vmatprep.mubr.f32.mxu0 0.0
      %5367 = vmatmul.mubr.f32.gmra.mrb[0].mxu0 %v4037
      %v5368 = vpop.f32.mrb[0].mxu0
      %v5369 = vadd.f32 0.0, %v5368
      %v5370 = vpop.f32.mrb[0].mxu0
      %5371 = vmatprep.mubr.f32.mxu0 0.0
      %5372 = vmatmul.mubr.f32.gmra.mrb[0].mxu0 %v4040
      %v5373 = vpop.f32.mrb[0].mxu0
      %v5374 = vadd.f32 0.0, %v5373
      %v5375 = vpop.f32.mrb[0].mxu0
      %5376 = vmatprep.mubr.f32.mxu0 0.0
      %5377 = vmatmul.mubr.f32.gmra.mrb[0].mxu0 %v4043
      %v5378 = vpop.f32.mrb[0].mxu0
      %v5379 = vadd.f32 0.0, %v5378
      %v5380 = vpop.f32.mrb[0].mxu0
      %5381 = vmatprep.mubr.f32.mxu0 0.0
      %5382 = vmatmul.mubr.f32.gmra.mrb[0].mxu0 %v4046
      %v5383 = vpop.f32.mrb[0].mxu0
      %v5384 = vadd.f32 0.0, %v5383
      %v5385 = vpop.f32.mrb[0].mxu0
      %5386 = vmatprep.mubr.f32.mxu0 0.0
      %5387 = vmatmul.mubr.f32.gmra.mrb[0].mxu0 %v4049
      %v5388 = vpop.f32.mrb[0].mxu0
      %v5389 = vadd.f32 0.0, %v5388
      %v5390 = vpop.f32.mrb[0].mxu0
      %5391 = vmatprep.mubr.f32.mxu0 0.0
      %5392 = vmatmul.mubr.f32.gmra.mrb[0].mxu0 %v4052
      %v5393 = vpop.f32.mrb[0].mxu0
      %v5394 = vadd.f32 0.0, %v5393
      %v5395 = vpop.f32.mrb[0].mxu0
      %5396 = vmatprep.mubr.f32.mxu0 0.0
      %5397 = vmatmul.mubr.f32.gmra.mrb[0].mxu0 %v4055
      %v5398 = vpop.f32.mrb[0].mxu0
      %v5399 = vadd.f32 0.0, %v5398
      %v5400 = vpop.f32.mrb[0].mxu0
      %5401 = vdwg.mxu0
      %v5402 = vmax.f32 %v4124, 0.0
      %v5403 = vmax.f32 %v4129, 0.0
      %v5404 = vmax.f32 %v4134, 0.0
      %v5405 = vmax.f32 %v4139, 0.0
      %v5406 = vmax.f32 %v4144, 0.0
      %v5407 = vmax.f32 %v4149, 0.0
      %v5408 = vmax.f32 %v4154, 0.0
      %v5409 = vmax.f32 %v4159, 0.0
      %v5410 = vmax.f32 %v4164, 0.0
      %v5411 = vmax.f32 %v4169, 0.0
      %v5412 = vmax.f32 %v4174, 0.0
      %v5413 = vmax.f32 %v4179, 0.0
      %v5414 = vmax.f32 %v4184, 0.0
      %v5415 = vmax.f32 %v4189, 0.0
      %v5416 = vmax.f32 %v4194, 0.0
      %v5417 = vmax.f32 %v4199, 0.0
      %v5418 = vmax.f32 %v4204, 0.0
      %v5419 = vmax.f32 %v4209, 0.0
      %v5420 = vmax.f32 %v4214, 0.0
      %v5421 = vmax.f32 %v4219, 0.0
      %v5422 = vmax.f32 %v4224, 0.0
      %v5423 = vmax.f32 %v4229, 0.0
      %v5424 = vmax.f32 %v4234, 0.0
      %v5425 = vmax.f32 %v4239, 0.0
      %v5426 = vmax.f32 %v4244, 0.0
      %v5427 = vmax.f32 %v4249, 0.0
      %v5428 = vmax.f32 %v4254, 0.0
      %v5429 = vmax.f32 %v4259, 0.0
      %v5430 = vmax.f32 %v4264, 0.0
      %v5431 = vmax.f32 %v4269, 0.0
      %v5432 = vmax.f32 %v4274, 0.0
      %v5433 = vmax.f32 %v4279, 0.0
      %v5434 = vmax.f32 %v4284, 0.0
      %v5435 = vmax.f32 %v4289, 0.0
      %v5436 = vmax.f32 %v4294, 0.0
      %v5437 = vmax.f32 %v4299, 0.0
      %v5438 = vmax.f32 %v4304, 0.0
      %v5439 = vmax.f32 %v4309, 0.0
      %v5440 = vmax.f32 %v4314, 0.0
      %v5441 = vmax.f32 %v4319, 0.0
      %v5442 = vmax.f32 %v4324, 0.0
      %v5443 = vmax.f32 %v4329, 0.0
      %v5444 = vmax.f32 %v4334, 0.0
      %v5445 = vmax.f32 %v4339, 0.0
      %v5446 = vmax.f32 %v4344, 0.0
      %v5447 = vmax.f32 %v4349, 0.0
      %v5448 = vmax.f32 %v4354, 0.0
      %v5449 = vmax.f32 %v4359, 0.0
      %v5450 = vmax.f32 %v4364, 0.0
      %v5451 = vmax.f32 %v4369, 0.0
      %v5452 = vmax.f32 %v4374, 0.0
      %v5453 = vmax.f32 %v4379, 0.0
      %v5454 = vmax.f32 %v4384, 0.0
      %v5455 = vmax.f32 %v4389, 0.0
      %v5456 = vmax.f32 %v4394, 0.0
      %v5457 = vmax.f32 %v4399, 0.0
      %v5458 = vmax.f32 %v4404, 0.0
      %v5459 = vmax.f32 %v4409, 0.0
      %v5460 = vmax.f32 %v4414, 0.0
      %v5461 = vmax.f32 %v4419, 0.0
      %v5462 = vmax.f32 %v4424, 0.0
      %v5463 = vmax.f32 %v4429, 0.0
      %v5464 = vmax.f32 %v4434, 0.0
      %v5465 = vmax.f32 %v4439, 0.0
      %v5466 = vmax.f32 %v4444, 0.0
      %v5467 = vmax.f32 %v4449, 0.0
      %v5468 = vmax.f32 %v4454, 0.0
      %v5469 = vmax.f32 %v4459, 0.0
      %v5470 = vmax.f32 %v4464, 0.0
      %v5471 = vmax.f32 %v4469, 0.0
      %v5472 = vmax.f32 %v4474, 0.0
      %v5473 = vmax.f32 %v4479, 0.0
      %v5474 = vmax.f32 %v4484, 0.0
      %v5475 = vmax.f32 %v4489, 0.0
      %v5476 = vmax.f32 %v4494, 0.0
      %v5477 = vmax.f32 %v4499, 0.0
      %v5478 = vmax.f32 %v4504, 0.0
      %v5479 = vmax.f32 %v4509, 0.0
      %v5480 = vmax.f32 %v4514, 0.0
      %v5481 = vmax.f32 %v4519, 0.0
      %v5482 = vmax.f32 %v4524, 0.0
      %v5483 = vmax.f32 %v4529, 0.0
      %v5484 = vmax.f32 %v4534, 0.0
      %v5485 = vmax.f32 %v4539, 0.0
      %v5486 = vmax.f32 %v4544, 0.0
      %v5487 = vmax.f32 %v4549, 0.0
      %v5488 = vmax.f32 %v4554, 0.0
      %v5489 = vmax.f32 %v4559, 0.0
      %v5490 = vmax.f32 %v4564, 0.0
      %v5491 = vmax.f32 %v4569, 0.0
      %v5492 = vmax.f32 %v4574, 0.0
      %v5493 = vmax.f32 %v4579, 0.0
      %v5494 = vmax.f32 %v4584, 0.0
      %v5495 = vmax.f32 %v4589, 0.0
      %v5496 = vmax.f32 %v4594, 0.0
      %v5497 = vmax.f32 %v4599, 0.0
      %v5498 = vmax.f32 %v4604, 0.0
      %v5499 = vmax.f32 %v4609, 0.0
      %v5500 = vmax.f32 %v4614, 0.0
      %v5501 = vmax.f32 %v4619, 0.0
      %v5502 = vmax.f32 %v4624, 0.0
      %v5503 = vmax.f32 %v4629, 0.0
      %v5504 = vmax.f32 %v4634, 0.0
      %v5505 = vmax.f32 %v4639, 0.0
      %v5506 = vmax.f32 %v4644, 0.0
      %v5507 = vmax.f32 %v4649, 0.0
      %v5508 = vmax.f32 %v4654, 0.0
      %v5509 = vmax.f32 %v4659, 0.0
      %v5510 = vmax.f32 %v4664, 0.0
      %v5511 = vmax.f32 %v4669, 0.0
      %v5512 = vmax.f32 %v4674, 0.0
      %v5513 = vmax.f32 %v4679, 0.0
      %v5514 = vmax.f32 %v4684, 0.0
      %v5515 = vmax.f32 %v4689, 0.0
      %v5516 = vmax.f32 %v4694, 0.0
      %v5517 = vmax.f32 %v4699, 0.0
      %v5518 = vmax.f32 %v4704, 0.0
      %v5519 = vmax.f32 %v4709, 0.0
      %v5520 = vmax.f32 %v4714, 0.0
      %v5521 = vmax.f32 %v4719, 0.0
      %v5522 = vmax.f32 %v4724, 0.0
      %v5523 = vmax.f32 %v4729, 0.0
      %v5524 = vmax.f32 %v4734, 0.0
      %v5525 = vmax.f32 %v4739, 0.0
      %v5526 = vmax.f32 %v4744, 0.0
      %v5527 = vmax.f32 %v4749, 0.0
      %v5528 = vmax.f32 %v4754, 0.0
      %v5529 = vmax.f32 %v4759, 0.0
      %v5530 = vmax.f32 %v4764, 0.0
      %v5531 = vmax.f32 %v4769, 0.0
      %v5532 = vmax.f32 %v4774, 0.0
      %v5533 = vmax.f32 %v4779, 0.0
      %v5534 = vmax.f32 %v4784, 0.0
      %v5535 = vmax.f32 %v4789, 0.0
      %v5536 = vmax.f32 %v4794, 0.0
      %v5537 = vmax.f32 %v4799, 0.0
      %v5538 = vmax.f32 %v4804, 0.0
      %v5539 = vmax.f32 %v4809, 0.0
      %v5540 = vmax.f32 %v4814, 0.0
      %v5541 = vmax.f32 %v4819, 0.0
      %v5542 = vmax.f32 %v4824, 0.0
      %v5543 = vmax.f32 %v4829, 0.0
      %v5544 = vmax.f32 %v4834, 0.0
      %v5545 = vmax.f32 %v4839, 0.0
      %v5546 = vmax.f32 %v4844, 0.0
      %v5547 = vmax.f32 %v4849, 0.0
      %v5548 = vmax.f32 %v4854, 0.0
      %v5549 = vmax.f32 %v4859, 0.0
      %v5550 = vmax.f32 %v4864, 0.0
      %v5551 = vmax.f32 %v4869, 0.0
      %v5552 = vmax.f32 %v4874, 0.0
      %v5553 = vmax.f32 %v4879, 0.0
      %v5554 = vmax.f32 %v4884, 0.0
      %v5555 = vmax.f32 %v4889, 0.0
      %v5556 = vmax.f32 %v4894, 0.0
      %v5557 = vmax.f32 %v4899, 0.0
      %v5558 = vmax.f32 %v4904, 0.0
      %v5559 = vmax.f32 %v4909, 0.0
      %v5560 = vmax.f32 %v4914, 0.0
      %v5561 = vmax.f32 %v4919, 0.0
      %v5562 = vmax.f32 %v4924, 0.0
      %v5563 = vmax.f32 %v4929, 0.0
      %v5564 = vmax.f32 %v4934, 0.0
      %v5565 = vmax.f32 %v4939, 0.0
      %v5566 = vmax.f32 %v4944, 0.0
      %v5567 = vmax.f32 %v4949, 0.0
      %v5568 = vmax.f32 %v4954, 0.0
      %v5569 = vmax.f32 %v4959, 0.0
      %v5570 = vmax.f32 %v4964, 0.0
      %v5571 = vmax.f32 %v4969, 0.0
      %v5572 = vmax.f32 %v4974, 0.0
      %v5573 = vmax.f32 %v4979, 0.0
      %v5574 = vmax.f32 %v4984, 0.0
      %v5575 = vmax.f32 %v4989, 0.0
      %v5576 = vmax.f32 %v4994, 0.0
      %v5577 = vmax.f32 %v4999, 0.0
      %v5578 = vmax.f32 %v5004, 0.0
      %v5579 = vmax.f32 %v5009, 0.0
      %v5580 = vmax.f32 %v5014, 0.0
      %v5581 = vmax.f32 %v5019, 0.0
      %v5582 = vmax.f32 %v5024, 0.0
      %v5583 = vmax.f32 %v5029, 0.0
      %v5584 = vmax.f32 %v5034, 0.0
      %v5585 = vmax.f32 %v5039, 0.0
      %v5586 = vmax.f32 %v5044, 0.0
      %v5587 = vmax.f32 %v5049, 0.0
      %v5588 = vmax.f32 %v5054, 0.0
      %v5589 = vmax.f32 %v5059, 0.0
      %v5590 = vmax.f32 %v5064, 0.0
      %v5591 = vmax.f32 %v5069, 0.0
      %v5592 = vmax.f32 %v5074, 0.0
      %v5593 = vmax.f32 %v5079, 0.0
      %v5594 = vmax.f32 %v5084, 0.0
      %v5595 = vmax.f32 %v5089, 0.0
      %v5596 = vmax.f32 %v5094, 0.0
      %v5597 = vmax.f32 %v5099, 0.0
      %v5598 = vmax.f32 %v5104, 0.0
      %v5599 = vmax.f32 %v5109, 0.0
      %v5600 = vmax.f32 %v5114, 0.0
      %v5601 = vmax.f32 %v5119, 0.0
      %v5602 = vmax.f32 %v5124, 0.0
      %v5603 = vmax.f32 %v5129, 0.0
      %v5604 = vmax.f32 %v5134, 0.0
      %v5605 = vmax.f32 %v5139, 0.0
      %v5606 = vmax.f32 %v5144, 0.0
      %v5607 = vmax.f32 %v5149, 0.0
      %v5608 = vmax.f32 %v5154, 0.0
      %v5609 = vmax.f32 %v5159, 0.0
      %v5610 = vmax.f32 %v5164, 0.0
      %v5611 = vmax.f32 %v5169, 0.0
      %v5612 = vmax.f32 %v5174, 0.0
      %v5613 = vmax.f32 %v5179, 0.0
      %v5614 = vmax.f32 %v5184, 0.0
      %v5615 = vmax.f32 %v5189, 0.0
      %v5616 = vmax.f32 %v5194, 0.0
      %v5617 = vmax.f32 %v5199, 0.0
      %v5618 = vmax.f32 %v5204, 0.0
      %v5619 = vmax.f32 %v5209, 0.0
      %v5620 = vmax.f32 %v5214, 0.0
      %v5621 = vmax.f32 %v5219, 0.0
      %v5622 = vmax.f32 %v5224, 0.0
      %v5623 = vmax.f32 %v5229, 0.0
      %v5624 = vmax.f32 %v5234, 0.0
      %v5625 = vmax.f32 %v5239, 0.0
      %v5626 = vmax.f32 %v5244, 0.0
      %v5627 = vmax.f32 %v5249, 0.0
      %v5628 = vmax.f32 %v5254, 0.0
      %v5629 = vmax.f32 %v5259, 0.0
      %v5630 = vmax.f32 %v5264, 0.0
      %v5631 = vmax.f32 %v5269, 0.0
      %v5632 = vmax.f32 %v5274, 0.0
      %v5633 = vmax.f32 %v5279, 0.0
      %v5634 = vmax.f32 %v5284, 0.0
      %v5635 = vmax.f32 %v5289, 0.0
      %v5636 = vmax.f32 %v5294, 0.0
      %v5637 = vmax.f32 %v5299, 0.0
      %v5638 = vmax.f32 %v5304, 0.0
      %v5639 = vmax.f32 %v5309, 0.0
      %v5640 = vmax.f32 %v5314, 0.0
      %v5641 = vmax.f32 %v5319, 0.0
      %v5642 = vmax.f32 %v5324, 0.0
      %v5643 = vmax.f32 %v5329, 0.0
      %v5644 = vmax.f32 %v5334, 0.0
      %v5645 = vmax.f32 %v5339, 0.0
      %v5646 = vmax.f32 %v5344, 0.0
      %v5647 = vmax.f32 %v5349, 0.0
      %v5648 = vmax.f32 %v5354, 0.0
      %v5649 = vmax.f32 %v5359, 0.0
      %v5650 = vmax.f32 %v5364, 0.0
      %v5651 = vmax.f32 %v5369, 0.0
      %v5652 = vmax.f32 %v5374, 0.0
      %v5653 = vmax.f32 %v5379, 0.0
      %v5654 = vmax.f32 %v5384, 0.0
      %v5655 = vmax.f32 %v5389, 0.0
      %v5656 = vmax.f32 %v5394, 0.0
      %v5657 = vmax.f32 %v5399, 0.0
      %v5658 = vmin.f32 %v5402, 1.0
      %v5659 = vmin.f32 %v5403, 1.0
      %v5660 = vmin.f32 %v5404, 1.0
      %v5661 = vmin.f32 %v5405, 1.0
      %v5662 = vmin.f32 %v5406, 1.0
      %v5663 = vmin.f32 %v5407, 1.0
      %v5664 = vmin.f32 %v5408, 1.0
      %v5665 = vmin.f32 %v5409, 1.0
      %v5666 = vmin.f32 %v5410, 1.0
      %v5667 = vmin.f32 %v5411, 1.0
      %v5668 = vmin.f32 %v5412, 1.0
      %v5669 = vmin.f32 %v5413, 1.0
      %v5670 = vmin.f32 %v5414, 1.0
      %v5671 = vmin.f32 %v5415, 1.0
      %v5672 = vmin.f32 %v5416, 1.0
      %v5673 = vmin.f32 %v5417, 1.0
      %v5674 = vmin.f32 %v5418, 1.0
      %v5675 = vmin.f32 %v5419, 1.0
      %v5676 = vmin.f32 %v5420, 1.0
      %v5677 = vmin.f32 %v5421, 1.0
      %v5678 = vmin.f32 %v5422, 1.0
      %v5679 = vmin.f32 %v5423, 1.0
      %v5680 = vmin.f32 %v5424, 1.0
      %v5681 = vmin.f32 %v5425, 1.0
      %v5682 = vmin.f32 %v5426, 1.0
      %v5683 = vmin.f32 %v5427, 1.0
      %v5684 = vmin.f32 %v5428, 1.0
      %v5685 = vmin.f32 %v5429, 1.0
      %v5686 = vmin.f32 %v5430, 1.0
      %v5687 = vmin.f32 %v5431, 1.0
      %v5688 = vmin.f32 %v5432, 1.0
      %v5689 = vmin.f32 %v5433, 1.0
      %v5690 = vmin.f32 %v5434, 1.0
      %v5691 = vmin.f32 %v5435, 1.0
      %v5692 = vmin.f32 %v5436, 1.0
      %v5693 = vmin.f32 %v5437, 1.0
      %v5694 = vmin.f32 %v5438, 1.0
      %v5695 = vmin.f32 %v5439, 1.0
      %v5696 = vmin.f32 %v5440, 1.0
      %v5697 = vmin.f32 %v5441, 1.0
      %v5698 = vmin.f32 %v5442, 1.0
      %v5699 = vmin.f32 %v5443, 1.0
      %v5700 = vmin.f32 %v5444, 1.0
      %v5701 = vmin.f32 %v5445, 1.0
      %v5702 = vmin.f32 %v5446, 1.0
      %v5703 = vmin.f32 %v5447, 1.0
      %v5704 = vmin.f32 %v5448, 1.0
      %v5705 = vmin.f32 %v5449, 1.0
      %v5706 = vmin.f32 %v5450, 1.0
      %v5707 = vmin.f32 %v5451, 1.0
      %v5708 = vmin.f32 %v5452, 1.0
      %v5709 = vmin.f32 %v5453, 1.0
      %v5710 = vmin.f32 %v5454, 1.0
      %v5711 = vmin.f32 %v5455, 1.0
      %v5712 = vmin.f32 %v5456, 1.0
      %v5713 = vmin.f32 %v5457, 1.0
      %v5714 = vmin.f32 %v5458, 1.0
      %v5715 = vmin.f32 %v5459, 1.0
      %v5716 = vmin.f32 %v5460, 1.0
      %v5717 = vmin.f32 %v5461, 1.0
      %v5718 = vmin.f32 %v5462, 1.0
      %v5719 = vmin.f32 %v5463, 1.0
      %v5720 = vmin.f32 %v5464, 1.0
      %v5721 = vmin.f32 %v5465, 1.0
      %v5722 = vmin.f32 %v5466, 1.0
      %v5723 = vmin.f32 %v5467, 1.0
      %v5724 = vmin.f32 %v5468, 1.0
      %v5725 = vmin.f32 %v5469, 1.0
      %v5726 = vmin.f32 %v5470, 1.0
      %v5727 = vmin.f32 %v5471, 1.0
      %v5728 = vmin.f32 %v5472, 1.0
      %v5729 = vmin.f32 %v5473, 1.0
      %v5730 = vmin.f32 %v5474, 1.0
      %v5731 = vmin.f32 %v5475, 1.0
      %v5732 = vmin.f32 %v5476, 1.0
      %v5733 = vmin.f32 %v5477, 1.0
      %v5734 = vmin.f32 %v5478, 1.0
      %v5735 = vmin.f32 %v5479, 1.0
      %v5736 = vmin.f32 %v5480, 1.0
      %v5737 = vmin.f32 %v5481, 1.0
      %v5738 = vmin.f32 %v5482, 1.0
      %v5739 = vmin.f32 %v5483, 1.0
      %v5740 = vmin.f32 %v5484, 1.0
      %v5741 = vmin.f32 %v5485, 1.0
      %v5742 = vmin.f32 %v5486, 1.0
      %v5743 = vmin.f32 %v5487, 1.0
      %v5744 = vmin.f32 %v5488, 1.0
      %v5745 = vmin.f32 %v5489, 1.0
      %v5746 = vmin.f32 %v5490, 1.0
      %v5747 = vmin.f32 %v5491, 1.0
      %v5748 = vmin.f32 %v5492, 1.0
      %v5749 = vmin.f32 %v5493, 1.0
      %v5750 = vmin.f32 %v5494, 1.0
      %v5751 = vmin.f32 %v5495, 1.0
      %v5752 = vmin.f32 %v5496, 1.0
      %v5753 = vmin.f32 %v5497, 1.0
      %v5754 = vmin.f32 %v5498, 1.0
      %v5755 = vmin.f32 %v5499, 1.0
      %v5756 = vmin.f32 %v5500, 1.0
      %v5757 = vmin.f32 %v5501, 1.0
      %v5758 = vmin.f32 %v5502, 1.0
      %v5759 = vmin.f32 %v5503, 1.0
      %v5760 = vmin.f32 %v5504, 1.0
      %v5761 = vmin.f32 %v5505, 1.0
      %v5762 = vmin.f32 %v5506, 1.0
      %v5763 = vmin.f32 %v5507, 1.0
      %v5764 = vmin.f32 %v5508, 1.0
      %v5765 = vmin.f32 %v5509, 1.0
      %v5766 = vmin.f32 %v5510, 1.0
      %v5767 = vmin.f32 %v5511, 1.0
      %v5768 = vmin.f32 %v5512, 1.0
      %v5769 = vmin.f32 %v5513, 1.0
      %v5770 = vmin.f32 %v5514, 1.0
      %v5771 = vmin.f32 %v5515, 1.0
      %v5772 = vmin.f32 %v5516, 1.0
      %v5773 = vmin.f32 %v5517, 1.0
      %v5774 = vmin.f32 %v5518, 1.0
      %v5775 = vmin.f32 %v5519, 1.0
      %v5776 = vmin.f32 %v5520, 1.0
      %v5777 = vmin.f32 %v5521, 1.0
      %v5778 = vmin.f32 %v5522, 1.0
      %v5779 = vmin.f32 %v5523, 1.0
      %v5780 = vmin.f32 %v5524, 1.0
      %v5781 = vmin.f32 %v5525, 1.0
      %v5782 = vmin.f32 %v5526, 1.0
      %v5783 = vmin.f32 %v5527, 1.0
      %v5784 = vmin.f32 %v5528, 1.0
      %v5785 = vmin.f32 %v5529, 1.0
      %v5786 = vmin.f32 %v5530, 1.0
      %v5787 = vmin.f32 %v5531, 1.0
      %v5788 = vmin.f32 %v5532, 1.0
      %v5789 = vmin.f32 %v5533, 1.0
      %v5790 = vmin.f32 %v5534, 1.0
      %v5791 = vmin.f32 %v5535, 1.0
      %v5792 = vmin.f32 %v5536, 1.0
      %v5793 = vmin.f32 %v5537, 1.0
      %v5794 = vmin.f32 %v5538, 1.0
      %v5795 = vmin.f32 %v5539, 1.0
      %v5796 = vmin.f32 %v5540, 1.0
      %v5797 = vmin.f32 %v5541, 1.0
      %v5798 = vmin.f32 %v5542, 1.0
      %v5799 = vmin.f32 %v5543, 1.0
      %v5800 = vmin.f32 %v5544, 1.0
      %v5801 = vmin.f32 %v5545, 1.0
      %v5802 = vmin.f32 %v5546, 1.0
      %v5803 = vmin.f32 %v5547, 1.0
      %v5804 = vmin.f32 %v5548, 1.0
      %v5805 = vmin.f32 %v5549, 1.0
      %v5806 = vmin.f32 %v5550, 1.0
      %v5807 = vmin.f32 %v5551, 1.0
      %v5808 = vmin.f32 %v5552, 1.0
      %v5809 = vmin.f32 %v5553, 1.0
      %v5810 = vmin.f32 %v5554, 1.0
      %v5811 = vmin.f32 %v5555, 1.0
      %v5812 = vmin.f32 %v5556, 1.0
      %v5813 = vmin.f32 %v5557, 1.0
      %v5814 = vmin.f32 %v5558, 1.0
      %v5815 = vmin.f32 %v5559, 1.0
      %v5816 = vmin.f32 %v5560, 1.0
      %v5817 = vmin.f32 %v5561, 1.0
      %v5818 = vmin.f32 %v5562, 1.0
      %v5819 = vmin.f32 %v5563, 1.0
      %v5820 = vmin.f32 %v5564, 1.0
      %v5821 = vmin.f32 %v5565, 1.0
      %v5822 = vmin.f32 %v5566, 1.0
      %v5823 = vmin.f32 %v5567, 1.0
      %v5824 = vmin.f32 %v5568, 1.0
      %v5825 = vmin.f32 %v5569, 1.0
      %v5826 = vmin.f32 %v5570, 1.0
      %v5827 = vmin.f32 %v5571, 1.0
      %v5828 = vmin.f32 %v5572, 1.0
      %v5829 = vmin.f32 %v5573, 1.0
      %v5830 = vmin.f32 %v5574, 1.0
      %v5831 = vmin.f32 %v5575, 1.0
      %v5832 = vmin.f32 %v5576, 1.0
      %v5833 = vmin.f32 %v5577, 1.0
      %v5834 = vmin.f32 %v5578, 1.0
      %v5835 = vmin.f32 %v5579, 1.0
      %v5836 = vmin.f32 %v5580, 1.0
      %v5837 = vmin.f32 %v5581, 1.0
      %v5838 = vmin.f32 %v5582, 1.0
      %v5839 = vmin.f32 %v5583, 1.0
      %v5840 = vmin.f32 %v5584, 1.0
      %v5841 = vmin.f32 %v5585, 1.0
      %v5842 = vmin.f32 %v5586, 1.0
      %v5843 = vmin.f32 %v5587, 1.0
      %v5844 = vmin.f32 %v5588, 1.0
      %v5845 = vmin.f32 %v5589, 1.0
      %v5846 = vmin.f32 %v5590, 1.0
      %v5847 = vmin.f32 %v5591, 1.0
      %v5848 = vmin.f32 %v5592, 1.0
      %v5849 = vmin.f32 %v5593, 1.0
      %v5850 = vmin.f32 %v5594, 1.0
      %v5851 = vmin.f32 %v5595, 1.0
      %v5852 = vmin.f32 %v5596, 1.0
      %v5853 = vmin.f32 %v5597, 1.0
      %v5854 = vmin.f32 %v5598, 1.0
      %v5855 = vmin.f32 %v5599, 1.0
      %v5856 = vmin.f32 %v5600, 1.0
      %v5857 = vmin.f32 %v5601, 1.0
      %v5858 = vmin.f32 %v5602, 1.0
      %v5859 = vmin.f32 %v5603, 1.0
      %v5860 = vmin.f32 %v5604, 1.0
      %v5861 = vmin.f32 %v5605, 1.0
      %v5862 = vmin.f32 %v5606, 1.0
      %v5863 = vmin.f32 %v5607, 1.0
      %v5864 = vmin.f32 %v5608, 1.0
      %v5865 = vmin.f32 %v5609, 1.0
      %v5866 = vmin.f32 %v5610, 1.0
      %v5867 = vmin.f32 %v5611, 1.0
      %v5868 = vmin.f32 %v5612, 1.0
      %v5869 = vmin.f32 %v5613, 1.0
      %v5870 = vmin.f32 %v5614, 1.0
      %v5871 = vmin.f32 %v5615, 1.0
      %v5872 = vmin.f32 %v5616, 1.0
      %v5873 = vmin.f32 %v5617, 1.0
      %v5874 = vmin.f32 %v5618, 1.0
      %v5875 = vmin.f32 %v5619, 1.0
      %v5876 = vmin.f32 %v5620, 1.0
      %v5877 = vmin.f32 %v5621, 1.0
      %v5878 = vmin.f32 %v5622, 1.0
      %v5879 = vmin.f32 %v5623, 1.0
      %v5880 = vmin.f32 %v5624, 1.0
      %v5881 = vmin.f32 %v5625, 1.0
      %v5882 = vmin.f32 %v5626, 1.0
      %v5883 = vmin.f32 %v5627, 1.0
      %v5884 = vmin.f32 %v5628, 1.0
      %v5885 = vmin.f32 %v5629, 1.0
      %v5886 = vmin.f32 %v5630, 1.0
      %v5887 = vmin.f32 %v5631, 1.0
      %v5888 = vmin.f32 %v5632, 1.0
      %v5889 = vmin.f32 %v5633, 1.0
      %v5890 = vmin.f32 %v5634, 1.0
      %v5891 = vmin.f32 %v5635, 1.0
      %v5892 = vmin.f32 %v5636, 1.0
      %v5893 = vmin.f32 %v5637, 1.0
      %v5894 = vmin.f32 %v5638, 1.0
      %v5895 = vmin.f32 %v5639, 1.0
      %v5896 = vmin.f32 %v5640, 1.0
      %v5897 = vmin.f32 %v5641, 1.0
      %v5898 = vmin.f32 %v5642, 1.0
      %v5899 = vmin.f32 %v5643, 1.0
      %v5900 = vmin.f32 %v5644, 1.0
      %v5901 = vmin.f32 %v5645, 1.0
      %v5902 = vmin.f32 %v5646, 1.0
      %v5903 = vmin.f32 %v5647, 1.0
      %v5904 = vmin.f32 %v5648, 1.0
      %v5905 = vmin.f32 %v5649, 1.0
      %v5906 = vmin.f32 %v5650, 1.0
      %v5907 = vmin.f32 %v5651, 1.0
      %v5908 = vmin.f32 %v5652, 1.0
      %v5909 = vmin.f32 %v5653, 1.0
      %v5910 = vmin.f32 %v5654, 1.0
      %v5911 = vmin.f32 %v5655, 1.0
      %v5912 = vmin.f32 %v5656, 1.0
      %v5913 = vmin.f32 %v5657, 1.0
      %vm5914 = vcmask 23552
      %5915 = vst.msk [vmem:[%s199] sm:$0xff] %vm5914, %v201
      %5916 = vst.msk [vmem:[%s199 + $0x8] sm:$0xff] %vm5914, %v202
      %5917 = vst.msk [vmem:[%s199 + $0x10] sm:$0xff] %vm5914, %v203
      %5918 = vst.msk [vmem:[%s199 + $0x18] sm:$0xff] %vm5914, %v204
      %5919 = vst.msk [vmem:[%s199 + $0x20] sm:$0xff] %vm5914, %v205
      %5920 = vst.msk [vmem:[%s199 + $0x28] sm:$0xff] %vm5914, %v206
      %5921 = vst.msk [vmem:[%s199 + $0x30] sm:$0xff] %vm5914, %v207
      %5922 = vst.msk [vmem:[%s199 + $0x38] sm:$0xff] %vm5914, %v208
      %5923 = vst.msk [vmem:[%s199 + $0x40] sm:$0xff] %vm5914, %v209
      %5924 = vst.msk [vmem:[%s199 + $0x48] sm:$0xff] %vm5914, %v210
      %5925 = vst.msk [vmem:[%s199 + $0x50] sm:$0xff] %vm5914, %v211
      %5926 = vst.msk [vmem:[%s199 + $0x58] sm:$0xff] %vm5914, %v212
      %5927 = vst.msk [vmem:[%s199 + $0x60] sm:$0xff] %vm5914, %v213
      %5928 = vst.msk [vmem:[%s199 + $0x68] sm:$0xff] %vm5914, %v214
      %5929 = vst.msk [vmem:[%s199 + $0x70] sm:$0xff] %vm5914, %v215
      %5930 = vst.msk [vmem:[%s199 + $0x78] sm:$0xff] %vm5914, %v216
      %5931 = vst.msk [vmem:[%s199 + $0x80] sm:$0xff] %vm5914, %v217
      %5932 = vst.msk [vmem:[%s199 + $0x88] sm:$0xff] %vm5914, %v218
      %5933 = vst.msk [vmem:[%s199 + $0x90] sm:$0xff] %vm5914, %v219
      %5934 = vst.msk [vmem:[%s199 + $0x98] sm:$0xff] %vm5914, %v220
      %5935 = vst.msk [vmem:[%s199 + $0xa0] sm:$0xff] %vm5914, %v221
      %5936 = vst.msk [vmem:[%s199 + $0xa8] sm:$0xff] %vm5914, %v222
      %5937 = vst.msk [vmem:[%s199 + $0xb0] sm:$0xff] %vm5914, %v223
      %5938 = vst.msk [vmem:[%s199 + $0xb8] sm:$0xff] %vm5914, %v224
      %5939 = vst.msk [vmem:[%s199 + $0xc0] sm:$0xff] %vm5914, %v225
      %5940 = vst.msk [vmem:[%s199 + $0xc8] sm:$0xff] %vm5914, %v226
      %5941 = vst.msk [vmem:[%s199 + $0xd0] sm:$0xff] %vm5914, %v227
      %5942 = vst.msk [vmem:[%s199 + $0xd8] sm:$0xff] %vm5914, %v228
      %5943 = vst.msk [vmem:[%s199 + $0xe0] sm:$0xff] %vm5914, %v229
      %5944 = vst.msk [vmem:[%s199 + $0xe8] sm:$0xff] %vm5914, %v230
      %5945 = vst.msk [vmem:[%s199 + $0xf0] sm:$0xff] %vm5914, %v231
      %5946 = vst.msk [vmem:[%s199 + $0xf8] sm:$0xff] %vm5914, %v232
      %5947 = vst.msk [vmem:[%s199 + $0x100] sm:$0xff] %vm5914, %v233
      %5948 = vst.msk [vmem:[%s199 + $0x108] sm:$0xff] %vm5914, %v234
      %5949 = vst.msk [vmem:[%s199 + $0x110] sm:$0xff] %vm5914, %v235
      %5950 = vst.msk [vmem:[%s199 + $0x118] sm:$0xff] %vm5914, %v236
      %5951 = vst.msk [vmem:[%s199 + $0x120] sm:$0xff] %vm5914, %v237
      %5952 = vst.msk [vmem:[%s199 + $0x128] sm:$0xff] %vm5914, %v238
      %5953 = vst.msk [vmem:[%s199 + $0x130] sm:$0xff] %vm5914, %v239
      %5954 = vst.msk [vmem:[%s199 + $0x138] sm:$0xff] %vm5914, %v240
      %5955 = vst.msk [vmem:[%s199 + $0x140] sm:$0xff] %vm5914, %v241
      %5956 = vst.msk [vmem:[%s199 + $0x148] sm:$0xff] %vm5914, %v242
      %5957 = vst.msk [vmem:[%s199 + $0x150] sm:$0xff] %vm5914, %v243
      %5958 = vst.msk [vmem:[%s199 + $0x158] sm:$0xff] %vm5914, %v244
      %5959 = vst.msk [vmem:[%s199 + $0x160] sm:$0xff] %vm5914, %v245
      %5960 = vst.msk [vmem:[%s199 + $0x168] sm:$0xff] %vm5914, %v246
      %5961 = vst.msk [vmem:[%s199 + $0x170] sm:$0xff] %vm5914, %v247
      %5962 = vst.msk [vmem:[%s199 + $0x178] sm:$0xff] %vm5914, %v248
      %5963 = vst.msk [vmem:[%s199 + $0x180] sm:$0xff] %vm5914, %v249
      %5964 = vst.msk [vmem:[%s199 + $0x188] sm:$0xff] %vm5914, %v250
      %5965 = vst.msk [vmem:[%s199 + $0x190] sm:$0xff] %vm5914, %v251
      %5966 = vst.msk [vmem:[%s199 + $0x198] sm:$0xff] %vm5914, %v252
      %5967 = vst.msk [vmem:[%s199 + $0x1a0] sm:$0xff] %vm5914, %v253
      %5968 = vst.msk [vmem:[%s199 + $0x1a8] sm:$0xff] %vm5914, %v254
      %5969 = vst.msk [vmem:[%s199 + $0x1b0] sm:$0xff] %vm5914, %v255
      %5970 = vst.msk [vmem:[%s199 + $0x1b8] sm:$0xff] %vm5914, %v256
      %5971 = vst.msk [vmem:[%s199 + $0x1c0] sm:$0xff] %vm5914, %v257
      %5972 = vst.msk [vmem:[%s199 + $0x1c8] sm:$0xff] %vm5914, %v258
      %5973 = vst.msk [vmem:[%s199 + $0x1d0] sm:$0xff] %vm5914, %v259
      %5974 = vst.msk [vmem:[%s199 + $0x1d8] sm:$0xff] %vm5914, %v260
      %5975 = vst.msk [vmem:[%s199 + $0x1e0] sm:$0xff] %vm5914, %v261
      %5976 = vst.msk [vmem:[%s199 + $0x1e8] sm:$0xff] %vm5914, %v262
      %5977 = vst.msk [vmem:[%s199 + $0x1f0] sm:$0xff] %vm5914, %v263
      %5978 = vst.msk [vmem:[%s199 + $0x1f8] sm:$0xff] %vm5914, %v264
      %5979 = vst.msk [vmem:[%s199 + $0x200] sm:$0xff] %vm5914, %v265
      %5980 = vst.msk [vmem:[%s199 + $0x208] sm:$0xff] %vm5914, %v266
      %5981 = vst.msk [vmem:[%s199 + $0x210] sm:$0xff] %vm5914, %v267
      %5982 = vst.msk [vmem:[%s199 + $0x218] sm:$0xff] %vm5914, %v268
      %5983 = vst.msk [vmem:[%s199 + $0x220] sm:$0xff] %vm5914, %v269
      %5984 = vst.msk [vmem:[%s199 + $0x228] sm:$0xff] %vm5914, %v270
      %5985 = vst.msk [vmem:[%s199 + $0x230] sm:$0xff] %vm5914, %v271
      %5986 = vst.msk [vmem:[%s199 + $0x238] sm:$0xff] %vm5914, %v272
      %5987 = vst.msk [vmem:[%s199 + $0x240] sm:$0xff] %vm5914, %v273
      %5988 = vst.msk [vmem:[%s199 + $0x248] sm:$0xff] %vm5914, %v274
      %5989 = vst.msk [vmem:[%s199 + $0x250] sm:$0xff] %vm5914, %v275
      %5990 = vst.msk [vmem:[%s199 + $0x258] sm:$0xff] %vm5914, %v276
      %5991 = vst.msk [vmem:[%s199 + $0x260] sm:$0xff] %vm5914, %v277
      %5992 = vst.msk [vmem:[%s199 + $0x268] sm:$0xff] %vm5914, %v278
      %5993 = vst.msk [vmem:[%s199 + $0x270] sm:$0xff] %vm5914, %v279
      %5994 = vst.msk [vmem:[%s199 + $0x278] sm:$0xff] %vm5914, %v280
      %5995 = vst.msk [vmem:[%s199 + $0x280] sm:$0xff] %vm5914, %v281
      %5996 = vst.msk [vmem:[%s199 + $0x288] sm:$0xff] %vm5914, %v282
      %5997 = vst.msk [vmem:[%s199 + $0x290] sm:$0xff] %vm5914, %v283
      %5998 = vst.msk [vmem:[%s199 + $0x298] sm:$0xff] %vm5914, %v284
      %5999 = vst.msk [vmem:[%s199 + $0x2a0] sm:$0xff] %vm5914, %v285
      %6000 = vst.msk [vmem:[%s199 + $0x2a8] sm:$0xff] %vm5914, %v286
      %6001 = vst.msk [vmem:[%s199 + $0x2b0] sm:$0xff] %vm5914, %v287
      %6002 = vst.msk [vmem:[%s199 + $0x2b8] sm:$0xff] %vm5914, %v288
      %6003 = vst.msk [vmem:[%s199 + $0x2c0] sm:$0xff] %vm5914, %v289
      %6004 = vst.msk [vmem:[%s199 + $0x2c8] sm:$0xff] %vm5914, %v290
      %6005 = vst.msk [vmem:[%s199 + $0x2d0] sm:$0xff] %vm5914, %v291
      %6006 = vst.msk [vmem:[%s199 + $0x2d8] sm:$0xff] %vm5914, %v292
      %6007 = vst.msk [vmem:[%s199 + $0x2e0] sm:$0xff] %vm5914, %v293
      %6008 = vst.msk [vmem:[%s199 + $0x2e8] sm:$0xff] %vm5914, %v294
      %6009 = vst.msk [vmem:[%s199 + $0x2f0] sm:$0xff] %vm5914, %v295
      %6010 = vst.msk [vmem:[%s199 + $0x2f8] sm:$0xff] %vm5914, %v296
      %6011 = vst.msk [vmem:[%s199 + $0x300] sm:$0xff] %vm5914, %v297
      %6012 = vst.msk [vmem:[%s199 + $0x308] sm:$0xff] %vm5914, %v298
      %6013 = vst.msk [vmem:[%s199 + $0x310] sm:$0xff] %vm5914, %v299
      %6014 = vst.msk [vmem:[%s199 + $0x318] sm:$0xff] %vm5914, %v300
      %6015 = vst.msk [vmem:[%s199 + $0x320] sm:$0xff] %vm5914, %v301
      %6016 = vst.msk [vmem:[%s199 + $0x328] sm:$0xff] %vm5914, %v302
      %6017 = vst.msk [vmem:[%s199 + $0x330] sm:$0xff] %vm5914, %v303
      %6018 = vst.msk [vmem:[%s199 + $0x338] sm:$0xff] %vm5914, %v304
      %6019 = vst.msk [vmem:[%s199 + $0x340] sm:$0xff] %vm5914, %v305
      %6020 = vst.msk [vmem:[%s199 + $0x348] sm:$0xff] %vm5914, %v306
      %6021 = vst.msk [vmem:[%s199 + $0x350] sm:$0xff] %vm5914, %v307
      %6022 = vst.msk [vmem:[%s199 + $0x358] sm:$0xff] %vm5914, %v308
      %6023 = vst.msk [vmem:[%s199 + $0x360] sm:$0xff] %vm5914, %v309
      %6024 = vst.msk [vmem:[%s199 + $0x368] sm:$0xff] %vm5914, %v310
      %6025 = vst.msk [vmem:[%s199 + $0x370] sm:$0xff] %vm5914, %v311
      %6026 = vst.msk [vmem:[%s199 + $0x378] sm:$0xff] %vm5914, %v312
      %6027 = vst.msk [vmem:[%s199 + $0x380] sm:$0xff] %vm5914, %v313
      %6028 = vst.msk [vmem:[%s199 + $0x388] sm:$0xff] %vm5914, %v314
      %6029 = vst.msk [vmem:[%s199 + $0x390] sm:$0xff] %vm5914, %v315
      %6030 = vst.msk [vmem:[%s199 + $0x398] sm:$0xff] %vm5914, %v316
      %6031 = vst.msk [vmem:[%s199 + $0x3a0] sm:$0xff] %vm5914, %v317
      %6032 = vst.msk [vmem:[%s199 + $0x3a8] sm:$0xff] %vm5914, %v318
      %6033 = vst.msk [vmem:[%s199 + $0x3b0] sm:$0xff] %vm5914, %v319
      %6034 = vst.msk [vmem:[%s199 + $0x3b8] sm:$0xff] %vm5914, %v320
      %6035 = vst.msk [vmem:[%s199 + $0x3c0] sm:$0xff] %vm5914, %v321
      %6036 = vst.msk [vmem:[%s199 + $0x3c8] sm:$0xff] %vm5914, %v322
      %6037 = vst.msk [vmem:[%s199 + $0x3d0] sm:$0xff] %vm5914, %v323
      %6038 = vst.msk [vmem:[%s199 + $0x3d8] sm:$0xff] %vm5914, %v324
      %6039 = vst.msk [vmem:[%s199 + $0x3e0] sm:$0xff] %vm5914, %v325
      %6040 = vst.msk [vmem:[%s199 + $0x3e8] sm:$0xff] %vm5914, %v326
      %6041 = vst.msk [vmem:[%s199 + $0x3f0] sm:$0xff] %vm5914, %v327
      %6042 = vst.msk [vmem:[%s199 + $0x3f8] sm:$0xff] %vm5914, %v328
      %6043 = vst.msk [vmem:[%s199 + $0x400] sm:$0xff] %vm5914, %v329
      %6044 = vst.msk [vmem:[%s199 + $0x408] sm:$0xff] %vm5914, %v330
      %6045 = vst.msk [vmem:[%s199 + $0x410] sm:$0xff] %vm5914, %v331
      %6046 = vst.msk [vmem:[%s199 + $0x418] sm:$0xff] %vm5914, %v332
      %6047 = vst.msk [vmem:[%s199 + $0x420] sm:$0xff] %vm5914, %v333
      %6048 = vst.msk [vmem:[%s199 + $0x428] sm:$0xff] %vm5914, %v334
      %6049 = vst.msk [vmem:[%s199 + $0x430] sm:$0xff] %vm5914, %v335
      %6050 = vst.msk [vmem:[%s199 + $0x438] sm:$0xff] %vm5914, %v336
      %6051 = vst.msk [vmem:[%s199 + $0x440] sm:$0xff] %vm5914, %v337
      %6052 = vst.msk [vmem:[%s199 + $0x448] sm:$0xff] %vm5914, %v338
      %6053 = vst.msk [vmem:[%s199 + $0x450] sm:$0xff] %vm5914, %v339
      %6054 = vst.msk [vmem:[%s199 + $0x458] sm:$0xff] %vm5914, %v340
      %6055 = vst.msk [vmem:[%s199 + $0x460] sm:$0xff] %vm5914, %v341
      %6056 = vst.msk [vmem:[%s199 + $0x468] sm:$0xff] %vm5914, %v342
      %6057 = vst.msk [vmem:[%s199 + $0x470] sm:$0xff] %vm5914, %v343
      %6058 = vst.msk [vmem:[%s199 + $0x478] sm:$0xff] %vm5914, %v344
      %6059 = vst.msk [vmem:[%s199 + $0x480] sm:$0xff] %vm5914, %v345
      %6060 = vst.msk [vmem:[%s199 + $0x488] sm:$0xff] %vm5914, %v346
      %6061 = vst.msk [vmem:[%s199 + $0x490] sm:$0xff] %vm5914, %v347
      %6062 = vst.msk [vmem:[%s199 + $0x498] sm:$0xff] %vm5914, %v348
      %6063 = vst.msk [vmem:[%s199 + $0x4a0] sm:$0xff] %vm5914, %v349
      %6064 = vst.msk [vmem:[%s199 + $0x4a8] sm:$0xff] %vm5914, %v350
      %6065 = vst.msk [vmem:[%s199 + $0x4b0] sm:$0xff] %vm5914, %v351
      %6066 = vst.msk [vmem:[%s199 + $0x4b8] sm:$0xff] %vm5914, %v352
      %6067 = vst.msk [vmem:[%s199 + $0x4c0] sm:$0xff] %vm5914, %v353
      %6068 = vst.msk [vmem:[%s199 + $0x4c8] sm:$0xff] %vm5914, %v354
      %6069 = vst.msk [vmem:[%s199 + $0x4d0] sm:$0xff] %vm5914, %v355
      %6070 = vst.msk [vmem:[%s199 + $0x4d8] sm:$0xff] %vm5914, %v356
      %6071 = vst.msk [vmem:[%s199 + $0x4e0] sm:$0xff] %vm5914, %v357
      %6072 = vst.msk [vmem:[%s199 + $0x4e8] sm:$0xff] %vm5914, %v358
      %6073 = vst.msk [vmem:[%s199 + $0x4f0] sm:$0xff] %vm5914, %v359
      %6074 = vst.msk [vmem:[%s199 + $0x4f8] sm:$0xff] %vm5914, %v360
      %6075 = vst.msk [vmem:[%s199 + $0x500] sm:$0xff] %vm5914, %v361
      %6076 = vst.msk [vmem:[%s199 + $0x508] sm:$0xff] %vm5914, %v362
      %6077 = vst.msk [vmem:[%s199 + $0x510] sm:$0xff] %vm5914, %v363
      %6078 = vst.msk [vmem:[%s199 + $0x518] sm:$0xff] %vm5914, %v364
      %6079 = vst.msk [vmem:[%s199 + $0x520] sm:$0xff] %vm5914, %v365
      %6080 = vst.msk [vmem:[%s199 + $0x528] sm:$0xff] %vm5914, %v366
      %6081 = vst.msk [vmem:[%s199 + $0x530] sm:$0xff] %vm5914, %v367
      %6082 = vst.msk [vmem:[%s199 + $0x538] sm:$0xff] %vm5914, %v368
      %6083 = vst.msk [vmem:[%s199 + $0x540] sm:$0xff] %vm5914, %v369
      %6084 = vst.msk [vmem:[%s199 + $0x548] sm:$0xff] %vm5914, %v370
      %6085 = vst.msk [vmem:[%s199 + $0x550] sm:$0xff] %vm5914, %v371
      %6086 = vst.msk [vmem:[%s199 + $0x558] sm:$0xff] %vm5914, %v372
      %6087 = vst.msk [vmem:[%s199 + $0x560] sm:$0xff] %vm5914, %v373
      %6088 = vst.msk [vmem:[%s199 + $0x568] sm:$0xff] %vm5914, %v374
      %6089 = vst.msk [vmem:[%s199 + $0x570] sm:$0xff] %vm5914, %v375
      %6090 = vst.msk [vmem:[%s199 + $0x578] sm:$0xff] %vm5914, %v376
      %6091 = vst.msk [vmem:[%s199 + $0x580] sm:$0xff] %vm5914, %v377
      %6092 = vst.msk [vmem:[%s199 + $0x588] sm:$0xff] %vm5914, %v378
      %6093 = vst.msk [vmem:[%s199 + $0x590] sm:$0xff] %vm5914, %v379
      %6094 = vst.msk [vmem:[%s199 + $0x598] sm:$0xff] %vm5914, %v380
      %6095 = vst.msk [vmem:[%s199 + $0x5a0] sm:$0xff] %vm5914, %v381
      %6096 = vst.msk [vmem:[%s199 + $0x5a8] sm:$0xff] %vm5914, %v382
      %6097 = vst.msk [vmem:[%s199 + $0x5b0] sm:$0xff] %vm5914, %v383
      %6098 = vst.msk [vmem:[%s199 + $0x5b8] sm:$0xff] %vm5914, %v384
      %6099 = vst.msk [vmem:[%s199 + $0x5c0] sm:$0xff] %vm5914, %v385
      %6100 = vst.msk [vmem:[%s199 + $0x5c8] sm:$0xff] %vm5914, %v386
      %6101 = vst.msk [vmem:[%s199 + $0x5d0] sm:$0xff] %vm5914, %v387
      %6102 = vst.msk [vmem:[%s199 + $0x5d8] sm:$0xff] %vm5914, %v388
      %6103 = vst.msk [vmem:[%s199 + $0x5e0] sm:$0xff] %vm5914, %v389
      %6104 = vst.msk [vmem:[%s199 + $0x5e8] sm:$0xff] %vm5914, %v390
      %6105 = vst.msk [vmem:[%s199 + $0x5f0] sm:$0xff] %vm5914, %v391
      %6106 = vst.msk [vmem:[%s199 + $0x5f8] sm:$0xff] %vm5914, %v392
      %6107 = vst.msk [vmem:[%s199 + $0x600] sm:$0xff] %vm5914, %v393
      %6108 = vst.msk [vmem:[%s199 + $0x608] sm:$0xff] %vm5914, %v394
      %6109 = vst.msk [vmem:[%s199 + $0x610] sm:$0xff] %vm5914, %v395
      %6110 = vst.msk [vmem:[%s199 + $0x618] sm:$0xff] %vm5914, %v396
      %6111 = vst.msk [vmem:[%s199 + $0x620] sm:$0xff] %vm5914, %v397
      %6112 = vst.msk [vmem:[%s199 + $0x628] sm:$0xff] %vm5914, %v398
      %6113 = vst.msk [vmem:[%s199 + $0x630] sm:$0xff] %vm5914, %v399
      %6114 = vst.msk [vmem:[%s199 + $0x638] sm:$0xff] %vm5914, %v400
      %6115 = vst.msk [vmem:[%s199 + $0x640] sm:$0xff] %vm5914, %v401
      %6116 = vst.msk [vmem:[%s199 + $0x648] sm:$0xff] %vm5914, %v402
      %6117 = vst.msk [vmem:[%s199 + $0x650] sm:$0xff] %vm5914, %v403
      %6118 = vst.msk [vmem:[%s199 + $0x658] sm:$0xff] %vm5914, %v404
      %6119 = vst.msk [vmem:[%s199 + $0x660] sm:$0xff] %vm5914, %v405
      %6120 = vst.msk [vmem:[%s199 + $0x668] sm:$0xff] %vm5914, %v406
      %6121 = vst.msk [vmem:[%s199 + $0x670] sm:$0xff] %vm5914, %v407
      %6122 = vst.msk [vmem:[%s199 + $0x678] sm:$0xff] %vm5914, %v408
      %6123 = vst.msk [vmem:[%s199 + $0x680] sm:$0xff] %vm5914, %v409
      %6124 = vst.msk [vmem:[%s199 + $0x688] sm:$0xff] %vm5914, %v410
      %6125 = vst.msk [vmem:[%s199 + $0x690] sm:$0xff] %vm5914, %v411
      %6126 = vst.msk [vmem:[%s199 + $0x698] sm:$0xff] %vm5914, %v412
      %6127 = vst.msk [vmem:[%s199 + $0x6a0] sm:$0xff] %vm5914, %v413
      %6128 = vst.msk [vmem:[%s199 + $0x6a8] sm:$0xff] %vm5914, %v414
      %6129 = vst.msk [vmem:[%s199 + $0x6b0] sm:$0xff] %vm5914, %v415
      %6130 = vst.msk [vmem:[%s199 + $0x6b8] sm:$0xff] %vm5914, %v416
      %6131 = vst.msk [vmem:[%s199 + $0x6c0] sm:$0xff] %vm5914, %v417
      %6132 = vst.msk [vmem:[%s199 + $0x6c8] sm:$0xff] %vm5914, %v418
      %6133 = vst.msk [vmem:[%s199 + $0x6d0] sm:$0xff] %vm5914, %v419
      %6134 = vst.msk [vmem:[%s199 + $0x6d8] sm:$0xff] %vm5914, %v420
      %6135 = vst.msk [vmem:[%s199 + $0x6e0] sm:$0xff] %vm5914, %v421
      %6136 = vst.msk [vmem:[%s199 + $0x6e8] sm:$0xff] %vm5914, %v422
      %6137 = vst.msk [vmem:[%s199 + $0x6f0] sm:$0xff] %vm5914, %v423
      %6138 = vst.msk [vmem:[%s199 + $0x6f8] sm:$0xff] %vm5914, %v424
      %6139 = vst.msk [vmem:[%s199 + $0x700] sm:$0xff] %vm5914, %v425
      %6140 = vst.msk [vmem:[%s199 + $0x708] sm:$0xff] %vm5914, %v426
      %6141 = vst.msk [vmem:[%s199 + $0x710] sm:$0xff] %vm5914, %v427
      %6142 = vst.msk [vmem:[%s199 + $0x718] sm:$0xff] %vm5914, %v428
      %6143 = vst.msk [vmem:[%s199 + $0x720] sm:$0xff] %vm5914, %v429
      %6144 = vst.msk [vmem:[%s199 + $0x728] sm:$0xff] %vm5914, %v430
      %6145 = vst.msk [vmem:[%s199 + $0x730] sm:$0xff] %vm5914, %v431
      %6146 = vst.msk [vmem:[%s199 + $0x738] sm:$0xff] %vm5914, %v432
      %6147 = vst.msk [vmem:[%s199 + $0x740] sm:$0xff] %vm5914, %v433
      %6148 = vst.msk [vmem:[%s199 + $0x748] sm:$0xff] %vm5914, %v434
      %6149 = vst.msk [vmem:[%s199 + $0x750] sm:$0xff] %vm5914, %v435
      %6150 = vst.msk [vmem:[%s199 + $0x758] sm:$0xff] %vm5914, %v436
      %6151 = vst.msk [vmem:[%s199 + $0x760] sm:$0xff] %vm5914, %v437
      %6152 = vst.msk [vmem:[%s199 + $0x768] sm:$0xff] %vm5914, %v438
      %6153 = vst.msk [vmem:[%s199 + $0x770] sm:$0xff] %vm5914, %v439
      %6154 = vst.msk [vmem:[%s199 + $0x778] sm:$0xff] %vm5914, %v440
      %6155 = vst.msk [vmem:[%s199 + $0x780] sm:$0xff] %vm5914, %v441
      %6156 = vst.msk [vmem:[%s199 + $0x788] sm:$0xff] %vm5914, %v442
      %6157 = vst.msk [vmem:[%s199 + $0x790] sm:$0xff] %vm5914, %v443
      %6158 = vst.msk [vmem:[%s199 + $0x798] sm:$0xff] %vm5914, %v444
      %6159 = vst.msk [vmem:[%s199 + $0x7a0] sm:$0xff] %vm5914, %v445
      %6160 = vst.msk [vmem:[%s199 + $0x7a8] sm:$0xff] %vm5914, %v446
      %6161 = vst.msk [vmem:[%s199 + $0x7b0] sm:$0xff] %vm5914, %v447
      %6162 = vst.msk [vmem:[%s199 + $0x7b8] sm:$0xff] %vm5914, %v448
      %6163 = vst.msk [vmem:[%s199 + $0x7c0] sm:$0xff] %vm5914, %v449
      %6164 = vst.msk [vmem:[%s199 + $0x7c8] sm:$0xff] %vm5914, %v450
      %6165 = vst.msk [vmem:[%s199 + $0x7d0] sm:$0xff] %vm5914, %v451
      %6166 = vst.msk [vmem:[%s199 + $0x7d8] sm:$0xff] %vm5914, %v452
      %6167 = vst.msk [vmem:[%s199 + $0x7e0] sm:$0xff] %vm5914, %v453
      %6168 = vst.msk [vmem:[%s199 + $0x7e8] sm:$0xff] %vm5914, %v454
      %6169 = vst.msk [vmem:[%s199 + $0x7f0] sm:$0xff] %vm5914, %v455
      %6170 = vst.msk [vmem:[%s199 + $0x7f8] sm:$0xff] %vm5914, %v456
      %6427 = vrot.lane.b32.xlu0 %v5658, 3
      %v6428 = vpop.permute.xlu0 %6427
      %6429 = vrot.lane.b32.xlu0 %v5659, 3
      %v6430 = vpop.permute.xlu0 %6429
      %6431 = vrot.lane.b32.xlu0 %v5660, 3
      %v6432 = vpop.permute.xlu0 %6431
      %6433 = vrot.lane.b32.xlu0 %v5661, 3
      %v6434 = vpop.permute.xlu0 %6433
      %6435 = vrot.lane.b32.xlu0 %v5662, 3
      %v6436 = vpop.permute.xlu0 %6435
      %6437 = vrot.lane.b32.xlu0 %v5663, 3
      %v6438 = vpop.permute.xlu0 %6437
      %6439 = vrot.lane.b32.xlu0 %v5664, 3
      %v6440 = vpop.permute.xlu0 %6439
      %6441 = vrot.lane.b32.xlu0 %v5665, 3
      %v6442 = vpop.permute.xlu0 %6441
      %6443 = vrot.lane.b32.xlu0 %v5666, 3
      %v6444 = vpop.permute.xlu0 %6443
      %6445 = vrot.lane.b32.xlu0 %v5667, 3
      %v6446 = vpop.permute.xlu0 %6445
      %6447 = vrot.lane.b32.xlu0 %v5668, 3
      %v6448 = vpop.permute.xlu0 %6447
      %6449 = vrot.lane.b32.xlu0 %v5669, 3
      %v6450 = vpop.permute.xlu0 %6449
      %6451 = vrot.lane.b32.xlu0 %v5670, 3
      %v6452 = vpop.permute.xlu0 %6451
      %6453 = vrot.lane.b32.xlu0 %v5671, 3
      %v6454 = vpop.permute.xlu0 %6453
      %6455 = vrot.lane.b32.xlu0 %v5672, 3
      %v6456 = vpop.permute.xlu0 %6455
      %6457 = vrot.lane.b32.xlu0 %v5673, 3
      %v6458 = vpop.permute.xlu0 %6457
      %6459 = vrot.lane.b32.xlu0 %v5674, 3
      %v6460 = vpop.permute.xlu0 %6459
      %6461 = vrot.lane.b32.xlu0 %v5675, 3
      %v6462 = vpop.permute.xlu0 %6461
      %6463 = vrot.lane.b32.xlu0 %v5676, 3
      %v6464 = vpop.permute.xlu0 %6463
      %6465 = vrot.lane.b32.xlu0 %v5677, 3
      %v6466 = vpop.permute.xlu0 %6465
      %6467 = vrot.lane.b32.xlu0 %v5678, 3
      %v6468 = vpop.permute.xlu0 %6467
      %6469 = vrot.lane.b32.xlu0 %v5679, 3
      %v6470 = vpop.permute.xlu0 %6469
      %6471 = vrot.lane.b32.xlu0 %v5680, 3
      %v6472 = vpop.permute.xlu0 %6471
      %6473 = vrot.lane.b32.xlu0 %v5681, 3
      %v6474 = vpop.permute.xlu0 %6473
      %6475 = vrot.lane.b32.xlu0 %v5682, 3
      %v6476 = vpop.permute.xlu0 %6475
      %6477 = vrot.lane.b32.xlu0 %v5683, 3
      %v6478 = vpop.permute.xlu0 %6477
      %6479 = vrot.lane.b32.xlu0 %v5684, 3
      %v6480 = vpop.permute.xlu0 %6479
      %6481 = vrot.lane.b32.xlu0 %v5685, 3
      %v6482 = vpop.permute.xlu0 %6481
      %6483 = vrot.lane.b32.xlu0 %v5686, 3
      %v6484 = vpop.permute.xlu0 %6483
      %6485 = vrot.lane.b32.xlu0 %v5687, 3
      %v6486 = vpop.permute.xlu0 %6485
      %6487 = vrot.lane.b32.xlu0 %v5688, 3
      %v6488 = vpop.permute.xlu0 %6487
      %6489 = vrot.lane.b32.xlu0 %v5689, 3
      %v6490 = vpop.permute.xlu0 %6489
      %6491 = vrot.lane.b32.xlu0 %v5690, 3
      %v6492 = vpop.permute.xlu0 %6491
      %6493 = vrot.lane.b32.xlu0 %v5691, 3
      %v6494 = vpop.permute.xlu0 %6493
      %6495 = vrot.lane.b32.xlu0 %v5692, 3
      %v6496 = vpop.permute.xlu0 %6495
      %6497 = vrot.lane.b32.xlu0 %v5693, 3
      %v6498 = vpop.permute.xlu0 %6497
      %6499 = vrot.lane.b32.xlu0 %v5694, 3
      %v6500 = vpop.permute.xlu0 %6499
      %6501 = vrot.lane.b32.xlu0 %v5695, 3
      %v6502 = vpop.permute.xlu0 %6501
      %6503 = vrot.lane.b32.xlu0 %v5696, 3
      %v6504 = vpop.permute.xlu0 %6503
      %6505 = vrot.lane.b32.xlu0 %v5697, 3
      %v6506 = vpop.permute.xlu0 %6505
      %6507 = vrot.lane.b32.xlu0 %v5698, 3
      %v6508 = vpop.permute.xlu0 %6507
      %6509 = vrot.lane.b32.xlu0 %v5699, 3
      %v6510 = vpop.permute.xlu0 %6509
      %6511 = vrot.lane.b32.xlu0 %v5700, 3
      %v6512 = vpop.permute.xlu0 %6511
      %6513 = vrot.lane.b32.xlu0 %v5701, 3
      %v6514 = vpop.permute.xlu0 %6513
      %6515 = vrot.lane.b32.xlu0 %v5702, 3
      %v6516 = vpop.permute.xlu0 %6515
      %6517 = vrot.lane.b32.xlu0 %v5703, 3
      %v6518 = vpop.permute.xlu0 %6517
      %6519 = vrot.lane.b32.xlu0 %v5704, 3
      %v6520 = vpop.permute.xlu0 %6519
      %6521 = vrot.lane.b32.xlu0 %v5705, 3
      %v6522 = vpop.permute.xlu0 %6521
      %6523 = vrot.lane.b32.xlu0 %v5706, 3
      %v6524 = vpop.permute.xlu0 %6523
      %6525 = vrot.lane.b32.xlu0 %v5707, 3
      %v6526 = vpop.permute.xlu0 %6525
      %6527 = vrot.lane.b32.xlu0 %v5708, 3
      %v6528 = vpop.permute.xlu0 %6527
      %6529 = vrot.lane.b32.xlu0 %v5709, 3
      %v6530 = vpop.permute.xlu0 %6529
      %6531 = vrot.lane.b32.xlu0 %v5710, 3
      %v6532 = vpop.permute.xlu0 %6531
      %6533 = vrot.lane.b32.xlu0 %v5711, 3
      %v6534 = vpop.permute.xlu0 %6533
      %6535 = vrot.lane.b32.xlu0 %v5712, 3
      %v6536 = vpop.permute.xlu0 %6535
      %6537 = vrot.lane.b32.xlu0 %v5713, 3
      %v6538 = vpop.permute.xlu0 %6537
      %6539 = vrot.lane.b32.xlu0 %v5714, 3
      %v6540 = vpop.permute.xlu0 %6539
      %6541 = vrot.lane.b32.xlu0 %v5715, 3
      %v6542 = vpop.permute.xlu0 %6541
      %6543 = vrot.lane.b32.xlu0 %v5716, 3
      %v6544 = vpop.permute.xlu0 %6543
      %6545 = vrot.lane.b32.xlu0 %v5717, 3
      %v6546 = vpop.permute.xlu0 %6545
      %6547 = vrot.lane.b32.xlu0 %v5718, 3
      %v6548 = vpop.permute.xlu0 %6547
      %6549 = vrot.lane.b32.xlu0 %v5719, 3
      %v6550 = vpop.permute.xlu0 %6549
      %6551 = vrot.lane.b32.xlu0 %v5720, 3
      %v6552 = vpop.permute.xlu0 %6551
      %6553 = vrot.lane.b32.xlu0 %v5721, 3
      %v6554 = vpop.permute.xlu0 %6553
      %6555 = vrot.lane.b32.xlu0 %v5722, 3
      %v6556 = vpop.permute.xlu0 %6555
      %6557 = vrot.lane.b32.xlu0 %v5723, 3
      %v6558 = vpop.permute.xlu0 %6557
      %6559 = vrot.lane.b32.xlu0 %v5724, 3
      %v6560 = vpop.permute.xlu0 %6559
      %6561 = vrot.lane.b32.xlu0 %v5725, 3
      %v6562 = vpop.permute.xlu0 %6561
      %6563 = vrot.lane.b32.xlu0 %v5726, 3
      %v6564 = vpop.permute.xlu0 %6563
      %6565 = vrot.lane.b32.xlu0 %v5727, 3
      %v6566 = vpop.permute.xlu0 %6565
      %6567 = vrot.lane.b32.xlu0 %v5728, 3
      %v6568 = vpop.permute.xlu0 %6567
      %6569 = vrot.lane.b32.xlu0 %v5729, 3
      %v6570 = vpop.permute.xlu0 %6569
      %6571 = vrot.lane.b32.xlu0 %v5730, 3
      %v6572 = vpop.permute.xlu0 %6571
      %6573 = vrot.lane.b32.xlu0 %v5731, 3
      %v6574 = vpop.permute.xlu0 %6573
      %6575 = vrot.lane.b32.xlu0 %v5732, 3
      %v6576 = vpop.permute.xlu0 %6575
      %6577 = vrot.lane.b32.xlu0 %v5733, 3
      %v6578 = vpop.permute.xlu0 %6577
      %6579 = vrot.lane.b32.xlu0 %v5734, 3
      %v6580 = vpop.permute.xlu0 %6579
      %6581 = vrot.lane.b32.xlu0 %v5735, 3
      %v6582 = vpop.permute.xlu0 %6581
      %6583 = vrot.lane.b32.xlu0 %v5736, 3
      %v6584 = vpop.permute.xlu0 %6583
      %6585 = vrot.lane.b32.xlu0 %v5737, 3
      %v6586 = vpop.permute.xlu0 %6585
      %6587 = vrot.lane.b32.xlu0 %v5738, 3
      %v6588 = vpop.permute.xlu0 %6587
      %6589 = vrot.lane.b32.xlu0 %v5739, 3
      %v6590 = vpop.permute.xlu0 %6589
      %6591 = vrot.lane.b32.xlu0 %v5740, 3
      %v6592 = vpop.permute.xlu0 %6591
      %6593 = vrot.lane.b32.xlu0 %v5741, 3
      %v6594 = vpop.permute.xlu0 %6593
      %6595 = vrot.lane.b32.xlu0 %v5742, 3
      %v6596 = vpop.permute.xlu0 %6595
      %6597 = vrot.lane.b32.xlu0 %v5743, 3
      %v6598 = vpop.permute.xlu0 %6597
      %6599 = vrot.lane.b32.xlu0 %v5744, 3
      %v6600 = vpop.permute.xlu0 %6599
      %6601 = vrot.lane.b32.xlu0 %v5745, 3
      %v6602 = vpop.permute.xlu0 %6601
      %6603 = vrot.lane.b32.xlu0 %v5746, 3
      %v6604 = vpop.permute.xlu0 %6603
      %6605 = vrot.lane.b32.xlu0 %v5747, 3
      %v6606 = vpop.permute.xlu0 %6605
      %6607 = vrot.lane.b32.xlu0 %v5748, 3
      %v6608 = vpop.permute.xlu0 %6607
      %6609 = vrot.lane.b32.xlu0 %v5749, 3
      %v6610 = vpop.permute.xlu0 %6609
      %6611 = vrot.lane.b32.xlu0 %v5750, 3
      %v6612 = vpop.permute.xlu0 %6611
      %6613 = vrot.lane.b32.xlu0 %v5751, 3
      %v6614 = vpop.permute.xlu0 %6613
      %6615 = vrot.lane.b32.xlu0 %v5752, 3
      %v6616 = vpop.permute.xlu0 %6615
      %6617 = vrot.lane.b32.xlu0 %v5753, 3
      %v6618 = vpop.permute.xlu0 %6617
      %6619 = vrot.lane.b32.xlu0 %v5754, 3
      %v6620 = vpop.permute.xlu0 %6619
      %6621 = vrot.lane.b32.xlu0 %v5755, 3
      %v6622 = vpop.permute.xlu0 %6621
      %6623 = vrot.lane.b32.xlu0 %v5756, 3
      %v6624 = vpop.permute.xlu0 %6623
      %6625 = vrot.lane.b32.xlu0 %v5757, 3
      %v6626 = vpop.permute.xlu0 %6625
      %6627 = vrot.lane.b32.xlu0 %v5758, 3
      %v6628 = vpop.permute.xlu0 %6627
      %6629 = vrot.lane.b32.xlu0 %v5759, 3
      %v6630 = vpop.permute.xlu0 %6629
      %6631 = vrot.lane.b32.xlu0 %v5760, 3
      %v6632 = vpop.permute.xlu0 %6631
      %6633 = vrot.lane.b32.xlu0 %v5761, 3
      %v6634 = vpop.permute.xlu0 %6633
      %6635 = vrot.lane.b32.xlu0 %v5762, 3
      %v6636 = vpop.permute.xlu0 %6635
      %6637 = vrot.lane.b32.xlu0 %v5763, 3
      %v6638 = vpop.permute.xlu0 %6637
      %6639 = vrot.lane.b32.xlu0 %v5764, 3
      %v6640 = vpop.permute.xlu0 %6639
      %6641 = vrot.lane.b32.xlu0 %v5765, 3
      %v6642 = vpop.permute.xlu0 %6641
      %6643 = vrot.lane.b32.xlu0 %v5766, 3
      %v6644 = vpop.permute.xlu0 %6643
      %6645 = vrot.lane.b32.xlu0 %v5767, 3
      %v6646 = vpop.permute.xlu0 %6645
      %6647 = vrot.lane.b32.xlu0 %v5768, 3
      %v6648 = vpop.permute.xlu0 %6647
      %6649 = vrot.lane.b32.xlu0 %v5769, 3
      %v6650 = vpop.permute.xlu0 %6649
      %6651 = vrot.lane.b32.xlu0 %v5770, 3
      %v6652 = vpop.permute.xlu0 %6651
      %6653 = vrot.lane.b32.xlu0 %v5771, 3
      %v6654 = vpop.permute.xlu0 %6653
      %6655 = vrot.lane.b32.xlu0 %v5772, 3
      %v6656 = vpop.permute.xlu0 %6655
      %6657 = vrot.lane.b32.xlu0 %v5773, 3
      %v6658 = vpop.permute.xlu0 %6657
      %6659 = vrot.lane.b32.xlu0 %v5774, 3
      %v6660 = vpop.permute.xlu0 %6659
      %6661 = vrot.lane.b32.xlu0 %v5775, 3
      %v6662 = vpop.permute.xlu0 %6661
      %6663 = vrot.lane.b32.xlu0 %v5776, 3
      %v6664 = vpop.permute.xlu0 %6663
      %6665 = vrot.lane.b32.xlu0 %v5777, 3
      %v6666 = vpop.permute.xlu0 %6665
      %6667 = vrot.lane.b32.xlu0 %v5778, 3
      %v6668 = vpop.permute.xlu0 %6667
      %6669 = vrot.lane.b32.xlu0 %v5779, 3
      %v6670 = vpop.permute.xlu0 %6669
      %6671 = vrot.lane.b32.xlu0 %v5780, 3
      %v6672 = vpop.permute.xlu0 %6671
      %6673 = vrot.lane.b32.xlu0 %v5781, 3
      %v6674 = vpop.permute.xlu0 %6673
      %6675 = vrot.lane.b32.xlu0 %v5782, 3
      %v6676 = vpop.permute.xlu0 %6675
      %6677 = vrot.lane.b32.xlu0 %v5783, 3
      %v6678 = vpop.permute.xlu0 %6677
      %6679 = vrot.lane.b32.xlu0 %v5784, 3
      %v6680 = vpop.permute.xlu0 %6679
      %6681 = vrot.lane.b32.xlu0 %v5785, 3
      %v6682 = vpop.permute.xlu0 %6681
      %6683 = vrot.lane.b32.xlu0 %v5786, 3
      %v6684 = vpop.permute.xlu0 %6683
      %6685 = vrot.lane.b32.xlu0 %v5787, 3
      %v6686 = vpop.permute.xlu0 %6685
      %6687 = vrot.lane.b32.xlu0 %v5788, 3
      %v6688 = vpop.permute.xlu0 %6687
      %6689 = vrot.lane.b32.xlu0 %v5789, 3
      %v6690 = vpop.permute.xlu0 %6689
      %6691 = vrot.lane.b32.xlu0 %v5790, 3
      %v6692 = vpop.permute.xlu0 %6691
      %6693 = vrot.lane.b32.xlu0 %v5791, 3
      %v6694 = vpop.permute.xlu0 %6693
      %6695 = vrot.lane.b32.xlu0 %v5792, 3
      %v6696 = vpop.permute.xlu0 %6695
      %6697 = vrot.lane.b32.xlu0 %v5793, 3
      %v6698 = vpop.permute.xlu0 %6697
      %6699 = vrot.lane.b32.xlu0 %v5794, 3
      %v6700 = vpop.permute.xlu0 %6699
      %6701 = vrot.lane.b32.xlu0 %v5795, 3
      %v6702 = vpop.permute.xlu0 %6701
      %6703 = vrot.lane.b32.xlu0 %v5796, 3
      %v6704 = vpop.permute.xlu0 %6703
      %6705 = vrot.lane.b32.xlu0 %v5797, 3
      %v6706 = vpop.permute.xlu0 %6705
      %6707 = vrot.lane.b32.xlu0 %v5798, 3
      %v6708 = vpop.permute.xlu0 %6707
      %6709 = vrot.lane.b32.xlu0 %v5799, 3
      %v6710 = vpop.permute.xlu0 %6709
      %6711 = vrot.lane.b32.xlu0 %v5800, 3
      %v6712 = vpop.permute.xlu0 %6711
      %6713 = vrot.lane.b32.xlu0 %v5801, 3
      %v6714 = vpop.permute.xlu0 %6713
      %6715 = vrot.lane.b32.xlu0 %v5802, 3
      %v6716 = vpop.permute.xlu0 %6715
      %6717 = vrot.lane.b32.xlu0 %v5803, 3
      %v6718 = vpop.permute.xlu0 %6717
      %6719 = vrot.lane.b32.xlu0 %v5804, 3
      %v6720 = vpop.permute.xlu0 %6719
      %6721 = vrot.lane.b32.xlu0 %v5805, 3
      %v6722 = vpop.permute.xlu0 %6721
      %6723 = vrot.lane.b32.xlu0 %v5806, 3
      %v6724 = vpop.permute.xlu0 %6723
      %6725 = vrot.lane.b32.xlu0 %v5807, 3
      %v6726 = vpop.permute.xlu0 %6725
      %6727 = vrot.lane.b32.xlu0 %v5808, 3
      %v6728 = vpop.permute.xlu0 %6727
      %6729 = vrot.lane.b32.xlu0 %v5809, 3
      %v6730 = vpop.permute.xlu0 %6729
      %6731 = vrot.lane.b32.xlu0 %v5810, 3
      %v6732 = vpop.permute.xlu0 %6731
      %6733 = vrot.lane.b32.xlu0 %v5811, 3
      %v6734 = vpop.permute.xlu0 %6733
      %6735 = vrot.lane.b32.xlu0 %v5812, 3
      %v6736 = vpop.permute.xlu0 %6735
      %6737 = vrot.lane.b32.xlu0 %v5813, 3
      %v6738 = vpop.permute.xlu0 %6737
      %6739 = vrot.lane.b32.xlu0 %v5814, 3
      %v6740 = vpop.permute.xlu0 %6739
      %6741 = vrot.lane.b32.xlu0 %v5815, 3
      %v6742 = vpop.permute.xlu0 %6741
      %6743 = vrot.lane.b32.xlu0 %v5816, 3
      %v6744 = vpop.permute.xlu0 %6743
      %6745 = vrot.lane.b32.xlu0 %v5817, 3
      %v6746 = vpop.permute.xlu0 %6745
      %6747 = vrot.lane.b32.xlu0 %v5818, 3
      %v6748 = vpop.permute.xlu0 %6747
      %6749 = vrot.lane.b32.xlu0 %v5819, 3
      %v6750 = vpop.permute.xlu0 %6749
      %6751 = vrot.lane.b32.xlu0 %v5820, 3
      %v6752 = vpop.permute.xlu0 %6751
      %6753 = vrot.lane.b32.xlu0 %v5821, 3
      %v6754 = vpop.permute.xlu0 %6753
      %6755 = vrot.lane.b32.xlu0 %v5822, 3
      %v6756 = vpop.permute.xlu0 %6755
      %6757 = vrot.lane.b32.xlu0 %v5823, 3
      %v6758 = vpop.permute.xlu0 %6757
      %6759 = vrot.lane.b32.xlu0 %v5824, 3
      %v6760 = vpop.permute.xlu0 %6759
      %6761 = vrot.lane.b32.xlu0 %v5825, 3
      %v6762 = vpop.permute.xlu0 %6761
      %6763 = vrot.lane.b32.xlu0 %v5826, 3
      %v6764 = vpop.permute.xlu0 %6763
      %6765 = vrot.lane.b32.xlu0 %v5827, 3
      %v6766 = vpop.permute.xlu0 %6765
      %6767 = vrot.lane.b32.xlu0 %v5828, 3
      %v6768 = vpop.permute.xlu0 %6767
      %6769 = vrot.lane.b32.xlu0 %v5829, 3
      %v6770 = vpop.permute.xlu0 %6769
      %6771 = vrot.lane.b32.xlu0 %v5830, 3
      %v6772 = vpop.permute.xlu0 %6771
      %6773 = vrot.lane.b32.xlu0 %v5831, 3
      %v6774 = vpop.permute.xlu0 %6773
      %6775 = vrot.lane.b32.xlu0 %v5832, 3
      %v6776 = vpop.permute.xlu0 %6775
      %6777 = vrot.lane.b32.xlu0 %v5833, 3
      %v6778 = vpop.permute.xlu0 %6777
      %6779 = vrot.lane.b32.xlu0 %v5834, 3
      %v6780 = vpop.permute.xlu0 %6779
      %6781 = vrot.lane.b32.xlu0 %v5835, 3
      %v6782 = vpop.permute.xlu0 %6781
      %6783 = vrot.lane.b32.xlu0 %v5836, 3
      %v6784 = vpop.permute.xlu0 %6783
      %6785 = vrot.lane.b32.xlu0 %v5837, 3
      %v6786 = vpop.permute.xlu0 %6785
      %6787 = vrot.lane.b32.xlu0 %v5838, 3
      %v6788 = vpop.permute.xlu0 %6787
      %6789 = vrot.lane.b32.xlu0 %v5839, 3
      %v6790 = vpop.permute.xlu0 %6789
      %6791 = vrot.lane.b32.xlu0 %v5840, 3
      %v6792 = vpop.permute.xlu0 %6791
      %6793 = vrot.lane.b32.xlu0 %v5841, 3
      %v6794 = vpop.permute.xlu0 %6793
      %6795 = vrot.lane.b32.xlu0 %v5842, 3
      %v6796 = vpop.permute.xlu0 %6795
      %6797 = vrot.lane.b32.xlu0 %v5843, 3
      %v6798 = vpop.permute.xlu0 %6797
      %6799 = vrot.lane.b32.xlu0 %v5844, 3
      %v6800 = vpop.permute.xlu0 %6799
      %6801 = vrot.lane.b32.xlu0 %v5845, 3
      %v6802 = vpop.permute.xlu0 %6801
      %6803 = vrot.lane.b32.xlu0 %v5846, 3
      %v6804 = vpop.permute.xlu0 %6803
      %6805 = vrot.lane.b32.xlu0 %v5847, 3
      %v6806 = vpop.permute.xlu0 %6805
      %6807 = vrot.lane.b32.xlu0 %v5848, 3
      %v6808 = vpop.permute.xlu0 %6807
      %6809 = vrot.lane.b32.xlu0 %v5849, 3
      %v6810 = vpop.permute.xlu0 %6809
      %6811 = vrot.lane.b32.xlu0 %v5850, 3
      %v6812 = vpop.permute.xlu0 %6811
      %6813 = vrot.lane.b32.xlu0 %v5851, 3
      %v6814 = vpop.permute.xlu0 %6813
      %6815 = vrot.lane.b32.xlu0 %v5852, 3
      %v6816 = vpop.permute.xlu0 %6815
      %6817 = vrot.lane.b32.xlu0 %v5853, 3
      %v6818 = vpop.permute.xlu0 %6817
      %6819 = vrot.lane.b32.xlu0 %v5854, 3
      %v6820 = vpop.permute.xlu0 %6819
      %6821 = vrot.lane.b32.xlu0 %v5855, 3
      %v6822 = vpop.permute.xlu0 %6821
      %6823 = vrot.lane.b32.xlu0 %v5856, 3
      %v6824 = vpop.permute.xlu0 %6823
      %6825 = vrot.lane.b32.xlu0 %v5857, 3
      %v6826 = vpop.permute.xlu0 %6825
      %6827 = vrot.lane.b32.xlu0 %v5858, 3
      %v6828 = vpop.permute.xlu0 %6827
      %6829 = vrot.lane.b32.xlu0 %v5859, 3
      %v6830 = vpop.permute.xlu0 %6829
      %6831 = vrot.lane.b32.xlu0 %v5860, 3
      %v6832 = vpop.permute.xlu0 %6831
      %6833 = vrot.lane.b32.xlu0 %v5861, 3
      %v6834 = vpop.permute.xlu0 %6833
      %6835 = vrot.lane.b32.xlu0 %v5862, 3
      %v6836 = vpop.permute.xlu0 %6835
      %6837 = vrot.lane.b32.xlu0 %v5863, 3
      %v6838 = vpop.permute.xlu0 %6837
      %6839 = vrot.lane.b32.xlu0 %v5864, 3
      %v6840 = vpop.permute.xlu0 %6839
      %6841 = vrot.lane.b32.xlu0 %v5865, 3
      %v6842 = vpop.permute.xlu0 %6841
      %6843 = vrot.lane.b32.xlu0 %v5866, 3
      %v6844 = vpop.permute.xlu0 %6843
      %6845 = vrot.lane.b32.xlu0 %v5867, 3
      %v6846 = vpop.permute.xlu0 %6845
      %6847 = vrot.lane.b32.xlu0 %v5868, 3
      %v6848 = vpop.permute.xlu0 %6847
      %6849 = vrot.lane.b32.xlu0 %v5869, 3
      %v6850 = vpop.permute.xlu0 %6849
      %6851 = vrot.lane.b32.xlu0 %v5870, 3
      %v6852 = vpop.permute.xlu0 %6851
      %6853 = vrot.lane.b32.xlu0 %v5871, 3
      %v6854 = vpop.permute.xlu0 %6853
      %6855 = vrot.lane.b32.xlu0 %v5872, 3
      %v6856 = vpop.permute.xlu0 %6855
      %6857 = vrot.lane.b32.xlu0 %v5873, 3
      %v6858 = vpop.permute.xlu0 %6857
      %6859 = vrot.lane.b32.xlu0 %v5874, 3
      %v6860 = vpop.permute.xlu0 %6859
      %6861 = vrot.lane.b32.xlu0 %v5875, 3
      %v6862 = vpop.permute.xlu0 %6861
      %6863 = vrot.lane.b32.xlu0 %v5876, 3
      %v6864 = vpop.permute.xlu0 %6863
      %6865 = vrot.lane.b32.xlu0 %v5877, 3
      %v6866 = vpop.permute.xlu0 %6865
      %6867 = vrot.lane.b32.xlu0 %v5878, 3
      %v6868 = vpop.permute.xlu0 %6867
      %6869 = vrot.lane.b32.xlu0 %v5879, 3
      %v6870 = vpop.permute.xlu0 %6869
      %6871 = vrot.lane.b32.xlu0 %v5880, 3
      %v6872 = vpop.permute.xlu0 %6871
      %6873 = vrot.lane.b32.xlu0 %v5881, 3
      %v6874 = vpop.permute.xlu0 %6873
      %6875 = vrot.lane.b32.xlu0 %v5882, 3
      %v6876 = vpop.permute.xlu0 %6875
      %6877 = vrot.lane.b32.xlu0 %v5883, 3
      %v6878 = vpop.permute.xlu0 %6877
      %6879 = vrot.lane.b32.xlu0 %v5884, 3
      %v6880 = vpop.permute.xlu0 %6879
      %6881 = vrot.lane.b32.xlu0 %v5885, 3
      %v6882 = vpop.permute.xlu0 %6881
      %6883 = vrot.lane.b32.xlu0 %v5886, 3
      %v6884 = vpop.permute.xlu0 %6883
      %6885 = vrot.lane.b32.xlu0 %v5887, 3
      %v6886 = vpop.permute.xlu0 %6885
      %6887 = vrot.lane.b32.xlu0 %v5888, 3
      %v6888 = vpop.permute.xlu0 %6887
      %6889 = vrot.lane.b32.xlu0 %v5889, 3
      %v6890 = vpop.permute.xlu0 %6889
      %6891 = vrot.lane.b32.xlu0 %v5890, 3
      %v6892 = vpop.permute.xlu0 %6891
      %6893 = vrot.lane.b32.xlu0 %v5891, 3
      %v6894 = vpop.permute.xlu0 %6893
      %6895 = vrot.lane.b32.xlu0 %v5892, 3
      %v6896 = vpop.permute.xlu0 %6895
      %6897 = vrot.lane.b32.xlu0 %v5893, 3
      %v6898 = vpop.permute.xlu0 %6897
      %6899 = vrot.lane.b32.xlu0 %v5894, 3
      %v6900 = vpop.permute.xlu0 %6899
      %6901 = vrot.lane.b32.xlu0 %v5895, 3
      %v6902 = vpop.permute.xlu0 %6901
      %6903 = vrot.lane.b32.xlu0 %v5896, 3
      %v6904 = vpop.permute.xlu0 %6903
      %6905 = vrot.lane.b32.xlu0 %v5897, 3
      %v6906 = vpop.permute.xlu0 %6905
      %6907 = vrot.lane.b32.xlu0 %v5898, 3
      %v6908 = vpop.permute.xlu0 %6907
      %6909 = vrot.lane.b32.xlu0 %v5899, 3
      %v6910 = vpop.permute.xlu0 %6909
      %6911 = vrot.lane.b32.xlu0 %v5900, 3
      %v6912 = vpop.permute.xlu0 %6911
      %6913 = vrot.lane.b32.xlu0 %v5901, 3
      %v6914 = vpop.permute.xlu0 %6913
      %6915 = vrot.lane.b32.xlu0 %v5902, 3
      %v6916 = vpop.permute.xlu0 %6915
      %6917 = vrot.lane.b32.xlu0 %v5903, 3
      %v6918 = vpop.permute.xlu0 %6917
      %6919 = vrot.lane.b32.xlu0 %v5904, 3
      %v6920 = vpop.permute.xlu0 %6919
      %6921 = vrot.lane.b32.xlu0 %v5905, 3
      %v6922 = vpop.permute.xlu0 %6921
      %6923 = vrot.lane.b32.xlu0 %v5906, 3
      %v6924 = vpop.permute.xlu0 %6923
      %6925 = vrot.lane.b32.xlu0 %v5907, 3
      %v6926 = vpop.permute.xlu0 %6925
      %6927 = vrot.lane.b32.xlu0 %v5908, 3
      %v6928 = vpop.permute.xlu0 %6927
      %6929 = vrot.lane.b32.xlu0 %v5909, 3
      %v6930 = vpop.permute.xlu0 %6929
      %6931 = vrot.lane.b32.xlu0 %v5910, 3
      %v6932 = vpop.permute.xlu0 %6931
      %6933 = vrot.lane.b32.xlu0 %v5911, 3
      %v6934 = vpop.permute.xlu0 %6933
      %6935 = vrot.lane.b32.xlu0 %v5912, 3
      %v6936 = vpop.permute.xlu0 %6935
      %6937 = vrot.lane.b32.xlu0 %v5913, 3
      %v6938 = vpop.permute.xlu0 %6937
      %vm7195 = vcmask 56344
      %7196 = vst.msk [vmem:[%s199] sm:$0xff] %vm7195, %v6428
      %7197 = vst.msk [vmem:[%s199 + $0x8] sm:$0xff] %vm7195, %v6430
      %7198 = vst.msk [vmem:[%s199 + $0x10] sm:$0xff] %vm7195, %v6432
      %7199 = vst.msk [vmem:[%s199 + $0x18] sm:$0xff] %vm7195, %v6434
      %7200 = vst.msk [vmem:[%s199 + $0x20] sm:$0xff] %vm7195, %v6436
      %7201 = vst.msk [vmem:[%s199 + $0x28] sm:$0xff] %vm7195, %v6438
      %7202 = vst.msk [vmem:[%s199 + $0x30] sm:$0xff] %vm7195, %v6440
      %7203 = vst.msk [vmem:[%s199 + $0x38] sm:$0xff] %vm7195, %v6442
      %7204 = vst.msk [vmem:[%s199 + $0x40] sm:$0xff] %vm7195, %v6444
      %7205 = vst.msk [vmem:[%s199 + $0x48] sm:$0xff] %vm7195, %v6446
      %7206 = vst.msk [vmem:[%s199 + $0x50] sm:$0xff] %vm7195, %v6448
      %7207 = vst.msk [vmem:[%s199 + $0x58] sm:$0xff] %vm7195, %v6450
      %7208 = vst.msk [vmem:[%s199 + $0x60] sm:$0xff] %vm7195, %v6452
      %7209 = vst.msk [vmem:[%s199 + $0x68] sm:$0xff] %vm7195, %v6454
      %7210 = vst.msk [vmem:[%s199 + $0x70] sm:$0xff] %vm7195, %v6456
      %7211 = vst.msk [vmem:[%s199 + $0x78] sm:$0xff] %vm7195, %v6458
      %7212 = vst.msk [vmem:[%s199 + $0x80] sm:$0xff] %vm7195, %v6460
      %7213 = vst.msk [vmem:[%s199 + $0x88] sm:$0xff] %vm7195, %v6462
      %7214 = vst.msk [vmem:[%s199 + $0x90] sm:$0xff] %vm7195, %v6464
      %7215 = vst.msk [vmem:[%s199 + $0x98] sm:$0xff] %vm7195, %v6466
      %7216 = vst.msk [vmem:[%s199 + $0xa0] sm:$0xff] %vm7195, %v6468
      %7217 = vst.msk [vmem:[%s199 + $0xa8] sm:$0xff] %vm7195, %v6470
      %7218 = vst.msk [vmem:[%s199 + $0xb0] sm:$0xff] %vm7195, %v6472
      %7219 = vst.msk [vmem:[%s199 + $0xb8] sm:$0xff] %vm7195, %v6474
      %7220 = vst.msk [vmem:[%s199 + $0xc0] sm:$0xff] %vm7195, %v6476
      %7221 = vst.msk [vmem:[%s199 + $0xc8] sm:$0xff] %vm7195, %v6478
      %7222 = vst.msk [vmem:[%s199 + $0xd0] sm:$0xff] %vm7195, %v6480
      %7223 = vst.msk [vmem:[%s199 + $0xd8] sm:$0xff] %vm7195, %v6482
      %7224 = vst.msk [vmem:[%s199 + $0xe0] sm:$0xff] %vm7195, %v6484
      %7225 = vst.msk [vmem:[%s199 + $0xe8] sm:$0xff] %vm7195, %v6486
      %7226 = vst.msk [vmem:[%s199 + $0xf0] sm:$0xff] %vm7195, %v6488
      %7227 = vst.msk [vmem:[%s199 + $0xf8] sm:$0xff] %vm7195, %v6490
      %7228 = vst.msk [vmem:[%s199 + $0x100] sm:$0xff] %vm7195, %v6492
      %7229 = vst.msk [vmem:[%s199 + $0x108] sm:$0xff] %vm7195, %v6494
      %7230 = vst.msk [vmem:[%s199 + $0x110] sm:$0xff] %vm7195, %v6496
      %7231 = vst.msk [vmem:[%s199 + $0x118] sm:$0xff] %vm7195, %v6498
      %7232 = vst.msk [vmem:[%s199 + $0x120] sm:$0xff] %vm7195, %v6500
      %7233 = vst.msk [vmem:[%s199 + $0x128] sm:$0xff] %vm7195, %v6502
      %7234 = vst.msk [vmem:[%s199 + $0x130] sm:$0xff] %vm7195, %v6504
      %7235 = vst.msk [vmem:[%s199 + $0x138] sm:$0xff] %vm7195, %v6506
      %7236 = vst.msk [vmem:[%s199 + $0x140] sm:$0xff] %vm7195, %v6508
      %7237 = vst.msk [vmem:[%s199 + $0x148] sm:$0xff] %vm7195, %v6510
      %7238 = vst.msk [vmem:[%s199 + $0x150] sm:$0xff] %vm7195, %v6512
      %7239 = vst.msk [vmem:[%s199 + $0x158] sm:$0xff] %vm7195, %v6514
      %7240 = vst.msk [vmem:[%s199 + $0x160] sm:$0xff] %vm7195, %v6516
      %7241 = vst.msk [vmem:[%s199 + $0x168] sm:$0xff] %vm7195, %v6518
      %7242 = vst.msk [vmem:[%s199 + $0x170] sm:$0xff] %vm7195, %v6520
      %7243 = vst.msk [vmem:[%s199 + $0x178] sm:$0xff] %vm7195, %v6522
      %7244 = vst.msk [vmem:[%s199 + $0x180] sm:$0xff] %vm7195, %v6524
      %7245 = vst.msk [vmem:[%s199 + $0x188] sm:$0xff] %vm7195, %v6526
      %7246 = vst.msk [vmem:[%s199 + $0x190] sm:$0xff] %vm7195, %v6528
      %7247 = vst.msk [vmem:[%s199 + $0x198] sm:$0xff] %vm7195, %v6530
      %7248 = vst.msk [vmem:[%s199 + $0x1a0] sm:$0xff] %vm7195, %v6532
      %7249 = vst.msk [vmem:[%s199 + $0x1a8] sm:$0xff] %vm7195, %v6534
      %7250 = vst.msk [vmem:[%s199 + $0x1b0] sm:$0xff] %vm7195, %v6536
      %7251 = vst.msk [vmem:[%s199 + $0x1b8] sm:$0xff] %vm7195, %v6538
      %7252 = vst.msk [vmem:[%s199 + $0x1c0] sm:$0xff] %vm7195, %v6540
      %7253 = vst.msk [vmem:[%s199 + $0x1c8] sm:$0xff] %vm7195, %v6542
      %7254 = vst.msk [vmem:[%s199 + $0x1d0] sm:$0xff] %vm7195, %v6544
      %7255 = vst.msk [vmem:[%s199 + $0x1d8] sm:$0xff] %vm7195, %v6546
      %7256 = vst.msk [vmem:[%s199 + $0x1e0] sm:$0xff] %vm7195, %v6548
      %7257 = vst.msk [vmem:[%s199 + $0x1e8] sm:$0xff] %vm7195, %v6550
      %7258 = vst.msk [vmem:[%s199 + $0x1f0] sm:$0xff] %vm7195, %v6552
      %7259 = vst.msk [vmem:[%s199 + $0x1f8] sm:$0xff] %vm7195, %v6554
      %7260 = vst.msk [vmem:[%s199 + $0x200] sm:$0xff] %vm7195, %v6556
      %7261 = vst.msk [vmem:[%s199 + $0x208] sm:$0xff] %vm7195, %v6558
      %7262 = vst.msk [vmem:[%s199 + $0x210] sm:$0xff] %vm7195, %v6560
      %7263 = vst.msk [vmem:[%s199 + $0x218] sm:$0xff] %vm7195, %v6562
      %7264 = vst.msk [vmem:[%s199 + $0x220] sm:$0xff] %vm7195, %v6564
      %7265 = vst.msk [vmem:[%s199 + $0x228] sm:$0xff] %vm7195, %v6566
      %7266 = vst.msk [vmem:[%s199 + $0x230] sm:$0xff] %vm7195, %v6568
      %7267 = vst.msk [vmem:[%s199 + $0x238] sm:$0xff] %vm7195, %v6570
      %7268 = vst.msk [vmem:[%s199 + $0x240] sm:$0xff] %vm7195, %v6572
      %7269 = vst.msk [vmem:[%s199 + $0x248] sm:$0xff] %vm7195, %v6574
      %7270 = vst.msk [vmem:[%s199 + $0x250] sm:$0xff] %vm7195, %v6576
      %7271 = vst.msk [vmem:[%s199 + $0x258] sm:$0xff] %vm7195, %v6578
      %7272 = vst.msk [vmem:[%s199 + $0x260] sm:$0xff] %vm7195, %v6580
      %7273 = vst.msk [vmem:[%s199 + $0x268] sm:$0xff] %vm7195, %v6582
      %7274 = vst.msk [vmem:[%s199 + $0x270] sm:$0xff] %vm7195, %v6584
      %7275 = vst.msk [vmem:[%s199 + $0x278] sm:$0xff] %vm7195, %v6586
      %7276 = vst.msk [vmem:[%s199 + $0x280] sm:$0xff] %vm7195, %v6588
      %7277 = vst.msk [vmem:[%s199 + $0x288] sm:$0xff] %vm7195, %v6590
      %7278 = vst.msk [vmem:[%s199 + $0x290] sm:$0xff] %vm7195, %v6592
      %7279 = vst.msk [vmem:[%s199 + $0x298] sm:$0xff] %vm7195, %v6594
      %7280 = vst.msk [vmem:[%s199 + $0x2a0] sm:$0xff] %vm7195, %v6596
      %7281 = vst.msk [vmem:[%s199 + $0x2a8] sm:$0xff] %vm7195, %v6598
      %7282 = vst.msk [vmem:[%s199 + $0x2b0] sm:$0xff] %vm7195, %v6600
      %7283 = vst.msk [vmem:[%s199 + $0x2b8] sm:$0xff] %vm7195, %v6602
      %7284 = vst.msk [vmem:[%s199 + $0x2c0] sm:$0xff] %vm7195, %v6604
      %7285 = vst.msk [vmem:[%s199 + $0x2c8] sm:$0xff] %vm7195, %v6606
      %7286 = vst.msk [vmem:[%s199 + $0x2d0] sm:$0xff] %vm7195, %v6608
      %7287 = vst.msk [vmem:[%s199 + $0x2d8] sm:$0xff] %vm7195, %v6610
      %7288 = vst.msk [vmem:[%s199 + $0x2e0] sm:$0xff] %vm7195, %v6612
      %7289 = vst.msk [vmem:[%s199 + $0x2e8] sm:$0xff] %vm7195, %v6614
      %7290 = vst.msk [vmem:[%s199 + $0x2f0] sm:$0xff] %vm7195, %v6616
      %7291 = vst.msk [vmem:[%s199 + $0x2f8] sm:$0xff] %vm7195, %v6618
      %7292 = vst.msk [vmem:[%s199 + $0x300] sm:$0xff] %vm7195, %v6620
      %7293 = vst.msk [vmem:[%s199 + $0x308] sm:$0xff] %vm7195, %v6622
      %7294 = vst.msk [vmem:[%s199 + $0x310] sm:$0xff] %vm7195, %v6624
      %7295 = vst.msk [vmem:[%s199 + $0x318] sm:$0xff] %vm7195, %v6626
      %7296 = vst.msk [vmem:[%s199 + $0x320] sm:$0xff] %vm7195, %v6628
      %7297 = vst.msk [vmem:[%s199 + $0x328] sm:$0xff] %vm7195, %v6630
      %7298 = vst.msk [vmem:[%s199 + $0x330] sm:$0xff] %vm7195, %v6632
      %7299 = vst.msk [vmem:[%s199 + $0x338] sm:$0xff] %vm7195, %v6634
      %7300 = vst.msk [vmem:[%s199 + $0x340] sm:$0xff] %vm7195, %v6636
      %7301 = vst.msk [vmem:[%s199 + $0x348] sm:$0xff] %vm7195, %v6638
      %7302 = vst.msk [vmem:[%s199 + $0x350] sm:$0xff] %vm7195, %v6640
      %7303 = vst.msk [vmem:[%s199 + $0x358] sm:$0xff] %vm7195, %v6642
      %7304 = vst.msk [vmem:[%s199 + $0x360] sm:$0xff] %vm7195, %v6644
      %7305 = vst.msk [vmem:[%s199 + $0x368] sm:$0xff] %vm7195, %v6646
      %7306 = vst.msk [vmem:[%s199 + $0x370] sm:$0xff] %vm7195, %v6648
      %7307 = vst.msk [vmem:[%s199 + $0x378] sm:$0xff] %vm7195, %v6650
      %7308 = vst.msk [vmem:[%s199 + $0x380] sm:$0xff] %vm7195, %v6652
      %7309 = vst.msk [vmem:[%s199 + $0x388] sm:$0xff] %vm7195, %v6654
      %7310 = vst.msk [vmem:[%s199 + $0x390] sm:$0xff] %vm7195, %v6656
      %7311 = vst.msk [vmem:[%s199 + $0x398] sm:$0xff] %vm7195, %v6658
      %7312 = vst.msk [vmem:[%s199 + $0x3a0] sm:$0xff] %vm7195, %v6660
      %7313 = vst.msk [vmem:[%s199 + $0x3a8] sm:$0xff] %vm7195, %v6662
      %7314 = vst.msk [vmem:[%s199 + $0x3b0] sm:$0xff] %vm7195, %v6664
      %7315 = vst.msk [vmem:[%s199 + $0x3b8] sm:$0xff] %vm7195, %v6666
      %7316 = vst.msk [vmem:[%s199 + $0x3c0] sm:$0xff] %vm7195, %v6668
      %7317 = vst.msk [vmem:[%s199 + $0x3c8] sm:$0xff] %vm7195, %v6670
      %7318 = vst.msk [vmem:[%s199 + $0x3d0] sm:$0xff] %vm7195, %v6672
      %7319 = vst.msk [vmem:[%s199 + $0x3d8] sm:$0xff] %vm7195, %v6674
      %7320 = vst.msk [vmem:[%s199 + $0x3e0] sm:$0xff] %vm7195, %v6676
      %7321 = vst.msk [vmem:[%s199 + $0x3e8] sm:$0xff] %vm7195, %v6678
      %7322 = vst.msk [vmem:[%s199 + $0x3f0] sm:$0xff] %vm7195, %v6680
      %7323 = vst.msk [vmem:[%s199 + $0x3f8] sm:$0xff] %vm7195, %v6682
      %7324 = vst.msk [vmem:[%s199 + $0x400] sm:$0xff] %vm7195, %v6684
      %7325 = vst.msk [vmem:[%s199 + $0x408] sm:$0xff] %vm7195, %v6686
      %7326 = vst.msk [vmem:[%s199 + $0x410] sm:$0xff] %vm7195, %v6688
      %7327 = vst.msk [vmem:[%s199 + $0x418] sm:$0xff] %vm7195, %v6690
      %7328 = vst.msk [vmem:[%s199 + $0x420] sm:$0xff] %vm7195, %v6692
      %7329 = vst.msk [vmem:[%s199 + $0x428] sm:$0xff] %vm7195, %v6694
      %7330 = vst.msk [vmem:[%s199 + $0x430] sm:$0xff] %vm7195, %v6696
      %7331 = vst.msk [vmem:[%s199 + $0x438] sm:$0xff] %vm7195, %v6698
      %7332 = vst.msk [vmem:[%s199 + $0x440] sm:$0xff] %vm7195, %v6700
      %7333 = vst.msk [vmem:[%s199 + $0x448] sm:$0xff] %vm7195, %v6702
      %7334 = vst.msk [vmem:[%s199 + $0x450] sm:$0xff] %vm7195, %v6704
      %7335 = vst.msk [vmem:[%s199 + $0x458] sm:$0xff] %vm7195, %v6706
      %7336 = vst.msk [vmem:[%s199 + $0x460] sm:$0xff] %vm7195, %v6708
      %7337 = vst.msk [vmem:[%s199 + $0x468] sm:$0xff] %vm7195, %v6710
      %7338 = vst.msk [vmem:[%s199 + $0x470] sm:$0xff] %vm7195, %v6712
      %7339 = vst.msk [vmem:[%s199 + $0x478] sm:$0xff] %vm7195, %v6714
      %7340 = vst.msk [vmem:[%s199 + $0x480] sm:$0xff] %vm7195, %v6716
      %7341 = vst.msk [vmem:[%s199 + $0x488] sm:$0xff] %vm7195, %v6718
      %7342 = vst.msk [vmem:[%s199 + $0x490] sm:$0xff] %vm7195, %v6720
      %7343 = vst.msk [vmem:[%s199 + $0x498] sm:$0xff] %vm7195, %v6722
      %7344 = vst.msk [vmem:[%s199 + $0x4a0] sm:$0xff] %vm7195, %v6724
      %7345 = vst.msk [vmem:[%s199 + $0x4a8] sm:$0xff] %vm7195, %v6726
      %7346 = vst.msk [vmem:[%s199 + $0x4b0] sm:$0xff] %vm7195, %v6728
      %7347 = vst.msk [vmem:[%s199 + $0x4b8] sm:$0xff] %vm7195, %v6730
      %7348 = vst.msk [vmem:[%s199 + $0x4c0] sm:$0xff] %vm7195, %v6732
      %7349 = vst.msk [vmem:[%s199 + $0x4c8] sm:$0xff] %vm7195, %v6734
      %7350 = vst.msk [vmem:[%s199 + $0x4d0] sm:$0xff] %vm7195, %v6736
      %7351 = vst.msk [vmem:[%s199 + $0x4d8] sm:$0xff] %vm7195, %v6738
      %7352 = vst.msk [vmem:[%s199 + $0x4e0] sm:$0xff] %vm7195, %v6740
      %7353 = vst.msk [vmem:[%s199 + $0x4e8] sm:$0xff] %vm7195, %v6742
      %7354 = vst.msk [vmem:[%s199 + $0x4f0] sm:$0xff] %vm7195, %v6744
      %7355 = vst.msk [vmem:[%s199 + $0x4f8] sm:$0xff] %vm7195, %v6746
      %7356 = vst.msk [vmem:[%s199 + $0x500] sm:$0xff] %vm7195, %v6748
      %7357 = vst.msk [vmem:[%s199 + $0x508] sm:$0xff] %vm7195, %v6750
      %7358 = vst.msk [vmem:[%s199 + $0x510] sm:$0xff] %vm7195, %v6752
      %7359 = vst.msk [vmem:[%s199 + $0x518] sm:$0xff] %vm7195, %v6754
      %7360 = vst.msk [vmem:[%s199 + $0x520] sm:$0xff] %vm7195, %v6756
      %7361 = vst.msk [vmem:[%s199 + $0x528] sm:$0xff] %vm7195, %v6758
      %7362 = vst.msk [vmem:[%s199 + $0x530] sm:$0xff] %vm7195, %v6760
      %7363 = vst.msk [vmem:[%s199 + $0x538] sm:$0xff] %vm7195, %v6762
      %7364 = vst.msk [vmem:[%s199 + $0x540] sm:$0xff] %vm7195, %v6764
      %7365 = vst.msk [vmem:[%s199 + $0x548] sm:$0xff] %vm7195, %v6766
      %7366 = vst.msk [vmem:[%s199 + $0x550] sm:$0xff] %vm7195, %v6768
      %7367 = vst.msk [vmem:[%s199 + $0x558] sm:$0xff] %vm7195, %v6770
      %7368 = vst.msk [vmem:[%s199 + $0x560] sm:$0xff] %vm7195, %v6772
      %7369 = vst.msk [vmem:[%s199 + $0x568] sm:$0xff] %vm7195, %v6774
      %7370 = vst.msk [vmem:[%s199 + $0x570] sm:$0xff] %vm7195, %v6776
      %7371 = vst.msk [vmem:[%s199 + $0x578] sm:$0xff] %vm7195, %v6778
      %7372 = vst.msk [vmem:[%s199 + $0x580] sm:$0xff] %vm7195, %v6780
      %7373 = vst.msk [vmem:[%s199 + $0x588] sm:$0xff] %vm7195, %v6782
      %7374 = vst.msk [vmem:[%s199 + $0x590] sm:$0xff] %vm7195, %v6784
      %7375 = vst.msk [vmem:[%s199 + $0x598] sm:$0xff] %vm7195, %v6786
      %7376 = vst.msk [vmem:[%s199 + $0x5a0] sm:$0xff] %vm7195, %v6788
      %7377 = vst.msk [vmem:[%s199 + $0x5a8] sm:$0xff] %vm7195, %v6790
      %7378 = vst.msk [vmem:[%s199 + $0x5b0] sm:$0xff] %vm7195, %v6792
      %7379 = vst.msk [vmem:[%s199 + $0x5b8] sm:$0xff] %vm7195, %v6794
      %7380 = vst.msk [vmem:[%s199 + $0x5c0] sm:$0xff] %vm7195, %v6796
      %7381 = vst.msk [vmem:[%s199 + $0x5c8] sm:$0xff] %vm7195, %v6798
      %7382 = vst.msk [vmem:[%s199 + $0x5d0] sm:$0xff] %vm7195, %v6800
      %7383 = vst.msk [vmem:[%s199 + $0x5d8] sm:$0xff] %vm7195, %v6802
      %7384 = vst.msk [vmem:[%s199 + $0x5e0] sm:$0xff] %vm7195, %v6804
      %7385 = vst.msk [vmem:[%s199 + $0x5e8] sm:$0xff] %vm7195, %v6806
      %7386 = vst.msk [vmem:[%s199 + $0x5f0] sm:$0xff] %vm7195, %v6808
      %7387 = vst.msk [vmem:[%s199 + $0x5f8] sm:$0xff] %vm7195, %v6810
      %7388 = vst.msk [vmem:[%s199 + $0x600] sm:$0xff] %vm7195, %v6812
      %7389 = vst.msk [vmem:[%s199 + $0x608] sm:$0xff] %vm7195, %v6814
      %7390 = vst.msk [vmem:[%s199 + $0x610] sm:$0xff] %vm7195, %v6816
      %7391 = vst.msk [vmem:[%s199 + $0x618] sm:$0xff] %vm7195, %v6818
      %7392 = vst.msk [vmem:[%s199 + $0x620] sm:$0xff] %vm7195, %v6820
      %7393 = vst.msk [vmem:[%s199 + $0x628] sm:$0xff] %vm7195, %v6822
      %7394 = vst.msk [vmem:[%s199 + $0x630] sm:$0xff] %vm7195, %v6824
      %7395 = vst.msk [vmem:[%s199 + $0x638] sm:$0xff] %vm7195, %v6826
      %7396 = vst.msk [vmem:[%s199 + $0x640] sm:$0xff] %vm7195, %v6828
      %7397 = vst.msk [vmem:[%s199 + $0x648] sm:$0xff] %vm7195, %v6830
      %7398 = vst.msk [vmem:[%s199 + $0x650] sm:$0xff] %vm7195, %v6832
      %7399 = vst.msk [vmem:[%s199 + $0x658] sm:$0xff] %vm7195, %v6834
      %7400 = vst.msk [vmem:[%s199 + $0x660] sm:$0xff] %vm7195, %v6836
      %7401 = vst.msk [vmem:[%s199 + $0x668] sm:$0xff] %vm7195, %v6838
      %7402 = vst.msk [vmem:[%s199 + $0x670] sm:$0xff] %vm7195, %v6840
      %7403 = vst.msk [vmem:[%s199 + $0x678] sm:$0xff] %vm7195, %v6842
      %7404 = vst.msk [vmem:[%s199 + $0x680] sm:$0xff] %vm7195, %v6844
      %7405 = vst.msk [vmem:[%s199 + $0x688] sm:$0xff] %vm7195, %v6846
      %7406 = vst.msk [vmem:[%s199 + $0x690] sm:$0xff] %vm7195, %v6848
      %7407 = vst.msk [vmem:[%s199 + $0x698] sm:$0xff] %vm7195, %v6850
      %7408 = vst.msk [vmem:[%s199 + $0x6a0] sm:$0xff] %vm7195, %v6852
      %7409 = vst.msk [vmem:[%s199 + $0x6a8] sm:$0xff] %vm7195, %v6854
      %7410 = vst.msk [vmem:[%s199 + $0x6b0] sm:$0xff] %vm7195, %v6856
      %7411 = vst.msk [vmem:[%s199 + $0x6b8] sm:$0xff] %vm7195, %v6858
      %7412 = vst.msk [vmem:[%s199 + $0x6c0] sm:$0xff] %vm7195, %v6860
      %7413 = vst.msk [vmem:[%s199 + $0x6c8] sm:$0xff] %vm7195, %v6862
      %7414 = vst.msk [vmem:[%s199 + $0x6d0] sm:$0xff] %vm7195, %v6864
      %7415 = vst.msk [vmem:[%s199 + $0x6d8] sm:$0xff] %vm7195, %v6866
      %7416 = vst.msk [vmem:[%s199 + $0x6e0] sm:$0xff] %vm7195, %v6868
      %7417 = vst.msk [vmem:[%s199 + $0x6e8] sm:$0xff] %vm7195, %v6870
      %7418 = vst.msk [vmem:[%s199 + $0x6f0] sm:$0xff] %vm7195, %v6872
      %7419 = vst.msk [vmem:[%s199 + $0x6f8] sm:$0xff] %vm7195, %v6874
      %7420 = vst.msk [vmem:[%s199 + $0x700] sm:$0xff] %vm7195, %v6876
      %7421 = vst.msk [vmem:[%s199 + $0x708] sm:$0xff] %vm7195, %v6878
      %7422 = vst.msk [vmem:[%s199 + $0x710] sm:$0xff] %vm7195, %v6880
      %7423 = vst.msk [vmem:[%s199 + $0x718] sm:$0xff] %vm7195, %v6882
      %7424 = vst.msk [vmem:[%s199 + $0x720] sm:$0xff] %vm7195, %v6884
      %7425 = vst.msk [vmem:[%s199 + $0x728] sm:$0xff] %vm7195, %v6886
      %7426 = vst.msk [vmem:[%s199 + $0x730] sm:$0xff] %vm7195, %v6888
      %7427 = vst.msk [vmem:[%s199 + $0x738] sm:$0xff] %vm7195, %v6890
      %7428 = vst.msk [vmem:[%s199 + $0x740] sm:$0xff] %vm7195, %v6892
      %7429 = vst.msk [vmem:[%s199 + $0x748] sm:$0xff] %vm7195, %v6894
      %7430 = vst.msk [vmem:[%s199 + $0x750] sm:$0xff] %vm7195, %v6896
      %7431 = vst.msk [vmem:[%s199 + $0x758] sm:$0xff] %vm7195, %v6898
      %7432 = vst.msk [vmem:[%s199 + $0x760] sm:$0xff] %vm7195, %v6900
      %7433 = vst.msk [vmem:[%s199 + $0x768] sm:$0xff] %vm7195, %v6902
      %7434 = vst.msk [vmem:[%s199 + $0x770] sm:$0xff] %vm7195, %v6904
      %7435 = vst.msk [vmem:[%s199 + $0x778] sm:$0xff] %vm7195, %v6906
      %7436 = vst.msk [vmem:[%s199 + $0x780] sm:$0xff] %vm7195, %v6908
      %7437 = vst.msk [vmem:[%s199 + $0x788] sm:$0xff] %vm7195, %v6910
      %7438 = vst.msk [vmem:[%s199 + $0x790] sm:$0xff] %vm7195, %v6912
      %7439 = vst.msk [vmem:[%s199 + $0x798] sm:$0xff] %vm7195, %v6914
      %7440 = vst.msk [vmem:[%s199 + $0x7a0] sm:$0xff] %vm7195, %v6916
      %7441 = vst.msk [vmem:[%s199 + $0x7a8] sm:$0xff] %vm7195, %v6918
      %7442 = vst.msk [vmem:[%s199 + $0x7b0] sm:$0xff] %vm7195, %v6920
      %7443 = vst.msk [vmem:[%s199 + $0x7b8] sm:$0xff] %vm7195, %v6922
      %7444 = vst.msk [vmem:[%s199 + $0x7c0] sm:$0xff] %vm7195, %v6924
      %7445 = vst.msk [vmem:[%s199 + $0x7c8] sm:$0xff] %vm7195, %v6926
      %7446 = vst.msk [vmem:[%s199 + $0x7d0] sm:$0xff] %vm7195, %v6928
      %7447 = vst.msk [vmem:[%s199 + $0x7d8] sm:$0xff] %vm7195, %v6930
      %7448 = vst.msk [vmem:[%s199 + $0x7e0] sm:$0xff] %vm7195, %v6932
      %7449 = vst.msk [vmem:[%s199 + $0x7e8] sm:$0xff] %vm7195, %v6934
      %7450 = vst.msk [vmem:[%s199 + $0x7f0] sm:$0xff] %vm7195, %v6936
      %7451 = vst.msk [vmem:[%s199 + $0x7f8] sm:$0xff] %vm7195, %v6938
      %s7452 = smul.u32 256, %s15
      %p7453 = scmp.lt.s32.totalorder %s7452, 1023
      %s7454 = scalar_select %p7453, %s7452, 1023
      %s7455 = smul.addr %s7454, 8
      %s7456 = scalar_lea.vmem %s4, %s7455
      // Predicated region
      $region37: #{tpu_custom_call.1} parent=35 // pred_check
        %p7457 = pneg %p122
      $region38: #{tpu_custom_call.1} parent=35 // pred_check_branch
        %7459 = sbr.rel (%p7457) target = $region40
      $region39: #{tpu_custom_call.1} parent=35 // pred_region
        %s7460 = smul.u32 256, %s15
      $region40: #{tpu_custom_call.1} parent=35 // pred_fallthru
        _
    $region36: #{tpu_custom_call.1} parent=5 // pred_fallthru
      _
    %p7461 = scmp.le.s32.totalorder 2, %s10
    // Predicated region
    $region41: #{tpu_custom_call.1} parent=5 // pred_check
      %p7462 = pneg %p7461
    $region42: #{tpu_custom_call.1} parent=5 // pred_check_branch
      %7464 = sbr.rel (%p7462) target = $region44
    $region43: #{tpu_custom_call.1} parent=5 // pred_region
      %s7465 = ssub.s32 %s10, 2
      // Predicated region
      $region45: #{tpu_custom_call.1} parent=43 // pred_check
        %p7466 = pneg %p128
      $region46: #{tpu_custom_call.1} parent=43 // pred_check_branch
        %7468 = sbr.rel (%p7466) target = $region48
      $region47: #{tpu_custom_call.1} parent=43 // pred_region
        %s7469 = smul.u32 256, %s16
        %p7470 = scmp.lt.s32.totalorder %s7469, 1023
        %s7471 = scalar_select %p7470, %s7469, 1023
        %s7472 = smul.addr %s7471, 8
        %s7473 = scalar_lea.vmem %s4, %s7472
      $region48: #{tpu_custom_call.1} parent=43 // pred_fallthru
        _
    $region44: #{tpu_custom_call.1} parent=5 // pred_fallthru
      _
  $region6: #{tpu_custom_call.1} parent=0 // loop_footer
    %s14 = sadd.s32 1, %s10
  $region7: #{tpu_custom_call.1} parent=0 // loop_footer_branch
    %9 = sbr.rel target = $region3
  $region8: #{tpu_custom_call.1} parent=0 // loop_exit
    _

</llo_original>
